<compile_context>
chip_gen: v7x
topology: tpu7x:2x2x1
jax: 0.10.0
libtpu: 0.0.40
codegen_flags: <defaults>
</compile_context>

<pallas_src>
import functools

import numpy as np

import jax
import jax.numpy as jnp
from jax import lax
from jax.experimental import pallas as pl
from jax.experimental.pallas import tpu as pltpu


def _freq_bands(n_freq: int, log_space: bool) -> np.ndarray:
    if log_space:
        return (2.0 ** np.linspace(0.0, n_freq - 1, n_freq)).astype(np.float32)
    return np.linspace(2.0 ** 0, 2.0 ** (n_freq - 1), n_freq).astype(np.float32)


def _pe_kernel(x_ref, tab_ref, o_ref, *, d, include_input):
    """out[:, j] = x[:, j]                                  for j < d (identity slots)
       out[:, j] = sin(freq[j] * x[:, j % d] + phase[j])    otherwise (sin/cos slots)
    """
    x = x_ref[...].astype(jnp.float32)           # (tile_n, d)
    tab = tab_ref[...]                           # (2, d_out) f32: [freq; phase]
    d_out = tab.shape[1]
    n_slots = d_out // d

    # xt[:, j] == x[:, j % d]  ->  one wide VPU mul+add, one wide EUP sin.
    xt = jnp.tile(x, (1, n_slots))               # (tile_n, d_out)
    z = xt * tab[0:1, :] + tab[1:2, :]
    enc = jnp.sin(z)                             # cos(y) == sin(y + pi/2) via phase
    if include_input:
        # Identity lanes carry freq=1, phase=0 -> z == x there; select them back in.
        lane = lax.broadcasted_iota(jnp.int32, z.shape, 1)
        enc = jnp.where(lane < d, z, enc)
    o_ref[...] = enc.astype(o_ref.dtype)         # single full-block store


def positional_encoding(
    x: jax.Array,
    n_freq: int,
    include_input: bool = True,
    log_space: bool = False,
    tile_n: int = 8192,
    out_dtype=None,
) -> jax.Array:
    """Apply sine-cosine positional encoding to the last axis of x."""
    orig_shape = x.shape
    d = int(orig_shape[-1])
    n = int(np.prod(orig_shape[:-1])) if len(orig_shape) > 1 else 1
    out_dtype = x.dtype if out_dtype is None else jnp.dtype(out_dtype)

    if n_freq == 0:
        if not include_input:
            raise ValueError("n_freq=0 with include_input=False yields empty output")
        return x.astype(out_dtype)  # torch.cat([x], -1) is just x

    x2 = x.reshape(n, d)

    # Per-output-lane frequency / phase table (identity slots: freq=1, phase=0).
    freqs = _freq_bands(n_freq, log_space)                              # (n_freq,)
    fr = np.repeat(np.repeat(freqs, 2), d)                              # (2*n_freq*d,)
    ph = np.tile(
        np.concatenate([np.zeros(d, np.float32),
                        np.full(d, np.pi / 2, np.float32)]), n_freq)    # (2*n_freq*d,)
    if include_input:
        fr = np.concatenate([np.ones(d, np.float32), fr])
        ph = np.concatenate([np.zeros(d, np.float32), ph])
    d_out = int(fr.shape[0])
    tab = jnp.asarray(np.stack([fr, ph]).astype(np.float32))            # (2, d_out)

    # Tile sizing: a single full-extent block for small n (always layout-legal);
    # otherwise multiples of 8 rows, big enough to amortize ~0.35us/step overhead.
    if n <= tile_n:
        tile_n_eff = n
    else:
        tile_n_eff = max(8, (int(tile_n) // 8) * 8)
    grid = (pl.cdiv(n, tile_n_eff),)

    kernel = functools.partial(_pe_kernel, d=d, include_input=include_input)

    cost = pl.CostEstimate(
        flops=2 * n * d_out,
        transcendentals=n * d_out,
        bytes_accessed=n * d * int(jnp.dtype(x.dtype).itemsize)
        + n * d_out * int(jnp.dtype(out_dtype).itemsize),
    )

    out = pl.pallas_call(
        kernel,
        out_shape=jax.ShapeDtypeStruct((n, d_out), out_dtype),
        grid=grid,
        in_specs=[
            pl.BlockSpec((tile_n_eff, d), lambda i: (i, 0)),
            pl.BlockSpec((2, d_out), lambda i: (0, 0)),   # resident constant table
        ],
        out_specs=pl.BlockSpec((tile_n_eff, d_out), lambda i: (i, 0)),
        compiler_params=pltpu.CompilerParams(
            dimension_semantics=("parallel",),
            vmem_limit_bytes=48 * 1024 * 1024,
        ),
        cost_estimate=cost,
    )(x2, tab)

    return out.reshape(*orig_shape[:-1], d_out)


def _reference(x, n_freq, include_input=True, log_space=False):
    freqs = _freq_bands(n_freq, log_space)
    parts = [x] if include_input else []
    for f in freqs:
        parts.append(jnp.sin(x * f))
        parts.append(jnp.cos(x * f))
    return jnp.concatenate(parts, axis=-1)


if __name__ == "__main__":
    key = jax.random.PRNGKey(0)
    batch, num_points, dim = 2, 128, 3
    n_freq = 4
    x = jax.random.normal(key, (batch, num_points, dim), dtype=jnp.float32)
    x_ragged = jax.random.normal(jax.random.PRNGKey(1), (2, 100, dim), dtype=jnp.float32)

    # (input, include_input, log_space, extra kwargs)
    cases = [
        (x, True, False, {}),               # default, single block
        (x, True, True, {}),                # log-spaced frequencies
        (x, False, False, {}),              # no identity slot
        (x, True, False, {"tile_n": 64}),   # multi-step grid (4 steps)
        (x_ragged, True, False, {"tile_n": 64}),  # ragged last block (200 rows / 64)
    ]

    ok = True
    for xi, include_input, log_space, kw in cases:
        out = positional_encoding(
            xi, n_freq=n_freq, include_input=include_input, log_space=log_space, **kw)
        out = jax.block_until_ready(out)
        ref = _reference(
            xi, n_freq=n_freq, include_input=include_input, log_space=log_space)
        d_out = xi.shape[-1] * ((1 if include_input else 0) + 2 * n_freq)
        assert out.shape == xi.shape[:-1] + (d_out,), out.shape
        ok &= bool(jnp.allclose(out, ref, atol=5e-5, rtol=1e-5))

    assert ok, "mismatch vs reference"
    print("KERNEL_OK")
</pallas_src>

<mosaic_0001>
module attributes {stable_mosaic.version = 11 : i64} {
  func.func @_pe_kernel(%arg0: i32, %arg1: memref<256x3xf32, #tpu.memory_space<vmem>>, %arg2: memref<2x27xf32, #tpu.memory_space<vmem>>, %arg3: memref<256x27xf32, #tpu.memory_space<vmem>>) attributes {dimension_semantics = [#tpu.dimension_semantics<parallel>], iteration_bounds = array<i64: 1>, scalar_prefetch = 0 : i64, scratch_operands = 0 : i64, tpu.core_type = #tpu.core_type<tc>, window_params = [{transform_indices = @transform_0, window_bounds = array<i64: 256, 3>}, {pipeline_mode = #tpu.pipeline_mode<synchronous>, transform_indices = @transform_1, window_bounds = array<i64: 2, 27>}, {transform_indices = @transform_2, window_bounds = array<i64: 256, 27>}]} {
    %c0 = arith.constant 0 : index
    %c0_0 = arith.constant 0 : index
    %0 = vector.load %arg1[%c0, %c0_0] : memref<256x3xf32, #tpu.memory_space<vmem>>, vector<256x3xf32>
    %c0_1 = arith.constant 0 : index
    %c0_2 = arith.constant 0 : index
    %1 = vector.load %arg2[%c0_1, %c0_2] : memref<2x27xf32, #tpu.memory_space<vmem>>, vector<2x27xf32>
    %2 = tpu.concatenate %0, %0, %0, %0, %0, %0, %0, %0, %0 in 1 : vector<256x3xf32>, vector<256x3xf32>, vector<256x3xf32>, vector<256x3xf32>, vector<256x3xf32>, vector<256x3xf32>, vector<256x3xf32>, vector<256x3xf32>, vector<256x3xf32> -> vector<256x27xf32>
    %3 = vector.extract_strided_slice %1 {offsets = [0, 0], sizes = [1, 27], strides = [1, 1]} : vector<2x27xf32> to vector<1x27xf32>
    %4 = vector.broadcast %3 : vector<1x27xf32> to vector<256x27xf32>
    %5 = arith.mulf %2, %4 : vector<256x27xf32>
    %6 = vector.extract_strided_slice %1 {offsets = [1, 0], sizes = [1, 27], strides = [1, 1]} : vector<2x27xf32> to vector<1x27xf32>
    %7 = vector.broadcast %6 : vector<1x27xf32> to vector<256x27xf32>
    %8 = arith.addf %5, %7 : vector<256x27xf32>
    %9 = math.sin %8 : vector<256x27xf32>
    %10 = tpu.iota {dimensions = array<i32: 1>} : vector<256x27xi32>
    %c3_i32 = arith.constant 3 : i32
    %11 = vector.broadcast %c3_i32 : i32 to vector<256x27xi32>
    %12 = arith.cmpi slt, %10, %11 : vector<256x27xi32>
    %13 = arith.select %12, %8, %9 : vector<256x27xi1>, vector<256x27xf32>
    %c0_3 = arith.constant 0 : index
    %c0_4 = arith.constant 0 : index
    %14 = vector.load %arg3[%c0_3, %c0_4] : memref<256x27xf32, #tpu.memory_space<vmem>>, vector<256x27xf32>
    tpu.vector_store %arg3[%c0_3, %c0_4], %13 {strides = array<i32>} : memref<256x27xf32, #tpu.memory_space<vmem>>, vector<256x27xf32>,
    return
  }
  func.func @transform_0(%arg0: i32) -> (i32, i32) {
    %c0_i32 = arith.constant 0 : i32
    %c0_i32_0 = arith.constant 0 : i32
    return %arg0, %c0_i32 : i32, i32
  }
  func.func @transform_1(%arg0: i32) -> (i32, i32) {
    %c0_i32 = arith.constant 0 : i32
    %c0_i32_0 = arith.constant 0 : i32
    %c0_i32_1 = arith.constant 0 : i32
    return %c0_i32, %c0_i32_0 : i32, i32
  }
  func.func @transform_2(%arg0: i32) -> (i32, i32) {
    %c0_i32 = arith.constant 0 : i32
    %c0_i32_0 = arith.constant 0 : i32
    return %arg0, %c0_i32 : i32, i32
  }
}

</mosaic_0001>

<llo_original>
// kernel: tpu_custom_call.1
$region0: #{tpu_custom_call.1}
  #allocation0 [shape = 'u32[]', space=smem, size = 0x4, offset = 0x4, fixed_abs, tag = 'smem constant byte address 0x4 - core index']
  #allocation1 [shape = 'u32[144,128]{1,0:T(1,128)}', space=vmem, size = 0x12000, scoped, tag = 'internal scratch']
  %s0 = inlined_call_operand.vmem [shape: f32[256,3], index: 0, kind: input, shape index: {}]
  %s1 = inlined_call_operand.vmem [shape: f32[2,27], index: 1, kind: input, shape index: {}]
  %s2 = inlined_call_operand.vmem [shape: f32[256,27], index: 2, kind: output, shape index: {}]
  %s3 = sld [smem:[#allocation0]]
  $region18: #{tpu_custom_call.1} parent=0
    _
  %s5 = ssub.s32 1, %s3
  %s6 = scalar_select 0, %s5, %s3
  // Predicated region
  $region2: #{tpu_custom_call.1} parent=0 // pred_check
    _
  $region3: #{tpu_custom_call.1} parent=0 // pred_check_branch
    %8 = sbr.rel (0) target = $region5
  $region4: #{tpu_custom_call.1} parent=0 // pred_region
    _
  $region5: #{tpu_custom_call.1} parent=0 // pred_fallthru
    _
  // Predicated region
  $region6: #{tpu_custom_call.1} parent=0 // pred_check
    _
  $region7: #{tpu_custom_call.1} parent=0 // pred_check_branch
    %10 = sbr.rel (0) target = $region9
  $region8: #{tpu_custom_call.1} parent=0 // pred_region
    _
  $region9: #{tpu_custom_call.1} parent=0 // pred_fallthru
    _
  %v11 = vld [vmem:[%s0] sm:$0xff]
  %v12 = vld [vmem:[%s0 + $0x8] sm:$0xff]
  %v13 = vld [vmem:[%s0 + $0x10] sm:$0xff]
  %v14 = vld [vmem:[%s0 + $0x18] sm:$0xff]
  %v15 = vld [vmem:[%s0 + $0x20] sm:$0xff]
  %v16 = vld [vmem:[%s0 + $0x28] sm:$0xff]
  %v17 = vld [vmem:[%s0 + $0x30] sm:$0xff]
  %v18 = vld [vmem:[%s0 + $0x38] sm:$0xff]
  %v19 = vld [vmem:[%s0 + $0x40] sm:$0xff]
  %v20 = vld [vmem:[%s0 + $0x48] sm:$0xff]
  %v21 = vld [vmem:[%s0 + $0x50] sm:$0xff]
  %v22 = vld [vmem:[%s0 + $0x58] sm:$0xff]
  %v23 = vld [vmem:[%s0 + $0x60] sm:$0xff]
  %v24 = vld [vmem:[%s0 + $0x68] sm:$0xff]
  %v25 = vld [vmem:[%s0 + $0x70] sm:$0xff]
  %v26 = vld [vmem:[%s0 + $0x78] sm:$0xff]
  %v27 = vld [vmem:[%s0 + $0x80] sm:$0xff]
  %v28 = vld [vmem:[%s0 + $0x88] sm:$0xff]
  %v29 = vld [vmem:[%s0 + $0x90] sm:$0xff]
  %v30 = vld [vmem:[%s0 + $0x98] sm:$0xff]
  %v31 = vld [vmem:[%s0 + $0xa0] sm:$0xff]
  %v32 = vld [vmem:[%s0 + $0xa8] sm:$0xff]
  %v33 = vld [vmem:[%s0 + $0xb0] sm:$0xff]
  %v34 = vld [vmem:[%s0 + $0xb8] sm:$0xff]
  %v35 = vld [vmem:[%s0 + $0xc0] sm:$0xff]
  %v36 = vld [vmem:[%s0 + $0xc8] sm:$0xff]
  %v37 = vld [vmem:[%s0 + $0xd0] sm:$0xff]
  %v38 = vld [vmem:[%s0 + $0xd8] sm:$0xff]
  %v39 = vld [vmem:[%s0 + $0xe0] sm:$0xff]
  %v40 = vld [vmem:[%s0 + $0xe8] sm:$0xff]
  %v41 = vld [vmem:[%s0 + $0xf0] sm:$0xff]
  %v42 = vld [vmem:[%s0 + $0xf8] sm:$0xff]
  %v43 = vld [vmem:[%s1] sm:$0x3]
  %76 = vrot.lane.b32.xlu0 %v11, 3
  %v77 = vpop.permute.xlu0 %76
  %78 = vrot.lane.b32.xlu0 %v12, 3
  %v79 = vpop.permute.xlu0 %78
  %80 = vrot.lane.b32.xlu0 %v13, 3
  %v81 = vpop.permute.xlu0 %80
  %82 = vrot.lane.b32.xlu0 %v14, 3
  %v83 = vpop.permute.xlu0 %82
  %84 = vrot.lane.b32.xlu0 %v15, 3
  %v85 = vpop.permute.xlu0 %84
  %86 = vrot.lane.b32.xlu0 %v16, 3
  %v87 = vpop.permute.xlu0 %86
  %88 = vrot.lane.b32.xlu0 %v17, 3
  %v89 = vpop.permute.xlu0 %88
  %90 = vrot.lane.b32.xlu0 %v18, 3
  %v91 = vpop.permute.xlu0 %90
  %92 = vrot.lane.b32.xlu0 %v19, 3
  %v93 = vpop.permute.xlu0 %92
  %94 = vrot.lane.b32.xlu0 %v20, 3
  %v95 = vpop.permute.xlu0 %94
  %96 = vrot.lane.b32.xlu0 %v21, 3
  %v97 = vpop.permute.xlu0 %96
  %98 = vrot.lane.b32.xlu0 %v22, 3
  %v99 = vpop.permute.xlu0 %98
  %100 = vrot.lane.b32.xlu0 %v23, 3
  %v101 = vpop.permute.xlu0 %100
  %102 = vrot.lane.b32.xlu0 %v24, 3
  %v103 = vpop.permute.xlu0 %102
  %104 = vrot.lane.b32.xlu0 %v25, 3
  %v105 = vpop.permute.xlu0 %104
  %106 = vrot.lane.b32.xlu0 %v26, 3
  %v107 = vpop.permute.xlu0 %106
  %108 = vrot.lane.b32.xlu0 %v27, 3
  %v109 = vpop.permute.xlu0 %108
  %110 = vrot.lane.b32.xlu0 %v28, 3
  %v111 = vpop.permute.xlu0 %110
  %112 = vrot.lane.b32.xlu0 %v29, 3
  %v113 = vpop.permute.xlu0 %112
  %114 = vrot.lane.b32.xlu0 %v30, 3
  %v115 = vpop.permute.xlu0 %114
  %116 = vrot.lane.b32.xlu0 %v31, 3
  %v117 = vpop.permute.xlu0 %116
  %118 = vrot.lane.b32.xlu0 %v32, 3
  %v119 = vpop.permute.xlu0 %118
  %120 = vrot.lane.b32.xlu0 %v33, 3
  %v121 = vpop.permute.xlu0 %120
  %122 = vrot.lane.b32.xlu0 %v34, 3
  %v123 = vpop.permute.xlu0 %122
  %124 = vrot.lane.b32.xlu0 %v35, 3
  %v125 = vpop.permute.xlu0 %124
  %126 = vrot.lane.b32.xlu0 %v36, 3
  %v127 = vpop.permute.xlu0 %126
  %128 = vrot.lane.b32.xlu0 %v37, 3
  %v129 = vpop.permute.xlu0 %128
  %130 = vrot.lane.b32.xlu0 %v38, 3
  %v131 = vpop.permute.xlu0 %130
  %132 = vrot.lane.b32.xlu0 %v39, 3
  %v133 = vpop.permute.xlu0 %132
  %134 = vrot.lane.b32.xlu0 %v40, 3
  %v135 = vpop.permute.xlu0 %134
  %136 = vrot.lane.b32.xlu0 %v41, 3
  %v137 = vpop.permute.xlu0 %136
  %138 = vrot.lane.b32.xlu0 %v42, 3
  %v139 = vpop.permute.xlu0 %138
  %172 = vrot.lane.b32.xlu0 %v11, 6
  %v173 = vpop.permute.xlu0 %172
  %174 = vrot.lane.b32.xlu0 %v12, 6
  %v175 = vpop.permute.xlu0 %174
  %176 = vrot.lane.b32.xlu0 %v13, 6
  %v177 = vpop.permute.xlu0 %176
  %178 = vrot.lane.b32.xlu0 %v14, 6
  %v179 = vpop.permute.xlu0 %178
  %180 = vrot.lane.b32.xlu0 %v15, 6
  %v181 = vpop.permute.xlu0 %180
  %182 = vrot.lane.b32.xlu0 %v16, 6
  %v183 = vpop.permute.xlu0 %182
  %184 = vrot.lane.b32.xlu0 %v17, 6
  %v185 = vpop.permute.xlu0 %184
  %186 = vrot.lane.b32.xlu0 %v18, 6
  %v187 = vpop.permute.xlu0 %186
  %188 = vrot.lane.b32.xlu0 %v19, 6
  %v189 = vpop.permute.xlu0 %188
  %190 = vrot.lane.b32.xlu0 %v20, 6
  %v191 = vpop.permute.xlu0 %190
  %192 = vrot.lane.b32.xlu0 %v21, 6
  %v193 = vpop.permute.xlu0 %192
  %194 = vrot.lane.b32.xlu0 %v22, 6
  %v195 = vpop.permute.xlu0 %194
  %196 = vrot.lane.b32.xlu0 %v23, 6
  %v197 = vpop.permute.xlu0 %196
  %198 = vrot.lane.b32.xlu0 %v24, 6
  %v199 = vpop.permute.xlu0 %198
  %200 = vrot.lane.b32.xlu0 %v25, 6
  %v201 = vpop.permute.xlu0 %200
  %202 = vrot.lane.b32.xlu0 %v26, 6
  %v203 = vpop.permute.xlu0 %202
  %204 = vrot.lane.b32.xlu0 %v27, 6
  %v205 = vpop.permute.xlu0 %204
  %206 = vrot.lane.b32.xlu0 %v28, 6
  %v207 = vpop.permute.xlu0 %206
  %208 = vrot.lane.b32.xlu0 %v29, 6
  %v209 = vpop.permute.xlu0 %208
  %210 = vrot.lane.b32.xlu0 %v30, 6
  %v211 = vpop.permute.xlu0 %210
  %212 = vrot.lane.b32.xlu0 %v31, 6
  %v213 = vpop.permute.xlu0 %212
  %214 = vrot.lane.b32.xlu0 %v32, 6
  %v215 = vpop.permute.xlu0 %214
  %216 = vrot.lane.b32.xlu0 %v33, 6
  %v217 = vpop.permute.xlu0 %216
  %218 = vrot.lane.b32.xlu0 %v34, 6
  %v219 = vpop.permute.xlu0 %218
  %220 = vrot.lane.b32.xlu0 %v35, 6
  %v221 = vpop.permute.xlu0 %220
  %222 = vrot.lane.b32.xlu0 %v36, 6
  %v223 = vpop.permute.xlu0 %222
  %224 = vrot.lane.b32.xlu0 %v37, 6
  %v225 = vpop.permute.xlu0 %224
  %226 = vrot.lane.b32.xlu0 %v38, 6
  %v227 = vpop.permute.xlu0 %226
  %228 = vrot.lane.b32.xlu0 %v39, 6
  %v229 = vpop.permute.xlu0 %228
  %230 = vrot.lane.b32.xlu0 %v40, 6
  %v231 = vpop.permute.xlu0 %230
  %232 = vrot.lane.b32.xlu0 %v41, 6
  %v233 = vpop.permute.xlu0 %232
  %234 = vrot.lane.b32.xlu0 %v42, 6
  %v235 = vpop.permute.xlu0 %234
  %268 = vrot.lane.b32.xlu0 %v11, 9
  %v269 = vpop.permute.xlu0 %268
  %270 = vrot.lane.b32.xlu0 %v12, 9
  %v271 = vpop.permute.xlu0 %270
  %272 = vrot.lane.b32.xlu0 %v13, 9
  %v273 = vpop.permute.xlu0 %272
  %274 = vrot.lane.b32.xlu0 %v14, 9
  %v275 = vpop.permute.xlu0 %274
  %276 = vrot.lane.b32.xlu0 %v15, 9
  %v277 = vpop.permute.xlu0 %276
  %278 = vrot.lane.b32.xlu0 %v16, 9
  %v279 = vpop.permute.xlu0 %278
  %280 = vrot.lane.b32.xlu0 %v17, 9
  %v281 = vpop.permute.xlu0 %280
  %282 = vrot.lane.b32.xlu0 %v18, 9
  %v283 = vpop.permute.xlu0 %282
  %284 = vrot.lane.b32.xlu0 %v19, 9
  %v285 = vpop.permute.xlu0 %284
  %286 = vrot.lane.b32.xlu0 %v20, 9
  %v287 = vpop.permute.xlu0 %286
  %288 = vrot.lane.b32.xlu0 %v21, 9
  %v289 = vpop.permute.xlu0 %288
  %290 = vrot.lane.b32.xlu0 %v22, 9
  %v291 = vpop.permute.xlu0 %290
  %292 = vrot.lane.b32.xlu0 %v23, 9
  %v293 = vpop.permute.xlu0 %292
  %294 = vrot.lane.b32.xlu0 %v24, 9
  %v295 = vpop.permute.xlu0 %294
  %296 = vrot.lane.b32.xlu0 %v25, 9
  %v297 = vpop.permute.xlu0 %296
  %298 = vrot.lane.b32.xlu0 %v26, 9
  %v299 = vpop.permute.xlu0 %298
  %300 = vrot.lane.b32.xlu0 %v27, 9
  %v301 = vpop.permute.xlu0 %300
  %302 = vrot.lane.b32.xlu0 %v28, 9
  %v303 = vpop.permute.xlu0 %302
  %304 = vrot.lane.b32.xlu0 %v29, 9
  %v305 = vpop.permute.xlu0 %304
  %306 = vrot.lane.b32.xlu0 %v30, 9
  %v307 = vpop.permute.xlu0 %306
  %308 = vrot.lane.b32.xlu0 %v31, 9
  %v309 = vpop.permute.xlu0 %308
  %310 = vrot.lane.b32.xlu0 %v32, 9
  %v311 = vpop.permute.xlu0 %310
  %312 = vrot.lane.b32.xlu0 %v33, 9
  %v313 = vpop.permute.xlu0 %312
  %314 = vrot.lane.b32.xlu0 %v34, 9
  %v315 = vpop.permute.xlu0 %314
  %316 = vrot.lane.b32.xlu0 %v35, 9
  %v317 = vpop.permute.xlu0 %316
  %318 = vrot.lane.b32.xlu0 %v36, 9
  %v319 = vpop.permute.xlu0 %318
  %320 = vrot.lane.b32.xlu0 %v37, 9
  %v321 = vpop.permute.xlu0 %320
  %322 = vrot.lane.b32.xlu0 %v38, 9
  %v323 = vpop.permute.xlu0 %322
  %324 = vrot.lane.b32.xlu0 %v39, 9
  %v325 = vpop.permute.xlu0 %324
  %326 = vrot.lane.b32.xlu0 %v40, 9
  %v327 = vpop.permute.xlu0 %326
  %328 = vrot.lane.b32.xlu0 %v41, 9
  %v329 = vpop.permute.xlu0 %328
  %330 = vrot.lane.b32.xlu0 %v42, 9
  %v331 = vpop.permute.xlu0 %330
  %364 = vrot.lane.b32.xlu0 %v11, 12
  %v365 = vpop.permute.xlu0 %364
  %366 = vrot.lane.b32.xlu0 %v12, 12
  %v367 = vpop.permute.xlu0 %366
  %368 = vrot.lane.b32.xlu0 %v13, 12
  %v369 = vpop.permute.xlu0 %368
  %370 = vrot.lane.b32.xlu0 %v14, 12
  %v371 = vpop.permute.xlu0 %370
  %372 = vrot.lane.b32.xlu0 %v15, 12
  %v373 = vpop.permute.xlu0 %372
  %374 = vrot.lane.b32.xlu0 %v16, 12
  %v375 = vpop.permute.xlu0 %374
  %376 = vrot.lane.b32.xlu0 %v17, 12
  %v377 = vpop.permute.xlu0 %376
  %378 = vrot.lane.b32.xlu0 %v18, 12
  %v379 = vpop.permute.xlu0 %378
  %380 = vrot.lane.b32.xlu0 %v19, 12
  %v381 = vpop.permute.xlu0 %380
  %382 = vrot.lane.b32.xlu0 %v20, 12
  %v383 = vpop.permute.xlu0 %382
  %384 = vrot.lane.b32.xlu0 %v21, 12
  %v385 = vpop.permute.xlu0 %384
  %386 = vrot.lane.b32.xlu0 %v22, 12
  %v387 = vpop.permute.xlu0 %386
  %388 = vrot.lane.b32.xlu0 %v23, 12
  %v389 = vpop.permute.xlu0 %388
  %390 = vrot.lane.b32.xlu0 %v24, 12
  %v391 = vpop.permute.xlu0 %390
  %392 = vrot.lane.b32.xlu0 %v25, 12
  %v393 = vpop.permute.xlu0 %392
  %394 = vrot.lane.b32.xlu0 %v26, 12
  %v395 = vpop.permute.xlu0 %394
  %396 = vrot.lane.b32.xlu0 %v27, 12
  %v397 = vpop.permute.xlu0 %396
  %398 = vrot.lane.b32.xlu0 %v28, 12
  %v399 = vpop.permute.xlu0 %398
  %400 = vrot.lane.b32.xlu0 %v29, 12
  %v401 = vpop.permute.xlu0 %400
  %402 = vrot.lane.b32.xlu0 %v30, 12
  %v403 = vpop.permute.xlu0 %402
  %404 = vrot.lane.b32.xlu0 %v31, 12
  %v405 = vpop.permute.xlu0 %404
  %406 = vrot.lane.b32.xlu0 %v32, 12
  %v407 = vpop.permute.xlu0 %406
  %408 = vrot.lane.b32.xlu0 %v33, 12
  %v409 = vpop.permute.xlu0 %408
  %410 = vrot.lane.b32.xlu0 %v34, 12
  %v411 = vpop.permute.xlu0 %410
  %412 = vrot.lane.b32.xlu0 %v35, 12
  %v413 = vpop.permute.xlu0 %412
  %414 = vrot.lane.b32.xlu0 %v36, 12
  %v415 = vpop.permute.xlu0 %414
  %416 = vrot.lane.b32.xlu0 %v37, 12
  %v417 = vpop.permute.xlu0 %416
  %418 = vrot.lane.b32.xlu0 %v38, 12
  %v419 = vpop.permute.xlu0 %418
  %420 = vrot.lane.b32.xlu0 %v39, 12
  %v421 = vpop.permute.xlu0 %420
  %422 = vrot.lane.b32.xlu0 %v40, 12
  %v423 = vpop.permute.xlu0 %422
  %424 = vrot.lane.b32.xlu0 %v41, 12
  %v425 = vpop.permute.xlu0 %424
  %426 = vrot.lane.b32.xlu0 %v42, 12
  %v427 = vpop.permute.xlu0 %426
  %460 = vrot.lane.b32.xlu0 %v11, 15
  %v461 = vpop.permute.xlu0 %460
  %462 = vrot.lane.b32.xlu0 %v12, 15
  %v463 = vpop.permute.xlu0 %462
  %464 = vrot.lane.b32.xlu0 %v13, 15
  %v465 = vpop.permute.xlu0 %464
  %466 = vrot.lane.b32.xlu0 %v14, 15
  %v467 = vpop.permute.xlu0 %466
  %468 = vrot.lane.b32.xlu0 %v15, 15
  %v469 = vpop.permute.xlu0 %468
  %470 = vrot.lane.b32.xlu0 %v16, 15
  %v471 = vpop.permute.xlu0 %470
  %472 = vrot.lane.b32.xlu0 %v17, 15
  %v473 = vpop.permute.xlu0 %472
  %474 = vrot.lane.b32.xlu0 %v18, 15
  %v475 = vpop.permute.xlu0 %474
  %476 = vrot.lane.b32.xlu0 %v19, 15
  %v477 = vpop.permute.xlu0 %476
  %478 = vrot.lane.b32.xlu0 %v20, 15
  %v479 = vpop.permute.xlu0 %478
  %480 = vrot.lane.b32.xlu0 %v21, 15
  %v481 = vpop.permute.xlu0 %480
  %482 = vrot.lane.b32.xlu0 %v22, 15
  %v483 = vpop.permute.xlu0 %482
  %484 = vrot.lane.b32.xlu0 %v23, 15
  %v485 = vpop.permute.xlu0 %484
  %486 = vrot.lane.b32.xlu0 %v24, 15
  %v487 = vpop.permute.xlu0 %486
  %488 = vrot.lane.b32.xlu0 %v25, 15
  %v489 = vpop.permute.xlu0 %488
  %490 = vrot.lane.b32.xlu0 %v26, 15
  %v491 = vpop.permute.xlu0 %490
  %492 = vrot.lane.b32.xlu0 %v27, 15
  %v493 = vpop.permute.xlu0 %492
  %494 = vrot.lane.b32.xlu0 %v28, 15
  %v495 = vpop.permute.xlu0 %494
  %496 = vrot.lane.b32.xlu0 %v29, 15
  %v497 = vpop.permute.xlu0 %496
  %498 = vrot.lane.b32.xlu0 %v30, 15
  %v499 = vpop.permute.xlu0 %498
  %500 = vrot.lane.b32.xlu0 %v31, 15
  %v501 = vpop.permute.xlu0 %500
  %502 = vrot.lane.b32.xlu0 %v32, 15
  %v503 = vpop.permute.xlu0 %502
  %504 = vrot.lane.b32.xlu0 %v33, 15
  %v505 = vpop.permute.xlu0 %504
  %506 = vrot.lane.b32.xlu0 %v34, 15
  %v507 = vpop.permute.xlu0 %506
  %508 = vrot.lane.b32.xlu0 %v35, 15
  %v509 = vpop.permute.xlu0 %508
  %510 = vrot.lane.b32.xlu0 %v36, 15
  %v511 = vpop.permute.xlu0 %510
  %512 = vrot.lane.b32.xlu0 %v37, 15
  %v513 = vpop.permute.xlu0 %512
  %514 = vrot.lane.b32.xlu0 %v38, 15
  %v515 = vpop.permute.xlu0 %514
  %516 = vrot.lane.b32.xlu0 %v39, 15
  %v517 = vpop.permute.xlu0 %516
  %518 = vrot.lane.b32.xlu0 %v40, 15
  %v519 = vpop.permute.xlu0 %518
  %520 = vrot.lane.b32.xlu0 %v41, 15
  %v521 = vpop.permute.xlu0 %520
  %522 = vrot.lane.b32.xlu0 %v42, 15
  %v523 = vpop.permute.xlu0 %522
  %556 = vrot.lane.b32.xlu0 %v11, 18
  %v557 = vpop.permute.xlu0 %556
  %558 = vrot.lane.b32.xlu0 %v12, 18
  %v559 = vpop.permute.xlu0 %558
  %560 = vrot.lane.b32.xlu0 %v13, 18
  %v561 = vpop.permute.xlu0 %560
  %562 = vrot.lane.b32.xlu0 %v14, 18
  %v563 = vpop.permute.xlu0 %562
  %564 = vrot.lane.b32.xlu0 %v15, 18
  %v565 = vpop.permute.xlu0 %564
  %566 = vrot.lane.b32.xlu0 %v16, 18
  %v567 = vpop.permute.xlu0 %566
  %568 = vrot.lane.b32.xlu0 %v17, 18
  %v569 = vpop.permute.xlu0 %568
  %570 = vrot.lane.b32.xlu0 %v18, 18
  %v571 = vpop.permute.xlu0 %570
  %572 = vrot.lane.b32.xlu0 %v19, 18
  %v573 = vpop.permute.xlu0 %572
  %574 = vrot.lane.b32.xlu0 %v20, 18
  %v575 = vpop.permute.xlu0 %574
  %576 = vrot.lane.b32.xlu0 %v21, 18
  %v577 = vpop.permute.xlu0 %576
  %578 = vrot.lane.b32.xlu0 %v22, 18
  %v579 = vpop.permute.xlu0 %578
  %580 = vrot.lane.b32.xlu0 %v23, 18
  %v581 = vpop.permute.xlu0 %580
  %582 = vrot.lane.b32.xlu0 %v24, 18
  %v583 = vpop.permute.xlu0 %582
  %584 = vrot.lane.b32.xlu0 %v25, 18
  %v585 = vpop.permute.xlu0 %584
  %586 = vrot.lane.b32.xlu0 %v26, 18
  %v587 = vpop.permute.xlu0 %586
  %588 = vrot.lane.b32.xlu0 %v27, 18
  %v589 = vpop.permute.xlu0 %588
  %590 = vrot.lane.b32.xlu0 %v28, 18
  %v591 = vpop.permute.xlu0 %590
  %592 = vrot.lane.b32.xlu0 %v29, 18
  %v593 = vpop.permute.xlu0 %592
  %594 = vrot.lane.b32.xlu0 %v30, 18
  %v595 = vpop.permute.xlu0 %594
  %596 = vrot.lane.b32.xlu0 %v31, 18
  %v597 = vpop.permute.xlu0 %596
  %598 = vrot.lane.b32.xlu0 %v32, 18
  %v599 = vpop.permute.xlu0 %598
  %600 = vrot.lane.b32.xlu0 %v33, 18
  %v601 = vpop.permute.xlu0 %600
  %602 = vrot.lane.b32.xlu0 %v34, 18
  %v603 = vpop.permute.xlu0 %602
  %604 = vrot.lane.b32.xlu0 %v35, 18
  %v605 = vpop.permute.xlu0 %604
  %606 = vrot.lane.b32.xlu0 %v36, 18
  %v607 = vpop.permute.xlu0 %606
  %608 = vrot.lane.b32.xlu0 %v37, 18
  %v609 = vpop.permute.xlu0 %608
  %610 = vrot.lane.b32.xlu0 %v38, 18
  %v611 = vpop.permute.xlu0 %610
  %612 = vrot.lane.b32.xlu0 %v39, 18
  %v613 = vpop.permute.xlu0 %612
  %614 = vrot.lane.b32.xlu0 %v40, 18
  %v615 = vpop.permute.xlu0 %614
  %616 = vrot.lane.b32.xlu0 %v41, 18
  %v617 = vpop.permute.xlu0 %616
  %618 = vrot.lane.b32.xlu0 %v42, 18
  %v619 = vpop.permute.xlu0 %618
  %652 = vrot.lane.b32.xlu0 %v11, 21
  %v653 = vpop.permute.xlu0 %652
  %654 = vrot.lane.b32.xlu0 %v12, 21
  %v655 = vpop.permute.xlu0 %654
  %656 = vrot.lane.b32.xlu0 %v13, 21
  %v657 = vpop.permute.xlu0 %656
  %658 = vrot.lane.b32.xlu0 %v14, 21
  %v659 = vpop.permute.xlu0 %658
  %660 = vrot.lane.b32.xlu0 %v15, 21
  %v661 = vpop.permute.xlu0 %660
  %662 = vrot.lane.b32.xlu0 %v16, 21
  %v663 = vpop.permute.xlu0 %662
  %664 = vrot.lane.b32.xlu0 %v17, 21
  %v665 = vpop.permute.xlu0 %664
  %666 = vrot.lane.b32.xlu0 %v18, 21
  %v667 = vpop.permute.xlu0 %666
  %668 = vrot.lane.b32.xlu0 %v19, 21
  %v669 = vpop.permute.xlu0 %668
  %670 = vrot.lane.b32.xlu0 %v20, 21
  %v671 = vpop.permute.xlu0 %670
  %672 = vrot.lane.b32.xlu0 %v21, 21
  %v673 = vpop.permute.xlu0 %672
  %674 = vrot.lane.b32.xlu0 %v22, 21
  %v675 = vpop.permute.xlu0 %674
  %676 = vrot.lane.b32.xlu0 %v23, 21
  %v677 = vpop.permute.xlu0 %676
  %678 = vrot.lane.b32.xlu0 %v24, 21
  %v679 = vpop.permute.xlu0 %678
  %680 = vrot.lane.b32.xlu0 %v25, 21
  %v681 = vpop.permute.xlu0 %680
  %682 = vrot.lane.b32.xlu0 %v26, 21
  %v683 = vpop.permute.xlu0 %682
  %684 = vrot.lane.b32.xlu0 %v27, 21
  %v685 = vpop.permute.xlu0 %684
  %686 = vrot.lane.b32.xlu0 %v28, 21
  %v687 = vpop.permute.xlu0 %686
  %688 = vrot.lane.b32.xlu0 %v29, 21
  %v689 = vpop.permute.xlu0 %688
  %690 = vrot.lane.b32.xlu0 %v30, 21
  %v691 = vpop.permute.xlu0 %690
  %692 = vrot.lane.b32.xlu0 %v31, 21
  %v693 = vpop.permute.xlu0 %692
  %694 = vrot.lane.b32.xlu0 %v32, 21
  %v695 = vpop.permute.xlu0 %694
  %696 = vrot.lane.b32.xlu0 %v33, 21
  %v697 = vpop.permute.xlu0 %696
  %698 = vrot.lane.b32.xlu0 %v34, 21
  %v699 = vpop.permute.xlu0 %698
  %700 = vrot.lane.b32.xlu0 %v35, 21
  %v701 = vpop.permute.xlu0 %700
  %702 = vrot.lane.b32.xlu0 %v36, 21
  %v703 = vpop.permute.xlu0 %702
  %704 = vrot.lane.b32.xlu0 %v37, 21
  %v705 = vpop.permute.xlu0 %704
  %706 = vrot.lane.b32.xlu0 %v38, 21
  %v707 = vpop.permute.xlu0 %706
  %708 = vrot.lane.b32.xlu0 %v39, 21
  %v709 = vpop.permute.xlu0 %708
  %710 = vrot.lane.b32.xlu0 %v40, 21
  %v711 = vpop.permute.xlu0 %710
  %712 = vrot.lane.b32.xlu0 %v41, 21
  %v713 = vpop.permute.xlu0 %712
  %714 = vrot.lane.b32.xlu0 %v42, 21
  %v715 = vpop.permute.xlu0 %714
  %748 = vrot.lane.b32.xlu0 %v11, 24
  %v749 = vpop.permute.xlu0 %748
  %750 = vrot.lane.b32.xlu0 %v12, 24
  %v751 = vpop.permute.xlu0 %750
  %752 = vrot.lane.b32.xlu0 %v13, 24
  %v753 = vpop.permute.xlu0 %752
  %754 = vrot.lane.b32.xlu0 %v14, 24
  %v755 = vpop.permute.xlu0 %754
  %756 = vrot.lane.b32.xlu0 %v15, 24
  %v757 = vpop.permute.xlu0 %756
  %758 = vrot.lane.b32.xlu0 %v16, 24
  %v759 = vpop.permute.xlu0 %758
  %760 = vrot.lane.b32.xlu0 %v17, 24
  %v761 = vpop.permute.xlu0 %760
  %762 = vrot.lane.b32.xlu0 %v18, 24
  %v763 = vpop.permute.xlu0 %762
  %764 = vrot.lane.b32.xlu0 %v19, 24
  %v765 = vpop.permute.xlu0 %764
  %766 = vrot.lane.b32.xlu0 %v20, 24
  %v767 = vpop.permute.xlu0 %766
  %768 = vrot.lane.b32.xlu0 %v21, 24
  %v769 = vpop.permute.xlu0 %768
  %770 = vrot.lane.b32.xlu0 %v22, 24
  %v771 = vpop.permute.xlu0 %770
  %772 = vrot.lane.b32.xlu0 %v23, 24
  %v773 = vpop.permute.xlu0 %772
  %774 = vrot.lane.b32.xlu0 %v24, 24
  %v775 = vpop.permute.xlu0 %774
  %776 = vrot.lane.b32.xlu0 %v25, 24
  %v777 = vpop.permute.xlu0 %776
  %778 = vrot.lane.b32.xlu0 %v26, 24
  %v779 = vpop.permute.xlu0 %778
  %780 = vrot.lane.b32.xlu0 %v27, 24
  %v781 = vpop.permute.xlu0 %780
  %782 = vrot.lane.b32.xlu0 %v28, 24
  %v783 = vpop.permute.xlu0 %782
  %784 = vrot.lane.b32.xlu0 %v29, 24
  %v785 = vpop.permute.xlu0 %784
  %786 = vrot.lane.b32.xlu0 %v30, 24
  %v787 = vpop.permute.xlu0 %786
  %788 = vrot.lane.b32.xlu0 %v31, 24
  %v789 = vpop.permute.xlu0 %788
  %790 = vrot.lane.b32.xlu0 %v32, 24
  %v791 = vpop.permute.xlu0 %790
  %792 = vrot.lane.b32.xlu0 %v33, 24
  %v793 = vpop.permute.xlu0 %792
  %794 = vrot.lane.b32.xlu0 %v34, 24
  %v795 = vpop.permute.xlu0 %794
  %796 = vrot.lane.b32.xlu0 %v35, 24
  %v797 = vpop.permute.xlu0 %796
  %798 = vrot.lane.b32.xlu0 %v36, 24
  %v799 = vpop.permute.xlu0 %798
  %800 = vrot.lane.b32.xlu0 %v37, 24
  %v801 = vpop.permute.xlu0 %800
  %802 = vrot.lane.b32.xlu0 %v38, 24
  %v803 = vpop.permute.xlu0 %802
  %804 = vrot.lane.b32.xlu0 %v39, 24
  %v805 = vpop.permute.xlu0 %804
  %806 = vrot.lane.b32.xlu0 %v40, 24
  %v807 = vpop.permute.xlu0 %806
  %808 = vrot.lane.b32.xlu0 %v41, 24
  %v809 = vpop.permute.xlu0 %808
  %810 = vrot.lane.b32.xlu0 %v42, 24
  %v811 = vpop.permute.xlu0 %810
  %vm844 = vcmask 23552
  %v845 = vsel %vm844, %v11, %v77
  %v846 = vsel %vm844, %v12, %v79
  %v847 = vsel %vm844, %v13, %v81
  %v848 = vsel %vm844, %v14, %v83
  %v849 = vsel %vm844, %v15, %v85
  %v850 = vsel %vm844, %v16, %v87
  %v851 = vsel %vm844, %v17, %v89
  %v852 = vsel %vm844, %v18, %v91
  %v853 = vsel %vm844, %v19, %v93
  %v854 = vsel %vm844, %v20, %v95
  %v855 = vsel %vm844, %v21, %v97
  %v856 = vsel %vm844, %v22, %v99
  %v857 = vsel %vm844, %v23, %v101
  %v858 = vsel %vm844, %v24, %v103
  %v859 = vsel %vm844, %v25, %v105
  %v860 = vsel %vm844, %v26, %v107
  %v861 = vsel %vm844, %v27, %v109
  %v862 = vsel %vm844, %v28, %v111
  %v863 = vsel %vm844, %v29, %v113
  %v864 = vsel %vm844, %v30, %v115
  %v865 = vsel %vm844, %v31, %v117
  %v866 = vsel %vm844, %v32, %v119
  %v867 = vsel %vm844, %v33, %v121
  %v868 = vsel %vm844, %v34, %v123
  %v869 = vsel %vm844, %v35, %v125
  %v870 = vsel %vm844, %v36, %v127
  %v871 = vsel %vm844, %v37, %v129
  %v872 = vsel %vm844, %v38, %v131
  %v873 = vsel %vm844, %v39, %v133
  %v874 = vsel %vm844, %v40, %v135
  %v875 = vsel %vm844, %v41, %v137
  %v876 = vsel %vm844, %v42, %v139
  %vm877 = vcmask 48128
  %v878 = vsel %vm877, %v845, %v173
  %v879 = vsel %vm877, %v846, %v175
  %v880 = vsel %vm877, %v847, %v177
  %v881 = vsel %vm877, %v848, %v179
  %v882 = vsel %vm877, %v849, %v181
  %v883 = vsel %vm877, %v850, %v183
  %v884 = vsel %vm877, %v851, %v185
  %v885 = vsel %vm877, %v852, %v187
  %v886 = vsel %vm877, %v853, %v189
  %v887 = vsel %vm877, %v854, %v191
  %v888 = vsel %vm877, %v855, %v193
  %v889 = vsel %vm877, %v856, %v195
  %v890 = vsel %vm877, %v857, %v197
  %v891 = vsel %vm877, %v858, %v199
  %v892 = vsel %vm877, %v859, %v201
  %v893 = vsel %vm877, %v860, %v203
  %v894 = vsel %vm877, %v861, %v205
  %v895 = vsel %vm877, %v862, %v207
  %v896 = vsel %vm877, %v863, %v209
  %v897 = vsel %vm877, %v864, %v211
  %v898 = vsel %vm877, %v865, %v213
  %v899 = vsel %vm877, %v866, %v215
  %v900 = vsel %vm877, %v867, %v217
  %v901 = vsel %vm877, %v868, %v219
  %v902 = vsel %vm877, %v869, %v221
  %v903 = vsel %vm877, %v870, %v223
  %v904 = vsel %vm877, %v871, %v225
  %v905 = vsel %vm877, %v872, %v227
  %v906 = vsel %vm877, %v873, %v229
  %v907 = vsel %vm877, %v874, %v231
  %v908 = vsel %vm877, %v875, %v233
  %v909 = vsel %vm877, %v876, %v235
  %vm910 = vcmask 72704
  %v911 = vsel %vm910, %v878, %v269
  %v912 = vsel %vm910, %v879, %v271
  %v913 = vsel %vm910, %v880, %v273
  %v914 = vsel %vm910, %v881, %v275
  %v915 = vsel %vm910, %v882, %v277
  %v916 = vsel %vm910, %v883, %v279
  %v917 = vsel %vm910, %v884, %v281
  %v918 = vsel %vm910, %v885, %v283
  %v919 = vsel %vm910, %v886, %v285
  %v920 = vsel %vm910, %v887, %v287
  %v921 = vsel %vm910, %v888, %v289
  %v922 = vsel %vm910, %v889, %v291
  %v923 = vsel %vm910, %v890, %v293
  %v924 = vsel %vm910, %v891, %v295
  %v925 = vsel %vm910, %v892, %v297
  %v926 = vsel %vm910, %v893, %v299
  %v927 = vsel %vm910, %v894, %v301
  %v928 = vsel %vm910, %v895, %v303
  %v929 = vsel %vm910, %v896, %v305
  %v930 = vsel %vm910, %v897, %v307
  %v931 = vsel %vm910, %v898, %v309
  %v932 = vsel %vm910, %v899, %v311
  %v933 = vsel %vm910, %v900, %v313
  %v934 = vsel %vm910, %v901, %v315
  %v935 = vsel %vm910, %v902, %v317
  %v936 = vsel %vm910, %v903, %v319
  %v937 = vsel %vm910, %v904, %v321
  %v938 = vsel %vm910, %v905, %v323
  %v939 = vsel %vm910, %v906, %v325
  %v940 = vsel %vm910, %v907, %v327
  %v941 = vsel %vm910, %v908, %v329
  %v942 = vsel %vm910, %v909, %v331
  %vm943 = vcmask 97280
  %v944 = vsel %vm943, %v911, %v365
  %v945 = vsel %vm943, %v912, %v367
  %v946 = vsel %vm943, %v913, %v369
  %v947 = vsel %vm943, %v914, %v371
  %v948 = vsel %vm943, %v915, %v373
  %v949 = vsel %vm943, %v916, %v375
  %v950 = vsel %vm943, %v917, %v377
  %v951 = vsel %vm943, %v918, %v379
  %v952 = vsel %vm943, %v919, %v381
  %v953 = vsel %vm943, %v920, %v383
  %v954 = vsel %vm943, %v921, %v385
  %v955 = vsel %vm943, %v922, %v387
  %v956 = vsel %vm943, %v923, %v389
  %v957 = vsel %vm943, %v924, %v391
  %v958 = vsel %vm943, %v925, %v393
  %v959 = vsel %vm943, %v926, %v395
  %v960 = vsel %vm943, %v927, %v397
  %v961 = vsel %vm943, %v928, %v399
  %v962 = vsel %vm943, %v929, %v401
  %v963 = vsel %vm943, %v930, %v403
  %v964 = vsel %vm943, %v931, %v405
  %v965 = vsel %vm943, %v932, %v407
  %v966 = vsel %vm943, %v933, %v409
  %v967 = vsel %vm943, %v934, %v411
  %v968 = vsel %vm943, %v935, %v413
  %v969 = vsel %vm943, %v936, %v415
  %v970 = vsel %vm943, %v937, %v417
  %v971 = vsel %vm943, %v938, %v419
  %v972 = vsel %vm943, %v939, %v421
  %v973 = vsel %vm943, %v940, %v423
  %v974 = vsel %vm943, %v941, %v425
  %v975 = vsel %vm943, %v942, %v427
  %vm976 = vcmask 121856
  %v977 = vsel %vm976, %v944, %v461
  %v978 = vsel %vm976, %v945, %v463
  %v979 = vsel %vm976, %v946, %v465
  %v980 = vsel %vm976, %v947, %v467
  %v981 = vsel %vm976, %v948, %v469
  %v982 = vsel %vm976, %v949, %v471
  %v983 = vsel %vm976, %v950, %v473
  %v984 = vsel %vm976, %v951, %v475
  %v985 = vsel %vm976, %v952, %v477
  %v986 = vsel %vm976, %v953, %v479
  %v987 = vsel %vm976, %v954, %v481
  %v988 = vsel %vm976, %v955, %v483
  %v989 = vsel %vm976, %v956, %v485
  %v990 = vsel %vm976, %v957, %v487
  %v991 = vsel %vm976, %v958, %v489
  %v992 = vsel %vm976, %v959, %v491
  %v993 = vsel %vm976, %v960, %v493
  %v994 = vsel %vm976, %v961, %v495
  %v995 = vsel %vm976, %v962, %v497
  %v996 = vsel %vm976, %v963, %v499
  %v997 = vsel %vm976, %v964, %v501
  %v998 = vsel %vm976, %v965, %v503
  %v999 = vsel %vm976, %v966, %v505
  %v1000 = vsel %vm976, %v967, %v507
  %v1001 = vsel %vm976, %v968, %v509
  %v1002 = vsel %vm976, %v969, %v511
  %v1003 = vsel %vm976, %v970, %v513
  %v1004 = vsel %vm976, %v971, %v515
  %v1005 = vsel %vm976, %v972, %v517
  %v1006 = vsel %vm976, %v973, %v519
  %v1007 = vsel %vm976, %v974, %v521
  %v1008 = vsel %vm976, %v975, %v523
  %vm1009 = vcmask 146432
  %v1010 = vsel %vm1009, %v977, %v557
  %v1011 = vsel %vm1009, %v978, %v559
  %v1012 = vsel %vm1009, %v979, %v561
  %v1013 = vsel %vm1009, %v980, %v563
  %v1014 = vsel %vm1009, %v981, %v565
  %v1015 = vsel %vm1009, %v982, %v567
  %v1016 = vsel %vm1009, %v983, %v569
  %v1017 = vsel %vm1009, %v984, %v571
  %v1018 = vsel %vm1009, %v985, %v573
  %v1019 = vsel %vm1009, %v986, %v575
  %v1020 = vsel %vm1009, %v987, %v577
  %v1021 = vsel %vm1009, %v988, %v579
  %v1022 = vsel %vm1009, %v989, %v581
  %v1023 = vsel %vm1009, %v990, %v583
  %v1024 = vsel %vm1009, %v991, %v585
  %v1025 = vsel %vm1009, %v992, %v587
  %v1026 = vsel %vm1009, %v993, %v589
  %v1027 = vsel %vm1009, %v994, %v591
  %v1028 = vsel %vm1009, %v995, %v593
  %v1029 = vsel %vm1009, %v996, %v595
  %v1030 = vsel %vm1009, %v997, %v597
  %v1031 = vsel %vm1009, %v998, %v599
  %v1032 = vsel %vm1009, %v999, %v601
  %v1033 = vsel %vm1009, %v1000, %v603
  %v1034 = vsel %vm1009, %v1001, %v605
  %v1035 = vsel %vm1009, %v1002, %v607
  %v1036 = vsel %vm1009, %v1003, %v609
  %v1037 = vsel %vm1009, %v1004, %v611
  %v1038 = vsel %vm1009, %v1005, %v613
  %v1039 = vsel %vm1009, %v1006, %v615
  %v1040 = vsel %vm1009, %v1007, %v617
  %v1041 = vsel %vm1009, %v1008, %v619
  %vm1042 = vcmask 171008
  %v1043 = vsel %vm1042, %v1010, %v653
  %v1044 = vsel %vm1042, %v1011, %v655
  %v1045 = vsel %vm1042, %v1012, %v657
  %v1046 = vsel %vm1042, %v1013, %v659
  %v1047 = vsel %vm1042, %v1014, %v661
  %v1048 = vsel %vm1042, %v1015, %v663
  %v1049 = vsel %vm1042, %v1016, %v665
  %v1050 = vsel %vm1042, %v1017, %v667
  %v1051 = vsel %vm1042, %v1018, %v669
  %v1052 = vsel %vm1042, %v1019, %v671
  %v1053 = vsel %vm1042, %v1020, %v673
  %v1054 = vsel %vm1042, %v1021, %v675
  %v1055 = vsel %vm1042, %v1022, %v677
  %v1056 = vsel %vm1042, %v1023, %v679
  %v1057 = vsel %vm1042, %v1024, %v681
  %v1058 = vsel %vm1042, %v1025, %v683
  %v1059 = vsel %vm1042, %v1026, %v685
  %v1060 = vsel %vm1042, %v1027, %v687
  %v1061 = vsel %vm1042, %v1028, %v689
  %v1062 = vsel %vm1042, %v1029, %v691
  %v1063 = vsel %vm1042, %v1030, %v693
  %v1064 = vsel %vm1042, %v1031, %v695
  %v1065 = vsel %vm1042, %v1032, %v697
  %v1066 = vsel %vm1042, %v1033, %v699
  %v1067 = vsel %vm1042, %v1034, %v701
  %v1068 = vsel %vm1042, %v1035, %v703
  %v1069 = vsel %vm1042, %v1036, %v705
  %v1070 = vsel %vm1042, %v1037, %v707
  %v1071 = vsel %vm1042, %v1038, %v709
  %v1072 = vsel %vm1042, %v1039, %v711
  %v1073 = vsel %vm1042, %v1040, %v713
  %v1074 = vsel %vm1042, %v1041, %v715
  %vm1075 = vcmask 195584
  %v1076 = vsel %vm1075, %v1043, %v749
  %v1077 = vsel %vm1075, %v1044, %v751
  %v1078 = vsel %vm1075, %v1045, %v753
  %v1079 = vsel %vm1075, %v1046, %v755
  %v1080 = vsel %vm1075, %v1047, %v757
  %v1081 = vsel %vm1075, %v1048, %v759
  %v1082 = vsel %vm1075, %v1049, %v761
  %v1083 = vsel %vm1075, %v1050, %v763
  %v1084 = vsel %vm1075, %v1051, %v765
  %v1085 = vsel %vm1075, %v1052, %v767
  %v1086 = vsel %vm1075, %v1053, %v769
  %v1087 = vsel %vm1075, %v1054, %v771
  %v1088 = vsel %vm1075, %v1055, %v773
  %v1089 = vsel %vm1075, %v1056, %v775
  %v1090 = vsel %vm1075, %v1057, %v777
  %v1091 = vsel %vm1075, %v1058, %v779
  %v1092 = vsel %vm1075, %v1059, %v781
  %v1093 = vsel %vm1075, %v1060, %v783
  %v1094 = vsel %vm1075, %v1061, %v785
  %v1095 = vsel %vm1075, %v1062, %v787
  %v1096 = vsel %vm1075, %v1063, %v789
  %v1097 = vsel %vm1075, %v1064, %v791
  %v1098 = vsel %vm1075, %v1065, %v793
  %v1099 = vsel %vm1075, %v1066, %v795
  %v1100 = vsel %vm1075, %v1067, %v797
  %v1101 = vsel %vm1075, %v1068, %v799
  %v1102 = vsel %vm1075, %v1069, %v801
  %v1103 = vsel %vm1075, %v1070, %v803
  %v1104 = vsel %vm1075, %v1071, %v805
  %v1105 = vsel %vm1075, %v1072, %v807
  %v1106 = vsel %vm1075, %v1073, %v809
  %v1107 = vsel %vm1075, %v1074, %v811
  %v1108 = vlaneseq
  %v1109 = vshrl.u32 %v1108, 7
  %v1110 = vsub.s32 0, %v1109
  %v1111 = vrot.slane %v43, %v1110
  %v1112 = vmul.f32 %v1076, %v1111
  %v1113 = vmul.f32 %v1077, %v1111
  %v1114 = vmul.f32 %v1078, %v1111
  %v1115 = vmul.f32 %v1079, %v1111
  %v1116 = vmul.f32 %v1080, %v1111
  %v1117 = vmul.f32 %v1081, %v1111
  %v1118 = vmul.f32 %v1082, %v1111
  %v1119 = vmul.f32 %v1083, %v1111
  %v1120 = vmul.f32 %v1084, %v1111
  %v1121 = vmul.f32 %v1085, %v1111
  %v1122 = vmul.f32 %v1086, %v1111
  %v1123 = vmul.f32 %v1087, %v1111
  %v1124 = vmul.f32 %v1088, %v1111
  %v1125 = vmul.f32 %v1089, %v1111
  %v1126 = vmul.f32 %v1090, %v1111
  %v1127 = vmul.f32 %v1091, %v1111
  %v1128 = vmul.f32 %v1092, %v1111
  %v1129 = vmul.f32 %v1093, %v1111
  %v1130 = vmul.f32 %v1094, %v1111
  %v1131 = vmul.f32 %v1095, %v1111
  %v1132 = vmul.f32 %v1096, %v1111
  %v1133 = vmul.f32 %v1097, %v1111
  %v1134 = vmul.f32 %v1098, %v1111
  %v1135 = vmul.f32 %v1099, %v1111
  %v1136 = vmul.f32 %v1100, %v1111
  %v1137 = vmul.f32 %v1101, %v1111
  %v1138 = vmul.f32 %v1102, %v1111
  %v1139 = vmul.f32 %v1103, %v1111
  %v1140 = vmul.f32 %v1104, %v1111
  %v1141 = vmul.f32 %v1105, %v1111
  %v1142 = vmul.f32 %v1106, %v1111
  %v1143 = vmul.f32 %v1107, %v1111
  %v1144 = vlaneseq
  %v1145 = vshrl.u32 %v1144, 7
  %v1146 = vsub.s32 1, %v1145
  %v1147 = vrot.slane %v43, %v1146
  %v1148 = vadd.f32 %v1112, %v1147
  %v1149 = vadd.f32 %v1113, %v1147
  %v1150 = vadd.f32 %v1114, %v1147
  %v1151 = vadd.f32 %v1115, %v1147
  %v1152 = vadd.f32 %v1116, %v1147
  %v1153 = vadd.f32 %v1117, %v1147
  %v1154 = vadd.f32 %v1118, %v1147
  %v1155 = vadd.f32 %v1119, %v1147
  %v1156 = vadd.f32 %v1120, %v1147
  %v1157 = vadd.f32 %v1121, %v1147
  %v1158 = vadd.f32 %v1122, %v1147
  %v1159 = vadd.f32 %v1123, %v1147
  %v1160 = vadd.f32 %v1124, %v1147
  %v1161 = vadd.f32 %v1125, %v1147
  %v1162 = vadd.f32 %v1126, %v1147
  %v1163 = vadd.f32 %v1127, %v1147
  %v1164 = vadd.f32 %v1128, %v1147
  %v1165 = vadd.f32 %v1129, %v1147
  %v1166 = vadd.f32 %v1130, %v1147
  %v1167 = vadd.f32 %v1131, %v1147
  %v1168 = vadd.f32 %v1132, %v1147
  %v1169 = vadd.f32 %v1133, %v1147
  %v1170 = vadd.f32 %v1134, %v1147
  %v1171 = vadd.f32 %v1135, %v1147
  %v1172 = vadd.f32 %v1136, %v1147
  %v1173 = vadd.f32 %v1137, %v1147
  %v1174 = vadd.f32 %v1138, %v1147
  %v1175 = vadd.f32 %v1139, %v1147
  %v1176 = vadd.f32 %v1140, %v1147
  %v1177 = vadd.f32 %v1141, %v1147
  %v1178 = vadd.f32 %v1142, %v1147
  %v1179 = vadd.f32 %v1143, %v1147
  %v1180 = vand.u32 2147483647, %v1148
  %vm1181 = vcmp.le.f32.partialorder %v1180, 0.7853982
  %vm1182 = vcmp.lt.s32.totalorder %v1148, 0
  %v1183 = vand.u32 %v1148, 2139095040
  %v1184 = vshrl.u32 %v1183, 23
  %v1185 = vsub.s32 %v1184, 127
  %v1186 = vand.u32 2147483647, %v1148
  %v1187 = vand.u32 %v1186, 8388607
  %v1188 = vor.u32 %v1187, 8388608
  %v1189 = vsub.s32 0, %v1188
  %v1190 = vadd.s32 %v1185, 1
  %vm1191 = vcmp.gt.s32.totalorder %v1190, 0
  %v1192 = vsel %vm1191, %v1190, 0
  %v1193 = vshrl.u32 %v1192, 5
  %v1194 = vand.u32 %v1192, 31
  %v1195 = vsub.s32 32, %v1194
  %v1196 = vshrl.u32 683565275, %v1195
  %v1197 = vshll.u32 683565275, %v1194
  %v1198 = vshrl.u32 2475754826, %v1195
  %v1199 = vor.u32 %v1197, %v1198
  %v1200 = vshll.u32 2475754826, %v1194
  %v1201 = vshrl.u32 2131351028, %v1195
  %v1202 = vor.u32 %v1200, %v1201
  %v1203 = vshll.u32 2131351028, %v1194
  %v1204 = vshrl.u32 2102212464, %v1195
  %v1205 = vor.u32 %v1203, %v1204
  %v1206 = vshll.u32 2102212464, %v1194
  %v1207 = vshrl.u32 920167782, %v1195
  %v1208 = vor.u32 %v1206, %v1207
  %v1209 = vshll.u32 920167782, %v1194
  %v1210 = vshrl.u32 1326507024, %v1195
  %v1211 = vor.u32 %v1209, %v1210
  %vm1212 = vcmp.lt.s32.totalorder %v1193, 1
  %vm1213 = vcmp.lt.s32.totalorder %v1193, 2
  %vm1214 = vcmp.lt.s32.totalorder %v1193, 3
  %vm1215 = vcmp.lt.s32.totalorder %v1193, 4
  %v1216 = vsel %vm1212, %v1196, %v1199
  %v1217 = vsel %vm1215, %v1205, 2102212464
  %v1218 = vsel %vm1214, %v1202, %v1217
  %v1219 = vsel %vm1213, %v1216, %v1218
  %v1220 = vsel %vm1212, %v1199, %v1202
  %v1221 = vsel %vm1215, %v1208, 920167782
  %v1222 = vsel %vm1214, %v1205, %v1221
  %v1223 = vsel %vm1213, %v1220, %v1222
  %v1224 = vsel %vm1212, %v1202, %v1205
  %v1225 = vsel %vm1215, %v1211, 1326507024
  %v1226 = vsel %vm1214, %v1208, %v1225
  %v1227 = vsel %vm1213, %v1224, %v1226
  %v1228 = vshll.u32 %v1188, 8
  %v1229 = vmul.u32.u64.compose %v1228, %v1227
  %v1230 = vextract.low.u32 %v1229
  %v1231 = vextract.high.u32 %v1229
  %v1232 = vmul.u32.u64.compose %v1228, %v1223
  %v1233 = vextract.low.u32 %v1232
  %v1234 = vextract.high.u32 %v1232
  %v1235 = vmul.u32 %v1228, %v1219
  %v1236 = vadd.s32 %v1231, %v1233
  %vm1237 = vc.u32 %v1231, %v1233
  %v1238 = vadd.s32 %v1234, 1
  %v1239 = vsel %vm1237, %v1238, %v1234
  %v1240 = vadd.s32 %v1235, %v1239
  %v1241 = vadd.s32 %v1240, 536870912
  %v1242 = vshrl.u32 %v1241, 30
  %v1243 = vshll.u32 %v1242, 30
  %v1244 = vsub.s32 %v1240, %v1243
  %vm1245 = vcmp.lt.s32.totalorder %v1244, 0
  %v1246 = vsub.s32 0, %v1244
  %v1247 = vsel %vm1245, %v1246, %v1244
  %v1248 = vclz %v1247
  %v1249 = vsub.s32 %v1248, 2
  %vm1250 = vcmp.gt.s32.totalorder 0, %v1249
  %v1251 = vsel %vm1250, 0, %v1249
  %v1252 = vsub.s32 32, %v1251
  %v1253 = vshll.u32 %v1244, %v1251
  %v1254 = vshrl.u32 %v1236, %v1252
  %v1255 = vor.u32 %v1253, %v1254
  %v1256 = vsub.s32 4294967266, %v1251
  %v1257 = vadd.s32 %v1256, 127
  %v1258 = vshll.u32 %v1257, 23
  %v1259 = vor.u32 4788187, %v1258
  %v1260 = vand.u32 2147483647, %v1259
  %v1262 = vcvt.s32.f32 %v1255
  %v1263 = vmul.f32 %v1262, %v1260
  %v1264 = vxor.u32 %v1263, 2147483648
  %v1265 = vsel %vm1182, %v1264, %v1263
  %v1266 = vsub.s32 4, %v1242
  %v1267 = vsel %vm1182, %v1266, %v1242
  %v1268 = vsel %vm1181, %v1148, %v1265
  %v1269 = vsel %vm1181, 0, %v1267
  %v1270 = vcosq.f32.pop %v1268
  %v1271 = vsinq.f32.pop %v1268
  %vm1272 = vweird.f32 %v1148
  %v1273 = vadd.s32 %v1269, 3
  %v1274 = vand.u32 %v1273, 3
  %vm1275 = vcmp.lt.s32.totalorder %v1274, 2
  %vm1276 = vcmp.eq.s32.totalorder %v1274, 0
  %v1277 = vxor.u32 %v1271, 2147483648
  %v1278 = vsel %vm1276, %v1270, %v1277
  %vm1279 = vcmp.eq.s32.totalorder %v1274, 2
  %v1280 = vxor.u32 %v1270, 2147483648
  %v1281 = vsel %vm1279, %v1280, %v1271
  %v1282 = vsel %vm1275, %v1278, %v1281
  %v1283 = vsel %vm1272, nan, %v1282
  %v1284 = vand.u32 2147483647, %v1149
  %vm1285 = vcmp.le.f32.partialorder %v1284, 0.7853982
  %vm1286 = vcmp.lt.s32.totalorder %v1149, 0
  %v1287 = vand.u32 %v1149, 2139095040
  %v1288 = vshrl.u32 %v1287, 23
  %v1289 = vsub.s32 %v1288, 127
  %v1290 = vand.u32 2147483647, %v1149
  %v1291 = vand.u32 %v1290, 8388607
  %v1292 = vor.u32 %v1291, 8388608
  %v1293 = vsub.s32 0, %v1292
  %v1294 = vadd.s32 %v1289, 1
  %vm1295 = vcmp.gt.s32.totalorder %v1294, 0
  %v1296 = vsel %vm1295, %v1294, 0
  %v1297 = vshrl.u32 %v1296, 5
  %v1298 = vand.u32 %v1296, 31
  %v1299 = vsub.s32 32, %v1298
  %v1300 = vshrl.u32 683565275, %v1299
  %v1301 = vshll.u32 683565275, %v1298
  %v1302 = vshrl.u32 2475754826, %v1299
  %v1303 = vor.u32 %v1301, %v1302
  %v1304 = vshll.u32 2475754826, %v1298
  %v1305 = vshrl.u32 2131351028, %v1299
  %v1306 = vor.u32 %v1304, %v1305
  %v1307 = vshll.u32 2131351028, %v1298
  %v1308 = vshrl.u32 2102212464, %v1299
  %v1309 = vor.u32 %v1307, %v1308
  %v1310 = vshll.u32 2102212464, %v1298
  %v1311 = vshrl.u32 920167782, %v1299
  %v1312 = vor.u32 %v1310, %v1311
  %v1313 = vshll.u32 920167782, %v1298
  %v1314 = vshrl.u32 1326507024, %v1299
  %v1315 = vor.u32 %v1313, %v1314
  %vm1316 = vcmp.lt.s32.totalorder %v1297, 1
  %vm1317 = vcmp.lt.s32.totalorder %v1297, 2
  %vm1318 = vcmp.lt.s32.totalorder %v1297, 3
  %vm1319 = vcmp.lt.s32.totalorder %v1297, 4
  %v1320 = vsel %vm1316, %v1300, %v1303
  %v1321 = vsel %vm1319, %v1309, 2102212464
  %v1322 = vsel %vm1318, %v1306, %v1321
  %v1323 = vsel %vm1317, %v1320, %v1322
  %v1324 = vsel %vm1316, %v1303, %v1306
  %v1325 = vsel %vm1319, %v1312, 920167782
  %v1326 = vsel %vm1318, %v1309, %v1325
  %v1327 = vsel %vm1317, %v1324, %v1326
  %v1328 = vsel %vm1316, %v1306, %v1309
  %v1329 = vsel %vm1319, %v1315, 1326507024
  %v1330 = vsel %vm1318, %v1312, %v1329
  %v1331 = vsel %vm1317, %v1328, %v1330
  %v1332 = vshll.u32 %v1292, 8
  %v1333 = vmul.u32.u64.compose %v1332, %v1331
  %v1334 = vextract.low.u32 %v1333
  %v1335 = vextract.high.u32 %v1333
  %v1336 = vmul.u32.u64.compose %v1332, %v1327
  %v1337 = vextract.low.u32 %v1336
  %v1338 = vextract.high.u32 %v1336
  %v1339 = vmul.u32 %v1332, %v1323
  %v1340 = vadd.s32 %v1335, %v1337
  %vm1341 = vc.u32 %v1335, %v1337
  %v1342 = vadd.s32 %v1338, 1
  %v1343 = vsel %vm1341, %v1342, %v1338
  %v1344 = vadd.s32 %v1339, %v1343
  %v1345 = vadd.s32 %v1344, 536870912
  %v1346 = vshrl.u32 %v1345, 30
  %v1347 = vshll.u32 %v1346, 30
  %v1348 = vsub.s32 %v1344, %v1347
  %vm1349 = vcmp.lt.s32.totalorder %v1348, 0
  %v1350 = vsub.s32 0, %v1348
  %v1351 = vsel %vm1349, %v1350, %v1348
  %v1352 = vclz %v1351
  %v1353 = vsub.s32 %v1352, 2
  %vm1354 = vcmp.gt.s32.totalorder 0, %v1353
  %v1355 = vsel %vm1354, 0, %v1353
  %v1356 = vsub.s32 32, %v1355
  %v1357 = vshll.u32 %v1348, %v1355
  %v1358 = vshrl.u32 %v1340, %v1356
  %v1359 = vor.u32 %v1357, %v1358
  %v1360 = vsub.s32 4294967266, %v1355
  %v1361 = vadd.s32 %v1360, 127
  %v1362 = vshll.u32 %v1361, 23
  %v1363 = vor.u32 4788187, %v1362
  %v1364 = vand.u32 2147483647, %v1363
  %v1366 = vcvt.s32.f32 %v1359
  %v1367 = vmul.f32 %v1366, %v1364
  %v1368 = vxor.u32 %v1367, 2147483648
  %v1369 = vsel %vm1286, %v1368, %v1367
  %v1370 = vsub.s32 4, %v1346
  %v1371 = vsel %vm1286, %v1370, %v1346
  %v1372 = vsel %vm1285, %v1149, %v1369
  %v1373 = vsel %vm1285, 0, %v1371
  %v1374 = vcosq.f32.pop %v1372
  %v1375 = vsinq.f32.pop %v1372
  %vm1376 = vweird.f32 %v1149
  %v1377 = vadd.s32 %v1373, 3
  %v1378 = vand.u32 %v1377, 3
  %vm1379 = vcmp.lt.s32.totalorder %v1378, 2
  %vm1380 = vcmp.eq.s32.totalorder %v1378, 0
  %v1381 = vxor.u32 %v1375, 2147483648
  %v1382 = vsel %vm1380, %v1374, %v1381
  %vm1383 = vcmp.eq.s32.totalorder %v1378, 2
  %v1384 = vxor.u32 %v1374, 2147483648
  %v1385 = vsel %vm1383, %v1384, %v1375
  %v1386 = vsel %vm1379, %v1382, %v1385
  %v1387 = vsel %vm1376, nan, %v1386
  %v1388 = vand.u32 2147483647, %v1150
  %vm1389 = vcmp.le.f32.partialorder %v1388, 0.7853982
  %vm1390 = vcmp.lt.s32.totalorder %v1150, 0
  %v1391 = vand.u32 %v1150, 2139095040
  %v1392 = vshrl.u32 %v1391, 23
  %v1393 = vsub.s32 %v1392, 127
  %v1394 = vand.u32 2147483647, %v1150
  %v1395 = vand.u32 %v1394, 8388607
  %v1396 = vor.u32 %v1395, 8388608
  %v1397 = vsub.s32 0, %v1396
  %v1398 = vadd.s32 %v1393, 1
  %vm1399 = vcmp.gt.s32.totalorder %v1398, 0
  %v1400 = vsel %vm1399, %v1398, 0
  %v1401 = vshrl.u32 %v1400, 5
  %v1402 = vand.u32 %v1400, 31
  %v1403 = vsub.s32 32, %v1402
  %v1404 = vshrl.u32 683565275, %v1403
  %v1405 = vshll.u32 683565275, %v1402
  %v1406 = vshrl.u32 2475754826, %v1403
  %v1407 = vor.u32 %v1405, %v1406
  %v1408 = vshll.u32 2475754826, %v1402
  %v1409 = vshrl.u32 2131351028, %v1403
  %v1410 = vor.u32 %v1408, %v1409
  %v1411 = vshll.u32 2131351028, %v1402
  %v1412 = vshrl.u32 2102212464, %v1403
  %v1413 = vor.u32 %v1411, %v1412
  %v1414 = vshll.u32 2102212464, %v1402
  %v1415 = vshrl.u32 920167782, %v1403
  %v1416 = vor.u32 %v1414, %v1415
  %v1417 = vshll.u32 920167782, %v1402
  %v1418 = vshrl.u32 1326507024, %v1403
  %v1419 = vor.u32 %v1417, %v1418
  %vm1420 = vcmp.lt.s32.totalorder %v1401, 1
  %vm1421 = vcmp.lt.s32.totalorder %v1401, 2
  %vm1422 = vcmp.lt.s32.totalorder %v1401, 3
  %vm1423 = vcmp.lt.s32.totalorder %v1401, 4
  %v1424 = vsel %vm1420, %v1404, %v1407
  %v1425 = vsel %vm1423, %v1413, 2102212464
  %v1426 = vsel %vm1422, %v1410, %v1425
  %v1427 = vsel %vm1421, %v1424, %v1426
  %v1428 = vsel %vm1420, %v1407, %v1410
  %v1429 = vsel %vm1423, %v1416, 920167782
  %v1430 = vsel %vm1422, %v1413, %v1429
  %v1431 = vsel %vm1421, %v1428, %v1430
  %v1432 = vsel %vm1420, %v1410, %v1413
  %v1433 = vsel %vm1423, %v1419, 1326507024
  %v1434 = vsel %vm1422, %v1416, %v1433
  %v1435 = vsel %vm1421, %v1432, %v1434
  %v1436 = vshll.u32 %v1396, 8
  %v1437 = vmul.u32.u64.compose %v1436, %v1435
  %v1438 = vextract.low.u32 %v1437
  %v1439 = vextract.high.u32 %v1437
  %v1440 = vmul.u32.u64.compose %v1436, %v1431
  %v1441 = vextract.low.u32 %v1440
  %v1442 = vextract.high.u32 %v1440
  %v1443 = vmul.u32 %v1436, %v1427
  %v1444 = vadd.s32 %v1439, %v1441
  %vm1445 = vc.u32 %v1439, %v1441
  %v1446 = vadd.s32 %v1442, 1
  %v1447 = vsel %vm1445, %v1446, %v1442
  %v1448 = vadd.s32 %v1443, %v1447
  %v1449 = vadd.s32 %v1448, 536870912
  %v1450 = vshrl.u32 %v1449, 30
  %v1451 = vshll.u32 %v1450, 30
  %v1452 = vsub.s32 %v1448, %v1451
  %vm1453 = vcmp.lt.s32.totalorder %v1452, 0
  %v1454 = vsub.s32 0, %v1452
  %v1455 = vsel %vm1453, %v1454, %v1452
  %v1456 = vclz %v1455
  %v1457 = vsub.s32 %v1456, 2
  %vm1458 = vcmp.gt.s32.totalorder 0, %v1457
  %v1459 = vsel %vm1458, 0, %v1457
  %v1460 = vsub.s32 32, %v1459
  %v1461 = vshll.u32 %v1452, %v1459
  %v1462 = vshrl.u32 %v1444, %v1460
  %v1463 = vor.u32 %v1461, %v1462
  %v1464 = vsub.s32 4294967266, %v1459
  %v1465 = vadd.s32 %v1464, 127
  %v1466 = vshll.u32 %v1465, 23
  %v1467 = vor.u32 4788187, %v1466
  %v1468 = vand.u32 2147483647, %v1467
  %v1470 = vcvt.s32.f32 %v1463
  %v1471 = vmul.f32 %v1470, %v1468
  %v1472 = vxor.u32 %v1471, 2147483648
  %v1473 = vsel %vm1390, %v1472, %v1471
  %v1474 = vsub.s32 4, %v1450
  %v1475 = vsel %vm1390, %v1474, %v1450
  %v1476 = vsel %vm1389, %v1150, %v1473
  %v1477 = vsel %vm1389, 0, %v1475
  %v1478 = vcosq.f32.pop %v1476
  %v1479 = vsinq.f32.pop %v1476
  %vm1480 = vweird.f32 %v1150
  %v1481 = vadd.s32 %v1477, 3
  %v1482 = vand.u32 %v1481, 3
  %vm1483 = vcmp.lt.s32.totalorder %v1482, 2
  %vm1484 = vcmp.eq.s32.totalorder %v1482, 0
  %v1485 = vxor.u32 %v1479, 2147483648
  %v1486 = vsel %vm1484, %v1478, %v1485
  %vm1487 = vcmp.eq.s32.totalorder %v1482, 2
  %v1488 = vxor.u32 %v1478, 2147483648
  %v1489 = vsel %vm1487, %v1488, %v1479
  %v1490 = vsel %vm1483, %v1486, %v1489
  %v1491 = vsel %vm1480, nan, %v1490
  %v1492 = vand.u32 2147483647, %v1151
  %vm1493 = vcmp.le.f32.partialorder %v1492, 0.7853982
  %vm1494 = vcmp.lt.s32.totalorder %v1151, 0
  %v1495 = vand.u32 %v1151, 2139095040
  %v1496 = vshrl.u32 %v1495, 23
  %v1497 = vsub.s32 %v1496, 127
  %v1498 = vand.u32 2147483647, %v1151
  %v1499 = vand.u32 %v1498, 8388607
  %v1500 = vor.u32 %v1499, 8388608
  %v1501 = vsub.s32 0, %v1500
  %v1502 = vadd.s32 %v1497, 1
  %vm1503 = vcmp.gt.s32.totalorder %v1502, 0
  %v1504 = vsel %vm1503, %v1502, 0
  %v1505 = vshrl.u32 %v1504, 5
  %v1506 = vand.u32 %v1504, 31
  %v1507 = vsub.s32 32, %v1506
  %v1508 = vshrl.u32 683565275, %v1507
  %v1509 = vshll.u32 683565275, %v1506
  %v1510 = vshrl.u32 2475754826, %v1507
  %v1511 = vor.u32 %v1509, %v1510
  %v1512 = vshll.u32 2475754826, %v1506
  %v1513 = vshrl.u32 2131351028, %v1507
  %v1514 = vor.u32 %v1512, %v1513
  %v1515 = vshll.u32 2131351028, %v1506
  %v1516 = vshrl.u32 2102212464, %v1507
  %v1517 = vor.u32 %v1515, %v1516
  %v1518 = vshll.u32 2102212464, %v1506
  %v1519 = vshrl.u32 920167782, %v1507
  %v1520 = vor.u32 %v1518, %v1519
  %v1521 = vshll.u32 920167782, %v1506
  %v1522 = vshrl.u32 1326507024, %v1507
  %v1523 = vor.u32 %v1521, %v1522
  %vm1524 = vcmp.lt.s32.totalorder %v1505, 1
  %vm1525 = vcmp.lt.s32.totalorder %v1505, 2
  %vm1526 = vcmp.lt.s32.totalorder %v1505, 3
  %vm1527 = vcmp.lt.s32.totalorder %v1505, 4
  %v1528 = vsel %vm1524, %v1508, %v1511
  %v1529 = vsel %vm1527, %v1517, 2102212464
  %v1530 = vsel %vm1526, %v1514, %v1529
  %v1531 = vsel %vm1525, %v1528, %v1530
  %v1532 = vsel %vm1524, %v1511, %v1514
  %v1533 = vsel %vm1527, %v1520, 920167782
  %v1534 = vsel %vm1526, %v1517, %v1533
  %v1535 = vsel %vm1525, %v1532, %v1534
  %v1536 = vsel %vm1524, %v1514, %v1517
  %v1537 = vsel %vm1527, %v1523, 1326507024
  %v1538 = vsel %vm1526, %v1520, %v1537
  %v1539 = vsel %vm1525, %v1536, %v1538
  %v1540 = vshll.u32 %v1500, 8
  %v1541 = vmul.u32.u64.compose %v1540, %v1539
  %v1542 = vextract.low.u32 %v1541
  %v1543 = vextract.high.u32 %v1541
  %v1544 = vmul.u32.u64.compose %v1540, %v1535
  %v1545 = vextract.low.u32 %v1544
  %v1546 = vextract.high.u32 %v1544
  %v1547 = vmul.u32 %v1540, %v1531
  %v1548 = vadd.s32 %v1543, %v1545
  %vm1549 = vc.u32 %v1543, %v1545
  %v1550 = vadd.s32 %v1546, 1
  %v1551 = vsel %vm1549, %v1550, %v1546
  %v1552 = vadd.s32 %v1547, %v1551
  %v1553 = vadd.s32 %v1552, 536870912
  %v1554 = vshrl.u32 %v1553, 30
  %v1555 = vshll.u32 %v1554, 30
  %v1556 = vsub.s32 %v1552, %v1555
  %vm1557 = vcmp.lt.s32.totalorder %v1556, 0
  %v1558 = vsub.s32 0, %v1556
  %v1559 = vsel %vm1557, %v1558, %v1556
  %v1560 = vclz %v1559
  %v1561 = vsub.s32 %v1560, 2
  %vm1562 = vcmp.gt.s32.totalorder 0, %v1561
  %v1563 = vsel %vm1562, 0, %v1561
  %v1564 = vsub.s32 32, %v1563
  %v1565 = vshll.u32 %v1556, %v1563
  %v1566 = vshrl.u32 %v1548, %v1564
  %v1567 = vor.u32 %v1565, %v1566
  %v1568 = vsub.s32 4294967266, %v1563
  %v1569 = vadd.s32 %v1568, 127
  %v1570 = vshll.u32 %v1569, 23
  %v1571 = vor.u32 4788187, %v1570
  %v1572 = vand.u32 2147483647, %v1571
  %v1574 = vcvt.s32.f32 %v1567
  %v1575 = vmul.f32 %v1574, %v1572
  %v1576 = vxor.u32 %v1575, 2147483648
  %v1577 = vsel %vm1494, %v1576, %v1575
  %v1578 = vsub.s32 4, %v1554
  %v1579 = vsel %vm1494, %v1578, %v1554
  %v1580 = vsel %vm1493, %v1151, %v1577
  %v1581 = vsel %vm1493, 0, %v1579
  %v1582 = vcosq.f32.pop %v1580
  %v1583 = vsinq.f32.pop %v1580
  %vm1584 = vweird.f32 %v1151
  %v1585 = vadd.s32 %v1581, 3
  %v1586 = vand.u32 %v1585, 3
  %vm1587 = vcmp.lt.s32.totalorder %v1586, 2
  %vm1588 = vcmp.eq.s32.totalorder %v1586, 0
  %v1589 = vxor.u32 %v1583, 2147483648
  %v1590 = vsel %vm1588, %v1582, %v1589
  %vm1591 = vcmp.eq.s32.totalorder %v1586, 2
  %v1592 = vxor.u32 %v1582, 2147483648
  %v1593 = vsel %vm1591, %v1592, %v1583
  %v1594 = vsel %vm1587, %v1590, %v1593
  %v1595 = vsel %vm1584, nan, %v1594
  %v1596 = vand.u32 2147483647, %v1152
  %vm1597 = vcmp.le.f32.partialorder %v1596, 0.7853982
  %vm1598 = vcmp.lt.s32.totalorder %v1152, 0
  %v1599 = vand.u32 %v1152, 2139095040
  %v1600 = vshrl.u32 %v1599, 23
  %v1601 = vsub.s32 %v1600, 127
  %v1602 = vand.u32 2147483647, %v1152
  %v1603 = vand.u32 %v1602, 8388607
  %v1604 = vor.u32 %v1603, 8388608
  %v1605 = vsub.s32 0, %v1604
  %v1606 = vadd.s32 %v1601, 1
  %vm1607 = vcmp.gt.s32.totalorder %v1606, 0
  %v1608 = vsel %vm1607, %v1606, 0
  %v1609 = vshrl.u32 %v1608, 5
  %v1610 = vand.u32 %v1608, 31
  %v1611 = vsub.s32 32, %v1610
  %v1612 = vshrl.u32 683565275, %v1611
  %v1613 = vshll.u32 683565275, %v1610
  %v1614 = vshrl.u32 2475754826, %v1611
  %v1615 = vor.u32 %v1613, %v1614
  %v1616 = vshll.u32 2475754826, %v1610
  %v1617 = vshrl.u32 2131351028, %v1611
  %v1618 = vor.u32 %v1616, %v1617
  %v1619 = vshll.u32 2131351028, %v1610
  %v1620 = vshrl.u32 2102212464, %v1611
  %v1621 = vor.u32 %v1619, %v1620
  %v1622 = vshll.u32 2102212464, %v1610
  %v1623 = vshrl.u32 920167782, %v1611
  %v1624 = vor.u32 %v1622, %v1623
  %v1625 = vshll.u32 920167782, %v1610
  %v1626 = vshrl.u32 1326507024, %v1611
  %v1627 = vor.u32 %v1625, %v1626
  %vm1628 = vcmp.lt.s32.totalorder %v1609, 1
  %vm1629 = vcmp.lt.s32.totalorder %v1609, 2
  %vm1630 = vcmp.lt.s32.totalorder %v1609, 3
  %vm1631 = vcmp.lt.s32.totalorder %v1609, 4
  %v1632 = vsel %vm1628, %v1612, %v1615
  %v1633 = vsel %vm1631, %v1621, 2102212464
  %v1634 = vsel %vm1630, %v1618, %v1633
  %v1635 = vsel %vm1629, %v1632, %v1634
  %v1636 = vsel %vm1628, %v1615, %v1618
  %v1637 = vsel %vm1631, %v1624, 920167782
  %v1638 = vsel %vm1630, %v1621, %v1637
  %v1639 = vsel %vm1629, %v1636, %v1638
  %v1640 = vsel %vm1628, %v1618, %v1621
  %v1641 = vsel %vm1631, %v1627, 1326507024
  %v1642 = vsel %vm1630, %v1624, %v1641
  %v1643 = vsel %vm1629, %v1640, %v1642
  %v1644 = vshll.u32 %v1604, 8
  %v1645 = vmul.u32.u64.compose %v1644, %v1643
  %v1646 = vextract.low.u32 %v1645
  %v1647 = vextract.high.u32 %v1645
  %v1648 = vmul.u32.u64.compose %v1644, %v1639
  %v1649 = vextract.low.u32 %v1648
  %v1650 = vextract.high.u32 %v1648
  %v1651 = vmul.u32 %v1644, %v1635
  %v1652 = vadd.s32 %v1647, %v1649
  %vm1653 = vc.u32 %v1647, %v1649
  %v1654 = vadd.s32 %v1650, 1
  %v1655 = vsel %vm1653, %v1654, %v1650
  %v1656 = vadd.s32 %v1651, %v1655
  %v1657 = vadd.s32 %v1656, 536870912
  %v1658 = vshrl.u32 %v1657, 30
  %v1659 = vshll.u32 %v1658, 30
  %v1660 = vsub.s32 %v1656, %v1659
  %vm1661 = vcmp.lt.s32.totalorder %v1660, 0
  %v1662 = vsub.s32 0, %v1660
  %v1663 = vsel %vm1661, %v1662, %v1660
  %v1664 = vclz %v1663
  %v1665 = vsub.s32 %v1664, 2
  %vm1666 = vcmp.gt.s32.totalorder 0, %v1665
  %v1667 = vsel %vm1666, 0, %v1665
  %v1668 = vsub.s32 32, %v1667
  %v1669 = vshll.u32 %v1660, %v1667
  %v1670 = vshrl.u32 %v1652, %v1668
  %v1671 = vor.u32 %v1669, %v1670
  %v1672 = vsub.s32 4294967266, %v1667
  %v1673 = vadd.s32 %v1672, 127
  %v1674 = vshll.u32 %v1673, 23
  %v1675 = vor.u32 4788187, %v1674
  %v1676 = vand.u32 2147483647, %v1675
  %v1678 = vcvt.s32.f32 %v1671
  %v1679 = vmul.f32 %v1678, %v1676
  %v1680 = vxor.u32 %v1679, 2147483648
  %v1681 = vsel %vm1598, %v1680, %v1679
  %v1682 = vsub.s32 4, %v1658
  %v1683 = vsel %vm1598, %v1682, %v1658
  %v1684 = vsel %vm1597, %v1152, %v1681
  %v1685 = vsel %vm1597, 0, %v1683
  %v1686 = vcosq.f32.pop %v1684
  %v1687 = vsinq.f32.pop %v1684
  %vm1688 = vweird.f32 %v1152
  %v1689 = vadd.s32 %v1685, 3
  %v1690 = vand.u32 %v1689, 3
  %vm1691 = vcmp.lt.s32.totalorder %v1690, 2
  %vm1692 = vcmp.eq.s32.totalorder %v1690, 0
  %v1693 = vxor.u32 %v1687, 2147483648
  %v1694 = vsel %vm1692, %v1686, %v1693
  %vm1695 = vcmp.eq.s32.totalorder %v1690, 2
  %v1696 = vxor.u32 %v1686, 2147483648
  %v1697 = vsel %vm1695, %v1696, %v1687
  %v1698 = vsel %vm1691, %v1694, %v1697
  %v1699 = vsel %vm1688, nan, %v1698
  %v1700 = vand.u32 2147483647, %v1153
  %vm1701 = vcmp.le.f32.partialorder %v1700, 0.7853982
  %vm1702 = vcmp.lt.s32.totalorder %v1153, 0
  %v1703 = vand.u32 %v1153, 2139095040
  %v1704 = vshrl.u32 %v1703, 23
  %v1705 = vsub.s32 %v1704, 127
  %v1706 = vand.u32 2147483647, %v1153
  %v1707 = vand.u32 %v1706, 8388607
  %v1708 = vor.u32 %v1707, 8388608
  %v1709 = vsub.s32 0, %v1708
  %v1710 = vadd.s32 %v1705, 1
  %vm1711 = vcmp.gt.s32.totalorder %v1710, 0
  %v1712 = vsel %vm1711, %v1710, 0
  %v1713 = vshrl.u32 %v1712, 5
  %v1714 = vand.u32 %v1712, 31
  %v1715 = vsub.s32 32, %v1714
  %v1716 = vshrl.u32 683565275, %v1715
  %v1717 = vshll.u32 683565275, %v1714
  %v1718 = vshrl.u32 2475754826, %v1715
  %v1719 = vor.u32 %v1717, %v1718
  %v1720 = vshll.u32 2475754826, %v1714
  %v1721 = vshrl.u32 2131351028, %v1715
  %v1722 = vor.u32 %v1720, %v1721
  %v1723 = vshll.u32 2131351028, %v1714
  %v1724 = vshrl.u32 2102212464, %v1715
  %v1725 = vor.u32 %v1723, %v1724
  %v1726 = vshll.u32 2102212464, %v1714
  %v1727 = vshrl.u32 920167782, %v1715
  %v1728 = vor.u32 %v1726, %v1727
  %v1729 = vshll.u32 920167782, %v1714
  %v1730 = vshrl.u32 1326507024, %v1715
  %v1731 = vor.u32 %v1729, %v1730
  %vm1732 = vcmp.lt.s32.totalorder %v1713, 1
  %vm1733 = vcmp.lt.s32.totalorder %v1713, 2
  %vm1734 = vcmp.lt.s32.totalorder %v1713, 3
  %vm1735 = vcmp.lt.s32.totalorder %v1713, 4
  %v1736 = vsel %vm1732, %v1716, %v1719
  %v1737 = vsel %vm1735, %v1725, 2102212464
  %v1738 = vsel %vm1734, %v1722, %v1737
  %v1739 = vsel %vm1733, %v1736, %v1738
  %v1740 = vsel %vm1732, %v1719, %v1722
  %v1741 = vsel %vm1735, %v1728, 920167782
  %v1742 = vsel %vm1734, %v1725, %v1741
  %v1743 = vsel %vm1733, %v1740, %v1742
  %v1744 = vsel %vm1732, %v1722, %v1725
  %v1745 = vsel %vm1735, %v1731, 1326507024
  %v1746 = vsel %vm1734, %v1728, %v1745
  %v1747 = vsel %vm1733, %v1744, %v1746
  %v1748 = vshll.u32 %v1708, 8
  %v1749 = vmul.u32.u64.compose %v1748, %v1747
  %v1750 = vextract.low.u32 %v1749
  %v1751 = vextract.high.u32 %v1749
  %v1752 = vmul.u32.u64.compose %v1748, %v1743
  %v1753 = vextract.low.u32 %v1752
  %v1754 = vextract.high.u32 %v1752
  %v1755 = vmul.u32 %v1748, %v1739
  %v1756 = vadd.s32 %v1751, %v1753
  %vm1757 = vc.u32 %v1751, %v1753
  %v1758 = vadd.s32 %v1754, 1
  %v1759 = vsel %vm1757, %v1758, %v1754
  %v1760 = vadd.s32 %v1755, %v1759
  %v1761 = vadd.s32 %v1760, 536870912
  %v1762 = vshrl.u32 %v1761, 30
  %v1763 = vshll.u32 %v1762, 30
  %v1764 = vsub.s32 %v1760, %v1763
  %vm1765 = vcmp.lt.s32.totalorder %v1764, 0
  %v1766 = vsub.s32 0, %v1764
  %v1767 = vsel %vm1765, %v1766, %v1764
  %v1768 = vclz %v1767
  %v1769 = vsub.s32 %v1768, 2
  %vm1770 = vcmp.gt.s32.totalorder 0, %v1769
  %v1771 = vsel %vm1770, 0, %v1769
  %v1772 = vsub.s32 32, %v1771
  %v1773 = vshll.u32 %v1764, %v1771
  %v1774 = vshrl.u32 %v1756, %v1772
  %v1775 = vor.u32 %v1773, %v1774
  %v1776 = vsub.s32 4294967266, %v1771
  %v1777 = vadd.s32 %v1776, 127
  %v1778 = vshll.u32 %v1777, 23
  %v1779 = vor.u32 4788187, %v1778
  %v1780 = vand.u32 2147483647, %v1779
  %v1782 = vcvt.s32.f32 %v1775
  %v1783 = vmul.f32 %v1782, %v1780
  %v1784 = vxor.u32 %v1783, 2147483648
  %v1785 = vsel %vm1702, %v1784, %v1783
  %v1786 = vsub.s32 4, %v1762
  %v1787 = vsel %vm1702, %v1786, %v1762
  %v1788 = vsel %vm1701, %v1153, %v1785
  %v1789 = vsel %vm1701, 0, %v1787
  %v1790 = vcosq.f32.pop %v1788
  %v1791 = vsinq.f32.pop %v1788
  %vm1792 = vweird.f32 %v1153
  %v1793 = vadd.s32 %v1789, 3
  %v1794 = vand.u32 %v1793, 3
  %vm1795 = vcmp.lt.s32.totalorder %v1794, 2
  %vm1796 = vcmp.eq.s32.totalorder %v1794, 0
  %v1797 = vxor.u32 %v1791, 2147483648
  %v1798 = vsel %vm1796, %v1790, %v1797
  %vm1799 = vcmp.eq.s32.totalorder %v1794, 2
  %v1800 = vxor.u32 %v1790, 2147483648
  %v1801 = vsel %vm1799, %v1800, %v1791
  %v1802 = vsel %vm1795, %v1798, %v1801
  %v1803 = vsel %vm1792, nan, %v1802
  %v1804 = vand.u32 2147483647, %v1154
  %vm1805 = vcmp.le.f32.partialorder %v1804, 0.7853982
  %vm1806 = vcmp.lt.s32.totalorder %v1154, 0
  %v1807 = vand.u32 %v1154, 2139095040
  %v1808 = vshrl.u32 %v1807, 23
  %v1809 = vsub.s32 %v1808, 127
  %v1810 = vand.u32 2147483647, %v1154
  %v1811 = vand.u32 %v1810, 8388607
  %v1812 = vor.u32 %v1811, 8388608
  %v1813 = vsub.s32 0, %v1812
  %v1814 = vadd.s32 %v1809, 1
  %vm1815 = vcmp.gt.s32.totalorder %v1814, 0
  %v1816 = vsel %vm1815, %v1814, 0
  %v1817 = vshrl.u32 %v1816, 5
  %v1818 = vand.u32 %v1816, 31
  %v1819 = vsub.s32 32, %v1818
  %v1820 = vshrl.u32 683565275, %v1819
  %v1821 = vshll.u32 683565275, %v1818
  %v1822 = vshrl.u32 2475754826, %v1819
  %v1823 = vor.u32 %v1821, %v1822
  %v1824 = vshll.u32 2475754826, %v1818
  %v1825 = vshrl.u32 2131351028, %v1819
  %v1826 = vor.u32 %v1824, %v1825
  %v1827 = vshll.u32 2131351028, %v1818
  %v1828 = vshrl.u32 2102212464, %v1819
  %v1829 = vor.u32 %v1827, %v1828
  %v1830 = vshll.u32 2102212464, %v1818
  %v1831 = vshrl.u32 920167782, %v1819
  %v1832 = vor.u32 %v1830, %v1831
  %v1833 = vshll.u32 920167782, %v1818
  %v1834 = vshrl.u32 1326507024, %v1819
  %v1835 = vor.u32 %v1833, %v1834
  %vm1836 = vcmp.lt.s32.totalorder %v1817, 1
  %vm1837 = vcmp.lt.s32.totalorder %v1817, 2
  %vm1838 = vcmp.lt.s32.totalorder %v1817, 3
  %vm1839 = vcmp.lt.s32.totalorder %v1817, 4
  %v1840 = vsel %vm1836, %v1820, %v1823
  %v1841 = vsel %vm1839, %v1829, 2102212464
  %v1842 = vsel %vm1838, %v1826, %v1841
  %v1843 = vsel %vm1837, %v1840, %v1842
  %v1844 = vsel %vm1836, %v1823, %v1826
  %v1845 = vsel %vm1839, %v1832, 920167782
  %v1846 = vsel %vm1838, %v1829, %v1845
  %v1847 = vsel %vm1837, %v1844, %v1846
  %v1848 = vsel %vm1836, %v1826, %v1829
  %v1849 = vsel %vm1839, %v1835, 1326507024
  %v1850 = vsel %vm1838, %v1832, %v1849
  %v1851 = vsel %vm1837, %v1848, %v1850
  %v1852 = vshll.u32 %v1812, 8
  %v1853 = vmul.u32.u64.compose %v1852, %v1851
  %v1854 = vextract.low.u32 %v1853
  %v1855 = vextract.high.u32 %v1853
  %v1856 = vmul.u32.u64.compose %v1852, %v1847
  %v1857 = vextract.low.u32 %v1856
  %v1858 = vextract.high.u32 %v1856
  %v1859 = vmul.u32 %v1852, %v1843
  %v1860 = vadd.s32 %v1855, %v1857
  %vm1861 = vc.u32 %v1855, %v1857
  %v1862 = vadd.s32 %v1858, 1
  %v1863 = vsel %vm1861, %v1862, %v1858
  %v1864 = vadd.s32 %v1859, %v1863
  %v1865 = vadd.s32 %v1864, 536870912
  %v1866 = vshrl.u32 %v1865, 30
  %v1867 = vshll.u32 %v1866, 30
  %v1868 = vsub.s32 %v1864, %v1867
  %vm1869 = vcmp.lt.s32.totalorder %v1868, 0
  %v1870 = vsub.s32 0, %v1868
  %v1871 = vsel %vm1869, %v1870, %v1868
  %v1872 = vclz %v1871
  %v1873 = vsub.s32 %v1872, 2
  %vm1874 = vcmp.gt.s32.totalorder 0, %v1873
  %v1875 = vsel %vm1874, 0, %v1873
  %v1876 = vsub.s32 32, %v1875
  %v1877 = vshll.u32 %v1868, %v1875
  %v1878 = vshrl.u32 %v1860, %v1876
  %v1879 = vor.u32 %v1877, %v1878
  %v1880 = vsub.s32 4294967266, %v1875
  %v1881 = vadd.s32 %v1880, 127
  %v1882 = vshll.u32 %v1881, 23
  %v1883 = vor.u32 4788187, %v1882
  %v1884 = vand.u32 2147483647, %v1883
  %v1886 = vcvt.s32.f32 %v1879
  %v1887 = vmul.f32 %v1886, %v1884
  %v1888 = vxor.u32 %v1887, 2147483648
  %v1889 = vsel %vm1806, %v1888, %v1887
  %v1890 = vsub.s32 4, %v1866
  %v1891 = vsel %vm1806, %v1890, %v1866
  %v1892 = vsel %vm1805, %v1154, %v1889
  %v1893 = vsel %vm1805, 0, %v1891
  %v1894 = vcosq.f32.pop %v1892
  %v1895 = vsinq.f32.pop %v1892
  %vm1896 = vweird.f32 %v1154
  %v1897 = vadd.s32 %v1893, 3
  %v1898 = vand.u32 %v1897, 3
  %vm1899 = vcmp.lt.s32.totalorder %v1898, 2
  %vm1900 = vcmp.eq.s32.totalorder %v1898, 0
  %v1901 = vxor.u32 %v1895, 2147483648
  %v1902 = vsel %vm1900, %v1894, %v1901
  %vm1903 = vcmp.eq.s32.totalorder %v1898, 2
  %v1904 = vxor.u32 %v1894, 2147483648
  %v1905 = vsel %vm1903, %v1904, %v1895
  %v1906 = vsel %vm1899, %v1902, %v1905
  %v1907 = vsel %vm1896, nan, %v1906
  %v1908 = vand.u32 2147483647, %v1155
  %vm1909 = vcmp.le.f32.partialorder %v1908, 0.7853982
  %vm1910 = vcmp.lt.s32.totalorder %v1155, 0
  %v1911 = vand.u32 %v1155, 2139095040
  %v1912 = vshrl.u32 %v1911, 23
  %v1913 = vsub.s32 %v1912, 127
  %v1914 = vand.u32 2147483647, %v1155
  %v1915 = vand.u32 %v1914, 8388607
  %v1916 = vor.u32 %v1915, 8388608
  %v1917 = vsub.s32 0, %v1916
  %v1918 = vadd.s32 %v1913, 1
  %vm1919 = vcmp.gt.s32.totalorder %v1918, 0
  %v1920 = vsel %vm1919, %v1918, 0
  %v1921 = vshrl.u32 %v1920, 5
  %v1922 = vand.u32 %v1920, 31
  %v1923 = vsub.s32 32, %v1922
  %v1924 = vshrl.u32 683565275, %v1923
  %v1925 = vshll.u32 683565275, %v1922
  %v1926 = vshrl.u32 2475754826, %v1923
  %v1927 = vor.u32 %v1925, %v1926
  %v1928 = vshll.u32 2475754826, %v1922
  %v1929 = vshrl.u32 2131351028, %v1923
  %v1930 = vor.u32 %v1928, %v1929
  %v1931 = vshll.u32 2131351028, %v1922
  %v1932 = vshrl.u32 2102212464, %v1923
  %v1933 = vor.u32 %v1931, %v1932
  %v1934 = vshll.u32 2102212464, %v1922
  %v1935 = vshrl.u32 920167782, %v1923
  %v1936 = vor.u32 %v1934, %v1935
  %v1937 = vshll.u32 920167782, %v1922
  %v1938 = vshrl.u32 1326507024, %v1923
  %v1939 = vor.u32 %v1937, %v1938
  %vm1940 = vcmp.lt.s32.totalorder %v1921, 1
  %vm1941 = vcmp.lt.s32.totalorder %v1921, 2
  %vm1942 = vcmp.lt.s32.totalorder %v1921, 3
  %vm1943 = vcmp.lt.s32.totalorder %v1921, 4
  %v1944 = vsel %vm1940, %v1924, %v1927
  %v1945 = vsel %vm1943, %v1933, 2102212464
  %v1946 = vsel %vm1942, %v1930, %v1945
  %v1947 = vsel %vm1941, %v1944, %v1946
  %v1948 = vsel %vm1940, %v1927, %v1930
  %v1949 = vsel %vm1943, %v1936, 920167782
  %v1950 = vsel %vm1942, %v1933, %v1949
  %v1951 = vsel %vm1941, %v1948, %v1950
  %v1952 = vsel %vm1940, %v1930, %v1933
  %v1953 = vsel %vm1943, %v1939, 1326507024
  %v1954 = vsel %vm1942, %v1936, %v1953
  %v1955 = vsel %vm1941, %v1952, %v1954
  %v1956 = vshll.u32 %v1916, 8
  %v1957 = vmul.u32.u64.compose %v1956, %v1955
  %v1958 = vextract.low.u32 %v1957
  %v1959 = vextract.high.u32 %v1957
  %v1960 = vmul.u32.u64.compose %v1956, %v1951
  %v1961 = vextract.low.u32 %v1960
  %v1962 = vextract.high.u32 %v1960
  %v1963 = vmul.u32 %v1956, %v1947
  %v1964 = vadd.s32 %v1959, %v1961
  %vm1965 = vc.u32 %v1959, %v1961
  %v1966 = vadd.s32 %v1962, 1
  %v1967 = vsel %vm1965, %v1966, %v1962
  %v1968 = vadd.s32 %v1963, %v1967
  %v1969 = vadd.s32 %v1968, 536870912
  %v1970 = vshrl.u32 %v1969, 30
  %v1971 = vshll.u32 %v1970, 30
  %v1972 = vsub.s32 %v1968, %v1971
  %vm1973 = vcmp.lt.s32.totalorder %v1972, 0
  %v1974 = vsub.s32 0, %v1972
  %v1975 = vsel %vm1973, %v1974, %v1972
  %v1976 = vclz %v1975
  %v1977 = vsub.s32 %v1976, 2
  %vm1978 = vcmp.gt.s32.totalorder 0, %v1977
  %v1979 = vsel %vm1978, 0, %v1977
  %v1980 = vsub.s32 32, %v1979
  %v1981 = vshll.u32 %v1972, %v1979
  %v1982 = vshrl.u32 %v1964, %v1980
  %v1983 = vor.u32 %v1981, %v1982
  %v1984 = vsub.s32 4294967266, %v1979
  %v1985 = vadd.s32 %v1984, 127
  %v1986 = vshll.u32 %v1985, 23
  %v1987 = vor.u32 4788187, %v1986
  %v1988 = vand.u32 2147483647, %v1987
  %v1990 = vcvt.s32.f32 %v1983
  %v1991 = vmul.f32 %v1990, %v1988
  %v1992 = vxor.u32 %v1991, 2147483648
  %v1993 = vsel %vm1910, %v1992, %v1991
  %v1994 = vsub.s32 4, %v1970
  %v1995 = vsel %vm1910, %v1994, %v1970
  %v1996 = vsel %vm1909, %v1155, %v1993
  %v1997 = vsel %vm1909, 0, %v1995
  %v1998 = vcosq.f32.pop %v1996
  %v1999 = vsinq.f32.pop %v1996
  %vm2000 = vweird.f32 %v1155
  %v2001 = vadd.s32 %v1997, 3
  %v2002 = vand.u32 %v2001, 3
  %vm2003 = vcmp.lt.s32.totalorder %v2002, 2
  %vm2004 = vcmp.eq.s32.totalorder %v2002, 0
  %v2005 = vxor.u32 %v1999, 2147483648
  %v2006 = vsel %vm2004, %v1998, %v2005
  %vm2007 = vcmp.eq.s32.totalorder %v2002, 2
  %v2008 = vxor.u32 %v1998, 2147483648
  %v2009 = vsel %vm2007, %v2008, %v1999
  %v2010 = vsel %vm2003, %v2006, %v2009
  %v2011 = vsel %vm2000, nan, %v2010
  %v2012 = vand.u32 2147483647, %v1156
  %vm2013 = vcmp.le.f32.partialorder %v2012, 0.7853982
  %vm2014 = vcmp.lt.s32.totalorder %v1156, 0
  %v2015 = vand.u32 %v1156, 2139095040
  %v2016 = vshrl.u32 %v2015, 23
  %v2017 = vsub.s32 %v2016, 127
  %v2018 = vand.u32 2147483647, %v1156
  %v2019 = vand.u32 %v2018, 8388607
  %v2020 = vor.u32 %v2019, 8388608
  %v2021 = vsub.s32 0, %v2020
  %v2022 = vadd.s32 %v2017, 1
  %vm2023 = vcmp.gt.s32.totalorder %v2022, 0
  %v2024 = vsel %vm2023, %v2022, 0
  %v2025 = vshrl.u32 %v2024, 5
  %v2026 = vand.u32 %v2024, 31
  %v2027 = vsub.s32 32, %v2026
  %v2028 = vshrl.u32 683565275, %v2027
  %v2029 = vshll.u32 683565275, %v2026
  %v2030 = vshrl.u32 2475754826, %v2027
  %v2031 = vor.u32 %v2029, %v2030
  %v2032 = vshll.u32 2475754826, %v2026
  %v2033 = vshrl.u32 2131351028, %v2027
  %v2034 = vor.u32 %v2032, %v2033
  %v2035 = vshll.u32 2131351028, %v2026
  %v2036 = vshrl.u32 2102212464, %v2027
  %v2037 = vor.u32 %v2035, %v2036
  %v2038 = vshll.u32 2102212464, %v2026
  %v2039 = vshrl.u32 920167782, %v2027
  %v2040 = vor.u32 %v2038, %v2039
  %v2041 = vshll.u32 920167782, %v2026
  %v2042 = vshrl.u32 1326507024, %v2027
  %v2043 = vor.u32 %v2041, %v2042
  %vm2044 = vcmp.lt.s32.totalorder %v2025, 1
  %vm2045 = vcmp.lt.s32.totalorder %v2025, 2
  %vm2046 = vcmp.lt.s32.totalorder %v2025, 3
  %vm2047 = vcmp.lt.s32.totalorder %v2025, 4
  %v2048 = vsel %vm2044, %v2028, %v2031
  %v2049 = vsel %vm2047, %v2037, 2102212464
  %v2050 = vsel %vm2046, %v2034, %v2049
  %v2051 = vsel %vm2045, %v2048, %v2050
  %v2052 = vsel %vm2044, %v2031, %v2034
  %v2053 = vsel %vm2047, %v2040, 920167782
  %v2054 = vsel %vm2046, %v2037, %v2053
  %v2055 = vsel %vm2045, %v2052, %v2054
  %v2056 = vsel %vm2044, %v2034, %v2037
  %v2057 = vsel %vm2047, %v2043, 1326507024
  %v2058 = vsel %vm2046, %v2040, %v2057
  %v2059 = vsel %vm2045, %v2056, %v2058
  %v2060 = vshll.u32 %v2020, 8
  %v2061 = vmul.u32.u64.compose %v2060, %v2059
  %v2062 = vextract.low.u32 %v2061
  %v2063 = vextract.high.u32 %v2061
  %v2064 = vmul.u32.u64.compose %v2060, %v2055
  %v2065 = vextract.low.u32 %v2064
  %v2066 = vextract.high.u32 %v2064
  %v2067 = vmul.u32 %v2060, %v2051
  %v2068 = vadd.s32 %v2063, %v2065
  %vm2069 = vc.u32 %v2063, %v2065
  %v2070 = vadd.s32 %v2066, 1
  %v2071 = vsel %vm2069, %v2070, %v2066
  %v2072 = vadd.s32 %v2067, %v2071
  %v2073 = vadd.s32 %v2072, 536870912
  %v2074 = vshrl.u32 %v2073, 30
  %v2075 = vshll.u32 %v2074, 30
  %v2076 = vsub.s32 %v2072, %v2075
  %vm2077 = vcmp.lt.s32.totalorder %v2076, 0
  %v2078 = vsub.s32 0, %v2076
  %v2079 = vsel %vm2077, %v2078, %v2076
  %v2080 = vclz %v2079
  %v2081 = vsub.s32 %v2080, 2
  %vm2082 = vcmp.gt.s32.totalorder 0, %v2081
  %v2083 = vsel %vm2082, 0, %v2081
  %v2084 = vsub.s32 32, %v2083
  %v2085 = vshll.u32 %v2076, %v2083
  %v2086 = vshrl.u32 %v2068, %v2084
  %v2087 = vor.u32 %v2085, %v2086
  %v2088 = vsub.s32 4294967266, %v2083
  %v2089 = vadd.s32 %v2088, 127
  %v2090 = vshll.u32 %v2089, 23
  %v2091 = vor.u32 4788187, %v2090
  %v2092 = vand.u32 2147483647, %v2091
  %v2094 = vcvt.s32.f32 %v2087
  %v2095 = vmul.f32 %v2094, %v2092
  %v2096 = vxor.u32 %v2095, 2147483648
  %v2097 = vsel %vm2014, %v2096, %v2095
  %v2098 = vsub.s32 4, %v2074
  %v2099 = vsel %vm2014, %v2098, %v2074
  %v2100 = vsel %vm2013, %v1156, %v2097
  %v2101 = vsel %vm2013, 0, %v2099
  %v2102 = vcosq.f32.pop %v2100
  %v2103 = vsinq.f32.pop %v2100
  %vm2104 = vweird.f32 %v1156
  %v2105 = vadd.s32 %v2101, 3
  %v2106 = vand.u32 %v2105, 3
  %vm2107 = vcmp.lt.s32.totalorder %v2106, 2
  %vm2108 = vcmp.eq.s32.totalorder %v2106, 0
  %v2109 = vxor.u32 %v2103, 2147483648
  %v2110 = vsel %vm2108, %v2102, %v2109
  %vm2111 = vcmp.eq.s32.totalorder %v2106, 2
  %v2112 = vxor.u32 %v2102, 2147483648
  %v2113 = vsel %vm2111, %v2112, %v2103
  %v2114 = vsel %vm2107, %v2110, %v2113
  %v2115 = vsel %vm2104, nan, %v2114
  %v2116 = vand.u32 2147483647, %v1157
  %vm2117 = vcmp.le.f32.partialorder %v2116, 0.7853982
  %vm2118 = vcmp.lt.s32.totalorder %v1157, 0
  %v2119 = vand.u32 %v1157, 2139095040
  %v2120 = vshrl.u32 %v2119, 23
  %v2121 = vsub.s32 %v2120, 127
  %v2122 = vand.u32 2147483647, %v1157
  %v2123 = vand.u32 %v2122, 8388607
  %v2124 = vor.u32 %v2123, 8388608
  %v2125 = vsub.s32 0, %v2124
  %v2126 = vadd.s32 %v2121, 1
  %vm2127 = vcmp.gt.s32.totalorder %v2126, 0
  %v2128 = vsel %vm2127, %v2126, 0
  %v2129 = vshrl.u32 %v2128, 5
  %v2130 = vand.u32 %v2128, 31
  %v2131 = vsub.s32 32, %v2130
  %v2132 = vshrl.u32 683565275, %v2131
  %v2133 = vshll.u32 683565275, %v2130
  %v2134 = vshrl.u32 2475754826, %v2131
  %v2135 = vor.u32 %v2133, %v2134
  %v2136 = vshll.u32 2475754826, %v2130
  %v2137 = vshrl.u32 2131351028, %v2131
  %v2138 = vor.u32 %v2136, %v2137
  %v2139 = vshll.u32 2131351028, %v2130
  %v2140 = vshrl.u32 2102212464, %v2131
  %v2141 = vor.u32 %v2139, %v2140
  %v2142 = vshll.u32 2102212464, %v2130
  %v2143 = vshrl.u32 920167782, %v2131
  %v2144 = vor.u32 %v2142, %v2143
  %v2145 = vshll.u32 920167782, %v2130
  %v2146 = vshrl.u32 1326507024, %v2131
  %v2147 = vor.u32 %v2145, %v2146
  %vm2148 = vcmp.lt.s32.totalorder %v2129, 1
  %vm2149 = vcmp.lt.s32.totalorder %v2129, 2
  %vm2150 = vcmp.lt.s32.totalorder %v2129, 3
  %vm2151 = vcmp.lt.s32.totalorder %v2129, 4
  %v2152 = vsel %vm2148, %v2132, %v2135
  %v2153 = vsel %vm2151, %v2141, 2102212464
  %v2154 = vsel %vm2150, %v2138, %v2153
  %v2155 = vsel %vm2149, %v2152, %v2154
  %v2156 = vsel %vm2148, %v2135, %v2138
  %v2157 = vsel %vm2151, %v2144, 920167782
  %v2158 = vsel %vm2150, %v2141, %v2157
  %v2159 = vsel %vm2149, %v2156, %v2158
  %v2160 = vsel %vm2148, %v2138, %v2141
  %v2161 = vsel %vm2151, %v2147, 1326507024
  %v2162 = vsel %vm2150, %v2144, %v2161
  %v2163 = vsel %vm2149, %v2160, %v2162
  %v2164 = vshll.u32 %v2124, 8
  %v2165 = vmul.u32.u64.compose %v2164, %v2163
  %v2166 = vextract.low.u32 %v2165
  %v2167 = vextract.high.u32 %v2165
  %v2168 = vmul.u32.u64.compose %v2164, %v2159
  %v2169 = vextract.low.u32 %v2168
  %v2170 = vextract.high.u32 %v2168
  %v2171 = vmul.u32 %v2164, %v2155
  %v2172 = vadd.s32 %v2167, %v2169
  %vm2173 = vc.u32 %v2167, %v2169
  %v2174 = vadd.s32 %v2170, 1
  %v2175 = vsel %vm2173, %v2174, %v2170
  %v2176 = vadd.s32 %v2171, %v2175
  %v2177 = vadd.s32 %v2176, 536870912
  %v2178 = vshrl.u32 %v2177, 30
  %v2179 = vshll.u32 %v2178, 30
  %v2180 = vsub.s32 %v2176, %v2179
  %vm2181 = vcmp.lt.s32.totalorder %v2180, 0
  %v2182 = vsub.s32 0, %v2180
  %v2183 = vsel %vm2181, %v2182, %v2180
  %v2184 = vclz %v2183
  %v2185 = vsub.s32 %v2184, 2
  %vm2186 = vcmp.gt.s32.totalorder 0, %v2185
  %v2187 = vsel %vm2186, 0, %v2185
  %v2188 = vsub.s32 32, %v2187
  %v2189 = vshll.u32 %v2180, %v2187
  %v2190 = vshrl.u32 %v2172, %v2188
  %v2191 = vor.u32 %v2189, %v2190
  %v2192 = vsub.s32 4294967266, %v2187
  %v2193 = vadd.s32 %v2192, 127
  %v2194 = vshll.u32 %v2193, 23
  %v2195 = vor.u32 4788187, %v2194
  %v2196 = vand.u32 2147483647, %v2195
  %v2198 = vcvt.s32.f32 %v2191
  %v2199 = vmul.f32 %v2198, %v2196
  %v2200 = vxor.u32 %v2199, 2147483648
  %v2201 = vsel %vm2118, %v2200, %v2199
  %v2202 = vsub.s32 4, %v2178
  %v2203 = vsel %vm2118, %v2202, %v2178
  %v2204 = vsel %vm2117, %v1157, %v2201
  %v2205 = vsel %vm2117, 0, %v2203
  %v2206 = vcosq.f32.pop %v2204
  %v2207 = vsinq.f32.pop %v2204
  %vm2208 = vweird.f32 %v1157
  %v2209 = vadd.s32 %v2205, 3
  %v2210 = vand.u32 %v2209, 3
  %vm2211 = vcmp.lt.s32.totalorder %v2210, 2
  %vm2212 = vcmp.eq.s32.totalorder %v2210, 0
  %v2213 = vxor.u32 %v2207, 2147483648
  %v2214 = vsel %vm2212, %v2206, %v2213
  %vm2215 = vcmp.eq.s32.totalorder %v2210, 2
  %v2216 = vxor.u32 %v2206, 2147483648
  %v2217 = vsel %vm2215, %v2216, %v2207
  %v2218 = vsel %vm2211, %v2214, %v2217
  %v2219 = vsel %vm2208, nan, %v2218
  %v2220 = vand.u32 2147483647, %v1158
  %vm2221 = vcmp.le.f32.partialorder %v2220, 0.7853982
  %vm2222 = vcmp.lt.s32.totalorder %v1158, 0
  %v2223 = vand.u32 %v1158, 2139095040
  %v2224 = vshrl.u32 %v2223, 23
  %v2225 = vsub.s32 %v2224, 127
  %v2226 = vand.u32 2147483647, %v1158
  %v2227 = vand.u32 %v2226, 8388607
  %v2228 = vor.u32 %v2227, 8388608
  %v2229 = vsub.s32 0, %v2228
  %v2230 = vadd.s32 %v2225, 1
  %vm2231 = vcmp.gt.s32.totalorder %v2230, 0
  %v2232 = vsel %vm2231, %v2230, 0
  %v2233 = vshrl.u32 %v2232, 5
  %v2234 = vand.u32 %v2232, 31
  %v2235 = vsub.s32 32, %v2234
  %v2236 = vshrl.u32 683565275, %v2235
  %v2237 = vshll.u32 683565275, %v2234
  %v2238 = vshrl.u32 2475754826, %v2235
  %v2239 = vor.u32 %v2237, %v2238
  %v2240 = vshll.u32 2475754826, %v2234
  %v2241 = vshrl.u32 2131351028, %v2235
  %v2242 = vor.u32 %v2240, %v2241
  %v2243 = vshll.u32 2131351028, %v2234
  %v2244 = vshrl.u32 2102212464, %v2235
  %v2245 = vor.u32 %v2243, %v2244
  %v2246 = vshll.u32 2102212464, %v2234
  %v2247 = vshrl.u32 920167782, %v2235
  %v2248 = vor.u32 %v2246, %v2247
  %v2249 = vshll.u32 920167782, %v2234
  %v2250 = vshrl.u32 1326507024, %v2235
  %v2251 = vor.u32 %v2249, %v2250
  %vm2252 = vcmp.lt.s32.totalorder %v2233, 1
  %vm2253 = vcmp.lt.s32.totalorder %v2233, 2
  %vm2254 = vcmp.lt.s32.totalorder %v2233, 3
  %vm2255 = vcmp.lt.s32.totalorder %v2233, 4
  %v2256 = vsel %vm2252, %v2236, %v2239
  %v2257 = vsel %vm2255, %v2245, 2102212464
  %v2258 = vsel %vm2254, %v2242, %v2257
  %v2259 = vsel %vm2253, %v2256, %v2258
  %v2260 = vsel %vm2252, %v2239, %v2242
  %v2261 = vsel %vm2255, %v2248, 920167782
  %v2262 = vsel %vm2254, %v2245, %v2261
  %v2263 = vsel %vm2253, %v2260, %v2262
  %v2264 = vsel %vm2252, %v2242, %v2245
  %v2265 = vsel %vm2255, %v2251, 1326507024
  %v2266 = vsel %vm2254, %v2248, %v2265
  %v2267 = vsel %vm2253, %v2264, %v2266
  %v2268 = vshll.u32 %v2228, 8
  %v2269 = vmul.u32.u64.compose %v2268, %v2267
  %v2270 = vextract.low.u32 %v2269
  %v2271 = vextract.high.u32 %v2269
  %v2272 = vmul.u32.u64.compose %v2268, %v2263
  %v2273 = vextract.low.u32 %v2272
  %v2274 = vextract.high.u32 %v2272
  %v2275 = vmul.u32 %v2268, %v2259
  %v2276 = vadd.s32 %v2271, %v2273
  %vm2277 = vc.u32 %v2271, %v2273
  %v2278 = vadd.s32 %v2274, 1
  %v2279 = vsel %vm2277, %v2278, %v2274
  %v2280 = vadd.s32 %v2275, %v2279
  %v2281 = vadd.s32 %v2280, 536870912
  %v2282 = vshrl.u32 %v2281, 30
  %v2283 = vshll.u32 %v2282, 30
  %v2284 = vsub.s32 %v2280, %v2283
  %vm2285 = vcmp.lt.s32.totalorder %v2284, 0
  %v2286 = vsub.s32 0, %v2284
  %v2287 = vsel %vm2285, %v2286, %v2284
  %v2288 = vclz %v2287
  %v2289 = vsub.s32 %v2288, 2
  %vm2290 = vcmp.gt.s32.totalorder 0, %v2289
  %v2291 = vsel %vm2290, 0, %v2289
  %v2292 = vsub.s32 32, %v2291
  %v2293 = vshll.u32 %v2284, %v2291
  %v2294 = vshrl.u32 %v2276, %v2292
  %v2295 = vor.u32 %v2293, %v2294
  %v2296 = vsub.s32 4294967266, %v2291
  %v2297 = vadd.s32 %v2296, 127
  %v2298 = vshll.u32 %v2297, 23
  %v2299 = vor.u32 4788187, %v2298
  %v2300 = vand.u32 2147483647, %v2299
  %v2302 = vcvt.s32.f32 %v2295
  %v2303 = vmul.f32 %v2302, %v2300
  %v2304 = vxor.u32 %v2303, 2147483648
  %v2305 = vsel %vm2222, %v2304, %v2303
  %v2306 = vsub.s32 4, %v2282
  %v2307 = vsel %vm2222, %v2306, %v2282
  %v2308 = vsel %vm2221, %v1158, %v2305
  %v2309 = vsel %vm2221, 0, %v2307
  %v2310 = vcosq.f32.pop %v2308
  %v2311 = vsinq.f32.pop %v2308
  %vm2312 = vweird.f32 %v1158
  %v2313 = vadd.s32 %v2309, 3
  %v2314 = vand.u32 %v2313, 3
  %vm2315 = vcmp.lt.s32.totalorder %v2314, 2
  %vm2316 = vcmp.eq.s32.totalorder %v2314, 0
  %v2317 = vxor.u32 %v2311, 2147483648
  %v2318 = vsel %vm2316, %v2310, %v2317
  %vm2319 = vcmp.eq.s32.totalorder %v2314, 2
  %v2320 = vxor.u32 %v2310, 2147483648
  %v2321 = vsel %vm2319, %v2320, %v2311
  %v2322 = vsel %vm2315, %v2318, %v2321
  %v2323 = vsel %vm2312, nan, %v2322
  %v2324 = vand.u32 2147483647, %v1159
  %vm2325 = vcmp.le.f32.partialorder %v2324, 0.7853982
  %vm2326 = vcmp.lt.s32.totalorder %v1159, 0
  %v2327 = vand.u32 %v1159, 2139095040
  %v2328 = vshrl.u32 %v2327, 23
  %v2329 = vsub.s32 %v2328, 127
  %v2330 = vand.u32 2147483647, %v1159
  %v2331 = vand.u32 %v2330, 8388607
  %v2332 = vor.u32 %v2331, 8388608
  %v2333 = vsub.s32 0, %v2332
  %v2334 = vadd.s32 %v2329, 1
  %vm2335 = vcmp.gt.s32.totalorder %v2334, 0
  %v2336 = vsel %vm2335, %v2334, 0
  %v2337 = vshrl.u32 %v2336, 5
  %v2338 = vand.u32 %v2336, 31
  %v2339 = vsub.s32 32, %v2338
  %v2340 = vshrl.u32 683565275, %v2339
  %v2341 = vshll.u32 683565275, %v2338
  %v2342 = vshrl.u32 2475754826, %v2339
  %v2343 = vor.u32 %v2341, %v2342
  %v2344 = vshll.u32 2475754826, %v2338
  %v2345 = vshrl.u32 2131351028, %v2339
  %v2346 = vor.u32 %v2344, %v2345
  %v2347 = vshll.u32 2131351028, %v2338
  %v2348 = vshrl.u32 2102212464, %v2339
  %v2349 = vor.u32 %v2347, %v2348
  %v2350 = vshll.u32 2102212464, %v2338
  %v2351 = vshrl.u32 920167782, %v2339
  %v2352 = vor.u32 %v2350, %v2351
  %v2353 = vshll.u32 920167782, %v2338
  %v2354 = vshrl.u32 1326507024, %v2339
  %v2355 = vor.u32 %v2353, %v2354
  %vm2356 = vcmp.lt.s32.totalorder %v2337, 1
  %vm2357 = vcmp.lt.s32.totalorder %v2337, 2
  %vm2358 = vcmp.lt.s32.totalorder %v2337, 3
  %vm2359 = vcmp.lt.s32.totalorder %v2337, 4
  %v2360 = vsel %vm2356, %v2340, %v2343
  %v2361 = vsel %vm2359, %v2349, 2102212464
  %v2362 = vsel %vm2358, %v2346, %v2361
  %v2363 = vsel %vm2357, %v2360, %v2362
  %v2364 = vsel %vm2356, %v2343, %v2346
  %v2365 = vsel %vm2359, %v2352, 920167782
  %v2366 = vsel %vm2358, %v2349, %v2365
  %v2367 = vsel %vm2357, %v2364, %v2366
  %v2368 = vsel %vm2356, %v2346, %v2349
  %v2369 = vsel %vm2359, %v2355, 1326507024
  %v2370 = vsel %vm2358, %v2352, %v2369
  %v2371 = vsel %vm2357, %v2368, %v2370
  %v2372 = vshll.u32 %v2332, 8
  %v2373 = vmul.u32.u64.compose %v2372, %v2371
  %v2374 = vextract.low.u32 %v2373
  %v2375 = vextract.high.u32 %v2373
  %v2376 = vmul.u32.u64.compose %v2372, %v2367
  %v2377 = vextract.low.u32 %v2376
  %v2378 = vextract.high.u32 %v2376
  %v2379 = vmul.u32 %v2372, %v2363
  %v2380 = vadd.s32 %v2375, %v2377
  %vm2381 = vc.u32 %v2375, %v2377
  %v2382 = vadd.s32 %v2378, 1
  %v2383 = vsel %vm2381, %v2382, %v2378
  %v2384 = vadd.s32 %v2379, %v2383
  %v2385 = vadd.s32 %v2384, 536870912
  %v2386 = vshrl.u32 %v2385, 30
  %v2387 = vshll.u32 %v2386, 30
  %v2388 = vsub.s32 %v2384, %v2387
  %vm2389 = vcmp.lt.s32.totalorder %v2388, 0
  %v2390 = vsub.s32 0, %v2388
  %v2391 = vsel %vm2389, %v2390, %v2388
  %v2392 = vclz %v2391
  %v2393 = vsub.s32 %v2392, 2
  %vm2394 = vcmp.gt.s32.totalorder 0, %v2393
  %v2395 = vsel %vm2394, 0, %v2393
  %v2396 = vsub.s32 32, %v2395
  %v2397 = vshll.u32 %v2388, %v2395
  %v2398 = vshrl.u32 %v2380, %v2396
  %v2399 = vor.u32 %v2397, %v2398
  %v2400 = vsub.s32 4294967266, %v2395
  %v2401 = vadd.s32 %v2400, 127
  %v2402 = vshll.u32 %v2401, 23
  %v2403 = vor.u32 4788187, %v2402
  %v2404 = vand.u32 2147483647, %v2403
  %v2406 = vcvt.s32.f32 %v2399
  %v2407 = vmul.f32 %v2406, %v2404
  %v2408 = vxor.u32 %v2407, 2147483648
  %v2409 = vsel %vm2326, %v2408, %v2407
  %v2410 = vsub.s32 4, %v2386
  %v2411 = vsel %vm2326, %v2410, %v2386
  %v2412 = vsel %vm2325, %v1159, %v2409
  %v2413 = vsel %vm2325, 0, %v2411
  %v2414 = vcosq.f32.pop %v2412
  %v2415 = vsinq.f32.pop %v2412
  %vm2416 = vweird.f32 %v1159
  %v2417 = vadd.s32 %v2413, 3
  %v2418 = vand.u32 %v2417, 3
  %vm2419 = vcmp.lt.s32.totalorder %v2418, 2
  %vm2420 = vcmp.eq.s32.totalorder %v2418, 0
  %v2421 = vxor.u32 %v2415, 2147483648
  %v2422 = vsel %vm2420, %v2414, %v2421
  %vm2423 = vcmp.eq.s32.totalorder %v2418, 2
  %v2424 = vxor.u32 %v2414, 2147483648
  %v2425 = vsel %vm2423, %v2424, %v2415
  %v2426 = vsel %vm2419, %v2422, %v2425
  %v2427 = vsel %vm2416, nan, %v2426
  %v2428 = vand.u32 2147483647, %v1160
  %vm2429 = vcmp.le.f32.partialorder %v2428, 0.7853982
  %vm2430 = vcmp.lt.s32.totalorder %v1160, 0
  %v2431 = vand.u32 %v1160, 2139095040
  %v2432 = vshrl.u32 %v2431, 23
  %v2433 = vsub.s32 %v2432, 127
  %v2434 = vand.u32 2147483647, %v1160
  %v2435 = vand.u32 %v2434, 8388607
  %v2436 = vor.u32 %v2435, 8388608
  %v2437 = vsub.s32 0, %v2436
  %v2438 = vadd.s32 %v2433, 1
  %vm2439 = vcmp.gt.s32.totalorder %v2438, 0
  %v2440 = vsel %vm2439, %v2438, 0
  %v2441 = vshrl.u32 %v2440, 5
  %v2442 = vand.u32 %v2440, 31
  %v2443 = vsub.s32 32, %v2442
  %v2444 = vshrl.u32 683565275, %v2443
  %v2445 = vshll.u32 683565275, %v2442
  %v2446 = vshrl.u32 2475754826, %v2443
  %v2447 = vor.u32 %v2445, %v2446
  %v2448 = vshll.u32 2475754826, %v2442
  %v2449 = vshrl.u32 2131351028, %v2443
  %v2450 = vor.u32 %v2448, %v2449
  %v2451 = vshll.u32 2131351028, %v2442
  %v2452 = vshrl.u32 2102212464, %v2443
  %v2453 = vor.u32 %v2451, %v2452
  %v2454 = vshll.u32 2102212464, %v2442
  %v2455 = vshrl.u32 920167782, %v2443
  %v2456 = vor.u32 %v2454, %v2455
  %v2457 = vshll.u32 920167782, %v2442
  %v2458 = vshrl.u32 1326507024, %v2443
  %v2459 = vor.u32 %v2457, %v2458
  %vm2460 = vcmp.lt.s32.totalorder %v2441, 1
  %vm2461 = vcmp.lt.s32.totalorder %v2441, 2
  %vm2462 = vcmp.lt.s32.totalorder %v2441, 3
  %vm2463 = vcmp.lt.s32.totalorder %v2441, 4
  %v2464 = vsel %vm2460, %v2444, %v2447
  %v2465 = vsel %vm2463, %v2453, 2102212464
  %v2466 = vsel %vm2462, %v2450, %v2465
  %v2467 = vsel %vm2461, %v2464, %v2466
  %v2468 = vsel %vm2460, %v2447, %v2450
  %v2469 = vsel %vm2463, %v2456, 920167782
  %v2470 = vsel %vm2462, %v2453, %v2469
  %v2471 = vsel %vm2461, %v2468, %v2470
  %v2472 = vsel %vm2460, %v2450, %v2453
  %v2473 = vsel %vm2463, %v2459, 1326507024
  %v2474 = vsel %vm2462, %v2456, %v2473
  %v2475 = vsel %vm2461, %v2472, %v2474
  %v2476 = vshll.u32 %v2436, 8
  %v2477 = vmul.u32.u64.compose %v2476, %v2475
  %v2478 = vextract.low.u32 %v2477
  %v2479 = vextract.high.u32 %v2477
  %v2480 = vmul.u32.u64.compose %v2476, %v2471
  %v2481 = vextract.low.u32 %v2480
  %v2482 = vextract.high.u32 %v2480
  %v2483 = vmul.u32 %v2476, %v2467
  %v2484 = vadd.s32 %v2479, %v2481
  %vm2485 = vc.u32 %v2479, %v2481
  %v2486 = vadd.s32 %v2482, 1
  %v2487 = vsel %vm2485, %v2486, %v2482
  %v2488 = vadd.s32 %v2483, %v2487
  %v2489 = vadd.s32 %v2488, 536870912
  %v2490 = vshrl.u32 %v2489, 30
  %v2491 = vshll.u32 %v2490, 30
  %v2492 = vsub.s32 %v2488, %v2491
  %vm2493 = vcmp.lt.s32.totalorder %v2492, 0
  %v2494 = vsub.s32 0, %v2492
  %v2495 = vsel %vm2493, %v2494, %v2492
  %v2496 = vclz %v2495
  %v2497 = vsub.s32 %v2496, 2
  %vm2498 = vcmp.gt.s32.totalorder 0, %v2497
  %v2499 = vsel %vm2498, 0, %v2497
  %v2500 = vsub.s32 32, %v2499
  %v2501 = vshll.u32 %v2492, %v2499
  %v2502 = vshrl.u32 %v2484, %v2500
  %v2503 = vor.u32 %v2501, %v2502
  %v2504 = vsub.s32 4294967266, %v2499
  %v2505 = vadd.s32 %v2504, 127
  %v2506 = vshll.u32 %v2505, 23
  %v2507 = vor.u32 4788187, %v2506
  %v2508 = vand.u32 2147483647, %v2507
  %v2510 = vcvt.s32.f32 %v2503
  %v2511 = vmul.f32 %v2510, %v2508
  %v2512 = vxor.u32 %v2511, 2147483648
  %v2513 = vsel %vm2430, %v2512, %v2511
  %v2514 = vsub.s32 4, %v2490
  %v2515 = vsel %vm2430, %v2514, %v2490
  %v2516 = vsel %vm2429, %v1160, %v2513
  %v2517 = vsel %vm2429, 0, %v2515
  %v2518 = vcosq.f32.pop %v2516
  %v2519 = vsinq.f32.pop %v2516
  %vm2520 = vweird.f32 %v1160
  %v2521 = vadd.s32 %v2517, 3
  %v2522 = vand.u32 %v2521, 3
  %vm2523 = vcmp.lt.s32.totalorder %v2522, 2
  %vm2524 = vcmp.eq.s32.totalorder %v2522, 0
  %v2525 = vxor.u32 %v2519, 2147483648
  %v2526 = vsel %vm2524, %v2518, %v2525
  %vm2527 = vcmp.eq.s32.totalorder %v2522, 2
  %v2528 = vxor.u32 %v2518, 2147483648
  %v2529 = vsel %vm2527, %v2528, %v2519
  %v2530 = vsel %vm2523, %v2526, %v2529
  %v2531 = vsel %vm2520, nan, %v2530
  %v2532 = vand.u32 2147483647, %v1161
  %vm2533 = vcmp.le.f32.partialorder %v2532, 0.7853982
  %vm2534 = vcmp.lt.s32.totalorder %v1161, 0
  %v2535 = vand.u32 %v1161, 2139095040
  %v2536 = vshrl.u32 %v2535, 23
  %v2537 = vsub.s32 %v2536, 127
  %v2538 = vand.u32 2147483647, %v1161
  %v2539 = vand.u32 %v2538, 8388607
  %v2540 = vor.u32 %v2539, 8388608
  %v2541 = vsub.s32 0, %v2540
  %v2542 = vadd.s32 %v2537, 1
  %vm2543 = vcmp.gt.s32.totalorder %v2542, 0
  %v2544 = vsel %vm2543, %v2542, 0
  %v2545 = vshrl.u32 %v2544, 5
  %v2546 = vand.u32 %v2544, 31
  %v2547 = vsub.s32 32, %v2546
  %v2548 = vshrl.u32 683565275, %v2547
  %v2549 = vshll.u32 683565275, %v2546
  %v2550 = vshrl.u32 2475754826, %v2547
  %v2551 = vor.u32 %v2549, %v2550
  %v2552 = vshll.u32 2475754826, %v2546
  %v2553 = vshrl.u32 2131351028, %v2547
  %v2554 = vor.u32 %v2552, %v2553
  %v2555 = vshll.u32 2131351028, %v2546
  %v2556 = vshrl.u32 2102212464, %v2547
  %v2557 = vor.u32 %v2555, %v2556
  %v2558 = vshll.u32 2102212464, %v2546
  %v2559 = vshrl.u32 920167782, %v2547
  %v2560 = vor.u32 %v2558, %v2559
  %v2561 = vshll.u32 920167782, %v2546
  %v2562 = vshrl.u32 1326507024, %v2547
  %v2563 = vor.u32 %v2561, %v2562
  %vm2564 = vcmp.lt.s32.totalorder %v2545, 1
  %vm2565 = vcmp.lt.s32.totalorder %v2545, 2
  %vm2566 = vcmp.lt.s32.totalorder %v2545, 3
  %vm2567 = vcmp.lt.s32.totalorder %v2545, 4
  %v2568 = vsel %vm2564, %v2548, %v2551
  %v2569 = vsel %vm2567, %v2557, 2102212464
  %v2570 = vsel %vm2566, %v2554, %v2569
  %v2571 = vsel %vm2565, %v2568, %v2570
  %v2572 = vsel %vm2564, %v2551, %v2554
  %v2573 = vsel %vm2567, %v2560, 920167782
  %v2574 = vsel %vm2566, %v2557, %v2573
  %v2575 = vsel %vm2565, %v2572, %v2574
  %v2576 = vsel %vm2564, %v2554, %v2557
  %v2577 = vsel %vm2567, %v2563, 1326507024
  %v2578 = vsel %vm2566, %v2560, %v2577
  %v2579 = vsel %vm2565, %v2576, %v2578
  %v2580 = vshll.u32 %v2540, 8
  %v2581 = vmul.u32.u64.compose %v2580, %v2579
  %v2582 = vextract.low.u32 %v2581
  %v2583 = vextract.high.u32 %v2581
  %v2584 = vmul.u32.u64.compose %v2580, %v2575
  %v2585 = vextract.low.u32 %v2584
  %v2586 = vextract.high.u32 %v2584
  %v2587 = vmul.u32 %v2580, %v2571
  %v2588 = vadd.s32 %v2583, %v2585
  %vm2589 = vc.u32 %v2583, %v2585
  %v2590 = vadd.s32 %v2586, 1
  %v2591 = vsel %vm2589, %v2590, %v2586
  %v2592 = vadd.s32 %v2587, %v2591
  %v2593 = vadd.s32 %v2592, 536870912
  %v2594 = vshrl.u32 %v2593, 30
  %v2595 = vshll.u32 %v2594, 30
  %v2596 = vsub.s32 %v2592, %v2595
  %vm2597 = vcmp.lt.s32.totalorder %v2596, 0
  %v2598 = vsub.s32 0, %v2596
  %v2599 = vsel %vm2597, %v2598, %v2596
  %v2600 = vclz %v2599
  %v2601 = vsub.s32 %v2600, 2
  %vm2602 = vcmp.gt.s32.totalorder 0, %v2601
  %v2603 = vsel %vm2602, 0, %v2601
  %v2604 = vsub.s32 32, %v2603
  %v2605 = vshll.u32 %v2596, %v2603
  %v2606 = vshrl.u32 %v2588, %v2604
  %v2607 = vor.u32 %v2605, %v2606
  %v2608 = vsub.s32 4294967266, %v2603
  %v2609 = vadd.s32 %v2608, 127
  %v2610 = vshll.u32 %v2609, 23
  %v2611 = vor.u32 4788187, %v2610
  %v2612 = vand.u32 2147483647, %v2611
  %v2614 = vcvt.s32.f32 %v2607
  %v2615 = vmul.f32 %v2614, %v2612
  %v2616 = vxor.u32 %v2615, 2147483648
  %v2617 = vsel %vm2534, %v2616, %v2615
  %v2618 = vsub.s32 4, %v2594
  %v2619 = vsel %vm2534, %v2618, %v2594
  %v2620 = vsel %vm2533, %v1161, %v2617
  %v2621 = vsel %vm2533, 0, %v2619
  %v2622 = vcosq.f32.pop %v2620
  %v2623 = vsinq.f32.pop %v2620
  %vm2624 = vweird.f32 %v1161
  %v2625 = vadd.s32 %v2621, 3
  %v2626 = vand.u32 %v2625, 3
  %vm2627 = vcmp.lt.s32.totalorder %v2626, 2
  %vm2628 = vcmp.eq.s32.totalorder %v2626, 0
  %v2629 = vxor.u32 %v2623, 2147483648
  %v2630 = vsel %vm2628, %v2622, %v2629
  %vm2631 = vcmp.eq.s32.totalorder %v2626, 2
  %v2632 = vxor.u32 %v2622, 2147483648
  %v2633 = vsel %vm2631, %v2632, %v2623
  %v2634 = vsel %vm2627, %v2630, %v2633
  %v2635 = vsel %vm2624, nan, %v2634
  %v2636 = vand.u32 2147483647, %v1162
  %vm2637 = vcmp.le.f32.partialorder %v2636, 0.7853982
  %vm2638 = vcmp.lt.s32.totalorder %v1162, 0
  %v2639 = vand.u32 %v1162, 2139095040
  %v2640 = vshrl.u32 %v2639, 23
  %v2641 = vsub.s32 %v2640, 127
  %v2642 = vand.u32 2147483647, %v1162
  %v2643 = vand.u32 %v2642, 8388607
  %v2644 = vor.u32 %v2643, 8388608
  %v2645 = vsub.s32 0, %v2644
  %v2646 = vadd.s32 %v2641, 1
  %vm2647 = vcmp.gt.s32.totalorder %v2646, 0
  %v2648 = vsel %vm2647, %v2646, 0
  %v2649 = vshrl.u32 %v2648, 5
  %v2650 = vand.u32 %v2648, 31
  %v2651 = vsub.s32 32, %v2650
  %v2652 = vshrl.u32 683565275, %v2651
  %v2653 = vshll.u32 683565275, %v2650
  %v2654 = vshrl.u32 2475754826, %v2651
  %v2655 = vor.u32 %v2653, %v2654
  %v2656 = vshll.u32 2475754826, %v2650
  %v2657 = vshrl.u32 2131351028, %v2651
  %v2658 = vor.u32 %v2656, %v2657
  %v2659 = vshll.u32 2131351028, %v2650
  %v2660 = vshrl.u32 2102212464, %v2651
  %v2661 = vor.u32 %v2659, %v2660
  %v2662 = vshll.u32 2102212464, %v2650
  %v2663 = vshrl.u32 920167782, %v2651
  %v2664 = vor.u32 %v2662, %v2663
  %v2665 = vshll.u32 920167782, %v2650
  %v2666 = vshrl.u32 1326507024, %v2651
  %v2667 = vor.u32 %v2665, %v2666
  %vm2668 = vcmp.lt.s32.totalorder %v2649, 1
  %vm2669 = vcmp.lt.s32.totalorder %v2649, 2
  %vm2670 = vcmp.lt.s32.totalorder %v2649, 3
  %vm2671 = vcmp.lt.s32.totalorder %v2649, 4
  %v2672 = vsel %vm2668, %v2652, %v2655
  %v2673 = vsel %vm2671, %v2661, 2102212464
  %v2674 = vsel %vm2670, %v2658, %v2673
  %v2675 = vsel %vm2669, %v2672, %v2674
  %v2676 = vsel %vm2668, %v2655, %v2658
  %v2677 = vsel %vm2671, %v2664, 920167782
  %v2678 = vsel %vm2670, %v2661, %v2677
  %v2679 = vsel %vm2669, %v2676, %v2678
  %v2680 = vsel %vm2668, %v2658, %v2661
  %v2681 = vsel %vm2671, %v2667, 1326507024
  %v2682 = vsel %vm2670, %v2664, %v2681
  %v2683 = vsel %vm2669, %v2680, %v2682
  %v2684 = vshll.u32 %v2644, 8
  %v2685 = vmul.u32.u64.compose %v2684, %v2683
  %v2686 = vextract.low.u32 %v2685
  %v2687 = vextract.high.u32 %v2685
  %v2688 = vmul.u32.u64.compose %v2684, %v2679
  %v2689 = vextract.low.u32 %v2688
  %v2690 = vextract.high.u32 %v2688
  %v2691 = vmul.u32 %v2684, %v2675
  %v2692 = vadd.s32 %v2687, %v2689
  %vm2693 = vc.u32 %v2687, %v2689
  %v2694 = vadd.s32 %v2690, 1
  %v2695 = vsel %vm2693, %v2694, %v2690
  %v2696 = vadd.s32 %v2691, %v2695
  %v2697 = vadd.s32 %v2696, 536870912
  %v2698 = vshrl.u32 %v2697, 30
  %v2699 = vshll.u32 %v2698, 30
  %v2700 = vsub.s32 %v2696, %v2699
  %vm2701 = vcmp.lt.s32.totalorder %v2700, 0
  %v2702 = vsub.s32 0, %v2700
  %v2703 = vsel %vm2701, %v2702, %v2700
  %v2704 = vclz %v2703
  %v2705 = vsub.s32 %v2704, 2
  %vm2706 = vcmp.gt.s32.totalorder 0, %v2705
  %v2707 = vsel %vm2706, 0, %v2705
  %v2708 = vsub.s32 32, %v2707
  %v2709 = vshll.u32 %v2700, %v2707
  %v2710 = vshrl.u32 %v2692, %v2708
  %v2711 = vor.u32 %v2709, %v2710
  %v2712 = vsub.s32 4294967266, %v2707
  %v2713 = vadd.s32 %v2712, 127
  %v2714 = vshll.u32 %v2713, 23
  %v2715 = vor.u32 4788187, %v2714
  %v2716 = vand.u32 2147483647, %v2715
  %v2718 = vcvt.s32.f32 %v2711
  %v2719 = vmul.f32 %v2718, %v2716
  %v2720 = vxor.u32 %v2719, 2147483648
  %v2721 = vsel %vm2638, %v2720, %v2719
  %v2722 = vsub.s32 4, %v2698
  %v2723 = vsel %vm2638, %v2722, %v2698
  %v2724 = vsel %vm2637, %v1162, %v2721
  %v2725 = vsel %vm2637, 0, %v2723
  %v2726 = vcosq.f32.pop %v2724
  %v2727 = vsinq.f32.pop %v2724
  %vm2728 = vweird.f32 %v1162
  %v2729 = vadd.s32 %v2725, 3
  %v2730 = vand.u32 %v2729, 3
  %vm2731 = vcmp.lt.s32.totalorder %v2730, 2
  %vm2732 = vcmp.eq.s32.totalorder %v2730, 0
  %v2733 = vxor.u32 %v2727, 2147483648
  %v2734 = vsel %vm2732, %v2726, %v2733
  %vm2735 = vcmp.eq.s32.totalorder %v2730, 2
  %v2736 = vxor.u32 %v2726, 2147483648
  %v2737 = vsel %vm2735, %v2736, %v2727
  %v2738 = vsel %vm2731, %v2734, %v2737
  %v2739 = vsel %vm2728, nan, %v2738
  %v2740 = vand.u32 2147483647, %v1163
  %vm2741 = vcmp.le.f32.partialorder %v2740, 0.7853982
  %vm2742 = vcmp.lt.s32.totalorder %v1163, 0
  %v2743 = vand.u32 %v1163, 2139095040
  %v2744 = vshrl.u32 %v2743, 23
  %v2745 = vsub.s32 %v2744, 127
  %v2746 = vand.u32 2147483647, %v1163
  %v2747 = vand.u32 %v2746, 8388607
  %v2748 = vor.u32 %v2747, 8388608
  %v2749 = vsub.s32 0, %v2748
  %v2750 = vadd.s32 %v2745, 1
  %vm2751 = vcmp.gt.s32.totalorder %v2750, 0
  %v2752 = vsel %vm2751, %v2750, 0
  %v2753 = vshrl.u32 %v2752, 5
  %v2754 = vand.u32 %v2752, 31
  %v2755 = vsub.s32 32, %v2754
  %v2756 = vshrl.u32 683565275, %v2755
  %v2757 = vshll.u32 683565275, %v2754
  %v2758 = vshrl.u32 2475754826, %v2755
  %v2759 = vor.u32 %v2757, %v2758
  %v2760 = vshll.u32 2475754826, %v2754
  %v2761 = vshrl.u32 2131351028, %v2755
  %v2762 = vor.u32 %v2760, %v2761
  %v2763 = vshll.u32 2131351028, %v2754
  %v2764 = vshrl.u32 2102212464, %v2755
  %v2765 = vor.u32 %v2763, %v2764
  %v2766 = vshll.u32 2102212464, %v2754
  %v2767 = vshrl.u32 920167782, %v2755
  %v2768 = vor.u32 %v2766, %v2767
  %v2769 = vshll.u32 920167782, %v2754
  %v2770 = vshrl.u32 1326507024, %v2755
  %v2771 = vor.u32 %v2769, %v2770
  %vm2772 = vcmp.lt.s32.totalorder %v2753, 1
  %vm2773 = vcmp.lt.s32.totalorder %v2753, 2
  %vm2774 = vcmp.lt.s32.totalorder %v2753, 3
  %vm2775 = vcmp.lt.s32.totalorder %v2753, 4
  %v2776 = vsel %vm2772, %v2756, %v2759
  %v2777 = vsel %vm2775, %v2765, 2102212464
  %v2778 = vsel %vm2774, %v2762, %v2777
  %v2779 = vsel %vm2773, %v2776, %v2778
  %v2780 = vsel %vm2772, %v2759, %v2762
  %v2781 = vsel %vm2775, %v2768, 920167782
  %v2782 = vsel %vm2774, %v2765, %v2781
  %v2783 = vsel %vm2773, %v2780, %v2782
  %v2784 = vsel %vm2772, %v2762, %v2765
  %v2785 = vsel %vm2775, %v2771, 1326507024
  %v2786 = vsel %vm2774, %v2768, %v2785
  %v2787 = vsel %vm2773, %v2784, %v2786
  %v2788 = vshll.u32 %v2748, 8
  %v2789 = vmul.u32.u64.compose %v2788, %v2787
  %v2790 = vextract.low.u32 %v2789
  %v2791 = vextract.high.u32 %v2789
  %v2792 = vmul.u32.u64.compose %v2788, %v2783
  %v2793 = vextract.low.u32 %v2792
  %v2794 = vextract.high.u32 %v2792
  %v2795 = vmul.u32 %v2788, %v2779
  %v2796 = vadd.s32 %v2791, %v2793
  %vm2797 = vc.u32 %v2791, %v2793
  %v2798 = vadd.s32 %v2794, 1
  %v2799 = vsel %vm2797, %v2798, %v2794
  %v2800 = vadd.s32 %v2795, %v2799
  %v2801 = vadd.s32 %v2800, 536870912
  %v2802 = vshrl.u32 %v2801, 30
  %v2803 = vshll.u32 %v2802, 30
  %v2804 = vsub.s32 %v2800, %v2803
  %vm2805 = vcmp.lt.s32.totalorder %v2804, 0
  %v2806 = vsub.s32 0, %v2804
  %v2807 = vsel %vm2805, %v2806, %v2804
  %v2808 = vclz %v2807
  %v2809 = vsub.s32 %v2808, 2
  %vm2810 = vcmp.gt.s32.totalorder 0, %v2809
  %v2811 = vsel %vm2810, 0, %v2809
  %v2812 = vsub.s32 32, %v2811
  %v2813 = vshll.u32 %v2804, %v2811
  %v2814 = vshrl.u32 %v2796, %v2812
  %v2815 = vor.u32 %v2813, %v2814
  %v2816 = vsub.s32 4294967266, %v2811
  %v2817 = vadd.s32 %v2816, 127
  %v2818 = vshll.u32 %v2817, 23
  %v2819 = vor.u32 4788187, %v2818
  %v2820 = vand.u32 2147483647, %v2819
  %v2822 = vcvt.s32.f32 %v2815
  %v2823 = vmul.f32 %v2822, %v2820
  %v2824 = vxor.u32 %v2823, 2147483648
  %v2825 = vsel %vm2742, %v2824, %v2823
  %v2826 = vsub.s32 4, %v2802
  %v2827 = vsel %vm2742, %v2826, %v2802
  %v2828 = vsel %vm2741, %v1163, %v2825
  %v2829 = vsel %vm2741, 0, %v2827
  %v2830 = vcosq.f32.pop %v2828
  %v2831 = vsinq.f32.pop %v2828
  %vm2832 = vweird.f32 %v1163
  %v2833 = vadd.s32 %v2829, 3
  %v2834 = vand.u32 %v2833, 3
  %vm2835 = vcmp.lt.s32.totalorder %v2834, 2
  %vm2836 = vcmp.eq.s32.totalorder %v2834, 0
  %v2837 = vxor.u32 %v2831, 2147483648
  %v2838 = vsel %vm2836, %v2830, %v2837
  %vm2839 = vcmp.eq.s32.totalorder %v2834, 2
  %v2840 = vxor.u32 %v2830, 2147483648
  %v2841 = vsel %vm2839, %v2840, %v2831
  %v2842 = vsel %vm2835, %v2838, %v2841
  %v2843 = vsel %vm2832, nan, %v2842
  %v2844 = vand.u32 2147483647, %v1164
  %vm2845 = vcmp.le.f32.partialorder %v2844, 0.7853982
  %vm2846 = vcmp.lt.s32.totalorder %v1164, 0
  %v2847 = vand.u32 %v1164, 2139095040
  %v2848 = vshrl.u32 %v2847, 23
  %v2849 = vsub.s32 %v2848, 127
  %v2850 = vand.u32 2147483647, %v1164
  %v2851 = vand.u32 %v2850, 8388607
  %v2852 = vor.u32 %v2851, 8388608
  %v2853 = vsub.s32 0, %v2852
  %v2854 = vadd.s32 %v2849, 1
  %vm2855 = vcmp.gt.s32.totalorder %v2854, 0
  %v2856 = vsel %vm2855, %v2854, 0
  %v2857 = vshrl.u32 %v2856, 5
  %v2858 = vand.u32 %v2856, 31
  %v2859 = vsub.s32 32, %v2858
  %v2860 = vshrl.u32 683565275, %v2859
  %v2861 = vshll.u32 683565275, %v2858
  %v2862 = vshrl.u32 2475754826, %v2859
  %v2863 = vor.u32 %v2861, %v2862
  %v2864 = vshll.u32 2475754826, %v2858
  %v2865 = vshrl.u32 2131351028, %v2859
  %v2866 = vor.u32 %v2864, %v2865
  %v2867 = vshll.u32 2131351028, %v2858
  %v2868 = vshrl.u32 2102212464, %v2859
  %v2869 = vor.u32 %v2867, %v2868
  %v2870 = vshll.u32 2102212464, %v2858
  %v2871 = vshrl.u32 920167782, %v2859
  %v2872 = vor.u32 %v2870, %v2871
  %v2873 = vshll.u32 920167782, %v2858
  %v2874 = vshrl.u32 1326507024, %v2859
  %v2875 = vor.u32 %v2873, %v2874
  %vm2876 = vcmp.lt.s32.totalorder %v2857, 1
  %vm2877 = vcmp.lt.s32.totalorder %v2857, 2
  %vm2878 = vcmp.lt.s32.totalorder %v2857, 3
  %vm2879 = vcmp.lt.s32.totalorder %v2857, 4
  %v2880 = vsel %vm2876, %v2860, %v2863
  %v2881 = vsel %vm2879, %v2869, 2102212464
  %v2882 = vsel %vm2878, %v2866, %v2881
  %v2883 = vsel %vm2877, %v2880, %v2882
  %v2884 = vsel %vm2876, %v2863, %v2866
  %v2885 = vsel %vm2879, %v2872, 920167782
  %v2886 = vsel %vm2878, %v2869, %v2885
  %v2887 = vsel %vm2877, %v2884, %v2886
  %v2888 = vsel %vm2876, %v2866, %v2869
  %v2889 = vsel %vm2879, %v2875, 1326507024
  %v2890 = vsel %vm2878, %v2872, %v2889
  %v2891 = vsel %vm2877, %v2888, %v2890
  %v2892 = vshll.u32 %v2852, 8
  %v2893 = vmul.u32.u64.compose %v2892, %v2891
  %v2894 = vextract.low.u32 %v2893
  %v2895 = vextract.high.u32 %v2893
  %v2896 = vmul.u32.u64.compose %v2892, %v2887
  %v2897 = vextract.low.u32 %v2896
  %v2898 = vextract.high.u32 %v2896
  %v2899 = vmul.u32 %v2892, %v2883
  %v2900 = vadd.s32 %v2895, %v2897
  %vm2901 = vc.u32 %v2895, %v2897
  %v2902 = vadd.s32 %v2898, 1
  %v2903 = vsel %vm2901, %v2902, %v2898
  %v2904 = vadd.s32 %v2899, %v2903
  %v2905 = vadd.s32 %v2904, 536870912
  %v2906 = vshrl.u32 %v2905, 30
  %v2907 = vshll.u32 %v2906, 30
  %v2908 = vsub.s32 %v2904, %v2907
  %vm2909 = vcmp.lt.s32.totalorder %v2908, 0
  %v2910 = vsub.s32 0, %v2908
  %v2911 = vsel %vm2909, %v2910, %v2908
  %v2912 = vclz %v2911
  %v2913 = vsub.s32 %v2912, 2
  %vm2914 = vcmp.gt.s32.totalorder 0, %v2913
  %v2915 = vsel %vm2914, 0, %v2913
  %v2916 = vsub.s32 32, %v2915
  %v2917 = vshll.u32 %v2908, %v2915
  %v2918 = vshrl.u32 %v2900, %v2916
  %v2919 = vor.u32 %v2917, %v2918
  %v2920 = vsub.s32 4294967266, %v2915
  %v2921 = vadd.s32 %v2920, 127
  %v2922 = vshll.u32 %v2921, 23
  %v2923 = vor.u32 4788187, %v2922
  %v2924 = vand.u32 2147483647, %v2923
  %v2926 = vcvt.s32.f32 %v2919
  %v2927 = vmul.f32 %v2926, %v2924
  %v2928 = vxor.u32 %v2927, 2147483648
  %v2929 = vsel %vm2846, %v2928, %v2927
  %v2930 = vsub.s32 4, %v2906
  %v2931 = vsel %vm2846, %v2930, %v2906
  %v2932 = vsel %vm2845, %v1164, %v2929
  %v2933 = vsel %vm2845, 0, %v2931
  %v2934 = vcosq.f32.pop %v2932
  %v2935 = vsinq.f32.pop %v2932
  %vm2936 = vweird.f32 %v1164
  %v2937 = vadd.s32 %v2933, 3
  %v2938 = vand.u32 %v2937, 3
  %vm2939 = vcmp.lt.s32.totalorder %v2938, 2
  %vm2940 = vcmp.eq.s32.totalorder %v2938, 0
  %v2941 = vxor.u32 %v2935, 2147483648
  %v2942 = vsel %vm2940, %v2934, %v2941
  %vm2943 = vcmp.eq.s32.totalorder %v2938, 2
  %v2944 = vxor.u32 %v2934, 2147483648
  %v2945 = vsel %vm2943, %v2944, %v2935
  %v2946 = vsel %vm2939, %v2942, %v2945
  %v2947 = vsel %vm2936, nan, %v2946
  %v2948 = vand.u32 2147483647, %v1165
  %vm2949 = vcmp.le.f32.partialorder %v2948, 0.7853982
  %vm2950 = vcmp.lt.s32.totalorder %v1165, 0
  %v2951 = vand.u32 %v1165, 2139095040
  %v2952 = vshrl.u32 %v2951, 23
  %v2953 = vsub.s32 %v2952, 127
  %v2954 = vand.u32 2147483647, %v1165
  %v2955 = vand.u32 %v2954, 8388607
  %v2956 = vor.u32 %v2955, 8388608
  %v2957 = vsub.s32 0, %v2956
  %v2958 = vadd.s32 %v2953, 1
  %vm2959 = vcmp.gt.s32.totalorder %v2958, 0
  %v2960 = vsel %vm2959, %v2958, 0
  %v2961 = vshrl.u32 %v2960, 5
  %v2962 = vand.u32 %v2960, 31
  %v2963 = vsub.s32 32, %v2962
  %v2964 = vshrl.u32 683565275, %v2963
  %v2965 = vshll.u32 683565275, %v2962
  %v2966 = vshrl.u32 2475754826, %v2963
  %v2967 = vor.u32 %v2965, %v2966
  %v2968 = vshll.u32 2475754826, %v2962
  %v2969 = vshrl.u32 2131351028, %v2963
  %v2970 = vor.u32 %v2968, %v2969
  %v2971 = vshll.u32 2131351028, %v2962
  %v2972 = vshrl.u32 2102212464, %v2963
  %v2973 = vor.u32 %v2971, %v2972
  %v2974 = vshll.u32 2102212464, %v2962
  %v2975 = vshrl.u32 920167782, %v2963
  %v2976 = vor.u32 %v2974, %v2975
  %v2977 = vshll.u32 920167782, %v2962
  %v2978 = vshrl.u32 1326507024, %v2963
  %v2979 = vor.u32 %v2977, %v2978
  %vm2980 = vcmp.lt.s32.totalorder %v2961, 1
  %vm2981 = vcmp.lt.s32.totalorder %v2961, 2
  %vm2982 = vcmp.lt.s32.totalorder %v2961, 3
  %vm2983 = vcmp.lt.s32.totalorder %v2961, 4
  %v2984 = vsel %vm2980, %v2964, %v2967
  %v2985 = vsel %vm2983, %v2973, 2102212464
  %v2986 = vsel %vm2982, %v2970, %v2985
  %v2987 = vsel %vm2981, %v2984, %v2986
  %v2988 = vsel %vm2980, %v2967, %v2970
  %v2989 = vsel %vm2983, %v2976, 920167782
  %v2990 = vsel %vm2982, %v2973, %v2989
  %v2991 = vsel %vm2981, %v2988, %v2990
  %v2992 = vsel %vm2980, %v2970, %v2973
  %v2993 = vsel %vm2983, %v2979, 1326507024
  %v2994 = vsel %vm2982, %v2976, %v2993
  %v2995 = vsel %vm2981, %v2992, %v2994
  %v2996 = vshll.u32 %v2956, 8
  %v2997 = vmul.u32.u64.compose %v2996, %v2995
  %v2998 = vextract.low.u32 %v2997
  %v2999 = vextract.high.u32 %v2997
  %v3000 = vmul.u32.u64.compose %v2996, %v2991
  %v3001 = vextract.low.u32 %v3000
  %v3002 = vextract.high.u32 %v3000
  %v3003 = vmul.u32 %v2996, %v2987
  %v3004 = vadd.s32 %v2999, %v3001
  %vm3005 = vc.u32 %v2999, %v3001
  %v3006 = vadd.s32 %v3002, 1
  %v3007 = vsel %vm3005, %v3006, %v3002
  %v3008 = vadd.s32 %v3003, %v3007
  %v3009 = vadd.s32 %v3008, 536870912
  %v3010 = vshrl.u32 %v3009, 30
  %v3011 = vshll.u32 %v3010, 30
  %v3012 = vsub.s32 %v3008, %v3011
  %vm3013 = vcmp.lt.s32.totalorder %v3012, 0
  %v3014 = vsub.s32 0, %v3012
  %v3015 = vsel %vm3013, %v3014, %v3012
  %v3016 = vclz %v3015
  %v3017 = vsub.s32 %v3016, 2
  %vm3018 = vcmp.gt.s32.totalorder 0, %v3017
  %v3019 = vsel %vm3018, 0, %v3017
  %v3020 = vsub.s32 32, %v3019
  %v3021 = vshll.u32 %v3012, %v3019
  %v3022 = vshrl.u32 %v3004, %v3020
  %v3023 = vor.u32 %v3021, %v3022
  %v3024 = vsub.s32 4294967266, %v3019
  %v3025 = vadd.s32 %v3024, 127
  %v3026 = vshll.u32 %v3025, 23
  %v3027 = vor.u32 4788187, %v3026
  %v3028 = vand.u32 2147483647, %v3027
  %v3030 = vcvt.s32.f32 %v3023
  %v3031 = vmul.f32 %v3030, %v3028
  %v3032 = vxor.u32 %v3031, 2147483648
  %v3033 = vsel %vm2950, %v3032, %v3031
  %v3034 = vsub.s32 4, %v3010
  %v3035 = vsel %vm2950, %v3034, %v3010
  %v3036 = vsel %vm2949, %v1165, %v3033
  %v3037 = vsel %vm2949, 0, %v3035
  %v3038 = vcosq.f32.pop %v3036
  %v3039 = vsinq.f32.pop %v3036
  %vm3040 = vweird.f32 %v1165
  %v3041 = vadd.s32 %v3037, 3
  %v3042 = vand.u32 %v3041, 3
  %vm3043 = vcmp.lt.s32.totalorder %v3042, 2
  %vm3044 = vcmp.eq.s32.totalorder %v3042, 0
  %v3045 = vxor.u32 %v3039, 2147483648
  %v3046 = vsel %vm3044, %v3038, %v3045
  %vm3047 = vcmp.eq.s32.totalorder %v3042, 2
  %v3048 = vxor.u32 %v3038, 2147483648
  %v3049 = vsel %vm3047, %v3048, %v3039
  %v3050 = vsel %vm3043, %v3046, %v3049
  %v3051 = vsel %vm3040, nan, %v3050
  %v3052 = vand.u32 2147483647, %v1166
  %vm3053 = vcmp.le.f32.partialorder %v3052, 0.7853982
  %vm3054 = vcmp.lt.s32.totalorder %v1166, 0
  %v3055 = vand.u32 %v1166, 2139095040
  %v3056 = vshrl.u32 %v3055, 23
  %v3057 = vsub.s32 %v3056, 127
  %v3058 = vand.u32 2147483647, %v1166
  %v3059 = vand.u32 %v3058, 8388607
  %v3060 = vor.u32 %v3059, 8388608
  %v3061 = vsub.s32 0, %v3060
  %v3062 = vadd.s32 %v3057, 1
  %vm3063 = vcmp.gt.s32.totalorder %v3062, 0
  %v3064 = vsel %vm3063, %v3062, 0
  %v3065 = vshrl.u32 %v3064, 5
  %v3066 = vand.u32 %v3064, 31
  %v3067 = vsub.s32 32, %v3066
  %v3068 = vshrl.u32 683565275, %v3067
  %v3069 = vshll.u32 683565275, %v3066
  %v3070 = vshrl.u32 2475754826, %v3067
  %v3071 = vor.u32 %v3069, %v3070
  %v3072 = vshll.u32 2475754826, %v3066
  %v3073 = vshrl.u32 2131351028, %v3067
  %v3074 = vor.u32 %v3072, %v3073
  %v3075 = vshll.u32 2131351028, %v3066
  %v3076 = vshrl.u32 2102212464, %v3067
  %v3077 = vor.u32 %v3075, %v3076
  %v3078 = vshll.u32 2102212464, %v3066
  %v3079 = vshrl.u32 920167782, %v3067
  %v3080 = vor.u32 %v3078, %v3079
  %v3081 = vshll.u32 920167782, %v3066
  %v3082 = vshrl.u32 1326507024, %v3067
  %v3083 = vor.u32 %v3081, %v3082
  %vm3084 = vcmp.lt.s32.totalorder %v3065, 1
  %vm3085 = vcmp.lt.s32.totalorder %v3065, 2
  %vm3086 = vcmp.lt.s32.totalorder %v3065, 3
  %vm3087 = vcmp.lt.s32.totalorder %v3065, 4
  %v3088 = vsel %vm3084, %v3068, %v3071
  %v3089 = vsel %vm3087, %v3077, 2102212464
  %v3090 = vsel %vm3086, %v3074, %v3089
  %v3091 = vsel %vm3085, %v3088, %v3090
  %v3092 = vsel %vm3084, %v3071, %v3074
  %v3093 = vsel %vm3087, %v3080, 920167782
  %v3094 = vsel %vm3086, %v3077, %v3093
  %v3095 = vsel %vm3085, %v3092, %v3094
  %v3096 = vsel %vm3084, %v3074, %v3077
  %v3097 = vsel %vm3087, %v3083, 1326507024
  %v3098 = vsel %vm3086, %v3080, %v3097
  %v3099 = vsel %vm3085, %v3096, %v3098
  %v3100 = vshll.u32 %v3060, 8
  %v3101 = vmul.u32.u64.compose %v3100, %v3099
  %v3102 = vextract.low.u32 %v3101
  %v3103 = vextract.high.u32 %v3101
  %v3104 = vmul.u32.u64.compose %v3100, %v3095
  %v3105 = vextract.low.u32 %v3104
  %v3106 = vextract.high.u32 %v3104
  %v3107 = vmul.u32 %v3100, %v3091
  %v3108 = vadd.s32 %v3103, %v3105
  %vm3109 = vc.u32 %v3103, %v3105
  %v3110 = vadd.s32 %v3106, 1
  %v3111 = vsel %vm3109, %v3110, %v3106
  %v3112 = vadd.s32 %v3107, %v3111
  %v3113 = vadd.s32 %v3112, 536870912
  %v3114 = vshrl.u32 %v3113, 30
  %v3115 = vshll.u32 %v3114, 30
  %v3116 = vsub.s32 %v3112, %v3115
  %vm3117 = vcmp.lt.s32.totalorder %v3116, 0
  %v3118 = vsub.s32 0, %v3116
  %v3119 = vsel %vm3117, %v3118, %v3116
  %v3120 = vclz %v3119
  %v3121 = vsub.s32 %v3120, 2
  %vm3122 = vcmp.gt.s32.totalorder 0, %v3121
  %v3123 = vsel %vm3122, 0, %v3121
  %v3124 = vsub.s32 32, %v3123
  %v3125 = vshll.u32 %v3116, %v3123
  %v3126 = vshrl.u32 %v3108, %v3124
  %v3127 = vor.u32 %v3125, %v3126
  %v3128 = vsub.s32 4294967266, %v3123
  %v3129 = vadd.s32 %v3128, 127
  %v3130 = vshll.u32 %v3129, 23
  %v3131 = vor.u32 4788187, %v3130
  %v3132 = vand.u32 2147483647, %v3131
  %v3134 = vcvt.s32.f32 %v3127
  %v3135 = vmul.f32 %v3134, %v3132
  %v3136 = vxor.u32 %v3135, 2147483648
  %v3137 = vsel %vm3054, %v3136, %v3135
  %v3138 = vsub.s32 4, %v3114
  %v3139 = vsel %vm3054, %v3138, %v3114
  %v3140 = vsel %vm3053, %v1166, %v3137
  %v3141 = vsel %vm3053, 0, %v3139
  %v3142 = vcosq.f32.pop %v3140
  %v3143 = vsinq.f32.pop %v3140
  %vm3144 = vweird.f32 %v1166
  %v3145 = vadd.s32 %v3141, 3
  %v3146 = vand.u32 %v3145, 3
  %vm3147 = vcmp.lt.s32.totalorder %v3146, 2
  %vm3148 = vcmp.eq.s32.totalorder %v3146, 0
  %v3149 = vxor.u32 %v3143, 2147483648
  %v3150 = vsel %vm3148, %v3142, %v3149
  %vm3151 = vcmp.eq.s32.totalorder %v3146, 2
  %v3152 = vxor.u32 %v3142, 2147483648
  %v3153 = vsel %vm3151, %v3152, %v3143
  %v3154 = vsel %vm3147, %v3150, %v3153
  %v3155 = vsel %vm3144, nan, %v3154
  %v3156 = vand.u32 2147483647, %v1167
  %vm3157 = vcmp.le.f32.partialorder %v3156, 0.7853982
  %vm3158 = vcmp.lt.s32.totalorder %v1167, 0
  %v3159 = vand.u32 %v1167, 2139095040
  %v3160 = vshrl.u32 %v3159, 23
  %v3161 = vsub.s32 %v3160, 127
  %v3162 = vand.u32 2147483647, %v1167
  %v3163 = vand.u32 %v3162, 8388607
  %v3164 = vor.u32 %v3163, 8388608
  %v3165 = vsub.s32 0, %v3164
  %v3166 = vadd.s32 %v3161, 1
  %vm3167 = vcmp.gt.s32.totalorder %v3166, 0
  %v3168 = vsel %vm3167, %v3166, 0
  %v3169 = vshrl.u32 %v3168, 5
  %v3170 = vand.u32 %v3168, 31
  %v3171 = vsub.s32 32, %v3170
  %v3172 = vshrl.u32 683565275, %v3171
  %v3173 = vshll.u32 683565275, %v3170
  %v3174 = vshrl.u32 2475754826, %v3171
  %v3175 = vor.u32 %v3173, %v3174
  %v3176 = vshll.u32 2475754826, %v3170
  %v3177 = vshrl.u32 2131351028, %v3171
  %v3178 = vor.u32 %v3176, %v3177
  %v3179 = vshll.u32 2131351028, %v3170
  %v3180 = vshrl.u32 2102212464, %v3171
  %v3181 = vor.u32 %v3179, %v3180
  %v3182 = vshll.u32 2102212464, %v3170
  %v3183 = vshrl.u32 920167782, %v3171
  %v3184 = vor.u32 %v3182, %v3183
  %v3185 = vshll.u32 920167782, %v3170
  %v3186 = vshrl.u32 1326507024, %v3171
  %v3187 = vor.u32 %v3185, %v3186
  %vm3188 = vcmp.lt.s32.totalorder %v3169, 1
  %vm3189 = vcmp.lt.s32.totalorder %v3169, 2
  %vm3190 = vcmp.lt.s32.totalorder %v3169, 3
  %vm3191 = vcmp.lt.s32.totalorder %v3169, 4
  %v3192 = vsel %vm3188, %v3172, %v3175
  %v3193 = vsel %vm3191, %v3181, 2102212464
  %v3194 = vsel %vm3190, %v3178, %v3193
  %v3195 = vsel %vm3189, %v3192, %v3194
  %v3196 = vsel %vm3188, %v3175, %v3178
  %v3197 = vsel %vm3191, %v3184, 920167782
  %v3198 = vsel %vm3190, %v3181, %v3197
  %v3199 = vsel %vm3189, %v3196, %v3198
  %v3200 = vsel %vm3188, %v3178, %v3181
  %v3201 = vsel %vm3191, %v3187, 1326507024
  %v3202 = vsel %vm3190, %v3184, %v3201
  %v3203 = vsel %vm3189, %v3200, %v3202
  %v3204 = vshll.u32 %v3164, 8
  %v3205 = vmul.u32.u64.compose %v3204, %v3203
  %v3206 = vextract.low.u32 %v3205
  %v3207 = vextract.high.u32 %v3205
  %v3208 = vmul.u32.u64.compose %v3204, %v3199
  %v3209 = vextract.low.u32 %v3208
  %v3210 = vextract.high.u32 %v3208
  %v3211 = vmul.u32 %v3204, %v3195
  %v3212 = vadd.s32 %v3207, %v3209
  %vm3213 = vc.u32 %v3207, %v3209
  %v3214 = vadd.s32 %v3210, 1
  %v3215 = vsel %vm3213, %v3214, %v3210
  %v3216 = vadd.s32 %v3211, %v3215
  %v3217 = vadd.s32 %v3216, 536870912
  %v3218 = vshrl.u32 %v3217, 30
  %v3219 = vshll.u32 %v3218, 30
  %v3220 = vsub.s32 %v3216, %v3219
  %vm3221 = vcmp.lt.s32.totalorder %v3220, 0
  %v3222 = vsub.s32 0, %v3220
  %v3223 = vsel %vm3221, %v3222, %v3220
  %v3224 = vclz %v3223
  %v3225 = vsub.s32 %v3224, 2
  %vm3226 = vcmp.gt.s32.totalorder 0, %v3225
  %v3227 = vsel %vm3226, 0, %v3225
  %v3228 = vsub.s32 32, %v3227
  %v3229 = vshll.u32 %v3220, %v3227
  %v3230 = vshrl.u32 %v3212, %v3228
  %v3231 = vor.u32 %v3229, %v3230
  %v3232 = vsub.s32 4294967266, %v3227
  %v3233 = vadd.s32 %v3232, 127
  %v3234 = vshll.u32 %v3233, 23
  %v3235 = vor.u32 4788187, %v3234
  %v3236 = vand.u32 2147483647, %v3235
  %v3238 = vcvt.s32.f32 %v3231
  %v3239 = vmul.f32 %v3238, %v3236
  %v3240 = vxor.u32 %v3239, 2147483648
  %v3241 = vsel %vm3158, %v3240, %v3239
  %v3242 = vsub.s32 4, %v3218
  %v3243 = vsel %vm3158, %v3242, %v3218
  %v3244 = vsel %vm3157, %v1167, %v3241
  %v3245 = vsel %vm3157, 0, %v3243
  %v3246 = vcosq.f32.pop %v3244
  %v3247 = vsinq.f32.pop %v3244
  %vm3248 = vweird.f32 %v1167
  %v3249 = vadd.s32 %v3245, 3
  %v3250 = vand.u32 %v3249, 3
  %vm3251 = vcmp.lt.s32.totalorder %v3250, 2
  %vm3252 = vcmp.eq.s32.totalorder %v3250, 0
  %v3253 = vxor.u32 %v3247, 2147483648
  %v3254 = vsel %vm3252, %v3246, %v3253
  %vm3255 = vcmp.eq.s32.totalorder %v3250, 2
  %v3256 = vxor.u32 %v3246, 2147483648
  %v3257 = vsel %vm3255, %v3256, %v3247
  %v3258 = vsel %vm3251, %v3254, %v3257
  %v3259 = vsel %vm3248, nan, %v3258
  %v3260 = vand.u32 2147483647, %v1168
  %vm3261 = vcmp.le.f32.partialorder %v3260, 0.7853982
  %vm3262 = vcmp.lt.s32.totalorder %v1168, 0
  %v3263 = vand.u32 %v1168, 2139095040
  %v3264 = vshrl.u32 %v3263, 23
  %v3265 = vsub.s32 %v3264, 127
  %v3266 = vand.u32 2147483647, %v1168
  %v3267 = vand.u32 %v3266, 8388607
  %v3268 = vor.u32 %v3267, 8388608
  %v3269 = vsub.s32 0, %v3268
  %v3270 = vadd.s32 %v3265, 1
  %vm3271 = vcmp.gt.s32.totalorder %v3270, 0
  %v3272 = vsel %vm3271, %v3270, 0
  %v3273 = vshrl.u32 %v3272, 5
  %v3274 = vand.u32 %v3272, 31
  %v3275 = vsub.s32 32, %v3274
  %v3276 = vshrl.u32 683565275, %v3275
  %v3277 = vshll.u32 683565275, %v3274
  %v3278 = vshrl.u32 2475754826, %v3275
  %v3279 = vor.u32 %v3277, %v3278
  %v3280 = vshll.u32 2475754826, %v3274
  %v3281 = vshrl.u32 2131351028, %v3275
  %v3282 = vor.u32 %v3280, %v3281
  %v3283 = vshll.u32 2131351028, %v3274
  %v3284 = vshrl.u32 2102212464, %v3275
  %v3285 = vor.u32 %v3283, %v3284
  %v3286 = vshll.u32 2102212464, %v3274
  %v3287 = vshrl.u32 920167782, %v3275
  %v3288 = vor.u32 %v3286, %v3287
  %v3289 = vshll.u32 920167782, %v3274
  %v3290 = vshrl.u32 1326507024, %v3275
  %v3291 = vor.u32 %v3289, %v3290
  %vm3292 = vcmp.lt.s32.totalorder %v3273, 1
  %vm3293 = vcmp.lt.s32.totalorder %v3273, 2
  %vm3294 = vcmp.lt.s32.totalorder %v3273, 3
  %vm3295 = vcmp.lt.s32.totalorder %v3273, 4
  %v3296 = vsel %vm3292, %v3276, %v3279
  %v3297 = vsel %vm3295, %v3285, 2102212464
  %v3298 = vsel %vm3294, %v3282, %v3297
  %v3299 = vsel %vm3293, %v3296, %v3298
  %v3300 = vsel %vm3292, %v3279, %v3282
  %v3301 = vsel %vm3295, %v3288, 920167782
  %v3302 = vsel %vm3294, %v3285, %v3301
  %v3303 = vsel %vm3293, %v3300, %v3302
  %v3304 = vsel %vm3292, %v3282, %v3285
  %v3305 = vsel %vm3295, %v3291, 1326507024
  %v3306 = vsel %vm3294, %v3288, %v3305
  %v3307 = vsel %vm3293, %v3304, %v3306
  %v3308 = vshll.u32 %v3268, 8
  %v3309 = vmul.u32.u64.compose %v3308, %v3307
  %v3310 = vextract.low.u32 %v3309
  %v3311 = vextract.high.u32 %v3309
  %v3312 = vmul.u32.u64.compose %v3308, %v3303
  %v3313 = vextract.low.u32 %v3312
  %v3314 = vextract.high.u32 %v3312
  %v3315 = vmul.u32 %v3308, %v3299
  %v3316 = vadd.s32 %v3311, %v3313
  %vm3317 = vc.u32 %v3311, %v3313
  %v3318 = vadd.s32 %v3314, 1
  %v3319 = vsel %vm3317, %v3318, %v3314
  %v3320 = vadd.s32 %v3315, %v3319
  %v3321 = vadd.s32 %v3320, 536870912
  %v3322 = vshrl.u32 %v3321, 30
  %v3323 = vshll.u32 %v3322, 30
  %v3324 = vsub.s32 %v3320, %v3323
  %vm3325 = vcmp.lt.s32.totalorder %v3324, 0
  %v3326 = vsub.s32 0, %v3324
  %v3327 = vsel %vm3325, %v3326, %v3324
  %v3328 = vclz %v3327
  %v3329 = vsub.s32 %v3328, 2
  %vm3330 = vcmp.gt.s32.totalorder 0, %v3329
  %v3331 = vsel %vm3330, 0, %v3329
  %v3332 = vsub.s32 32, %v3331
  %v3333 = vshll.u32 %v3324, %v3331
  %v3334 = vshrl.u32 %v3316, %v3332
  %v3335 = vor.u32 %v3333, %v3334
  %v3336 = vsub.s32 4294967266, %v3331
  %v3337 = vadd.s32 %v3336, 127
  %v3338 = vshll.u32 %v3337, 23
  %v3339 = vor.u32 4788187, %v3338
  %v3340 = vand.u32 2147483647, %v3339
  %v3342 = vcvt.s32.f32 %v3335
  %v3343 = vmul.f32 %v3342, %v3340
  %v3344 = vxor.u32 %v3343, 2147483648
  %v3345 = vsel %vm3262, %v3344, %v3343
  %v3346 = vsub.s32 4, %v3322
  %v3347 = vsel %vm3262, %v3346, %v3322
  %v3348 = vsel %vm3261, %v1168, %v3345
  %v3349 = vsel %vm3261, 0, %v3347
  %v3350 = vcosq.f32.pop %v3348
  %v3351 = vsinq.f32.pop %v3348
  %vm3352 = vweird.f32 %v1168
  %v3353 = vadd.s32 %v3349, 3
  %v3354 = vand.u32 %v3353, 3
  %vm3355 = vcmp.lt.s32.totalorder %v3354, 2
  %vm3356 = vcmp.eq.s32.totalorder %v3354, 0
  %v3357 = vxor.u32 %v3351, 2147483648
  %v3358 = vsel %vm3356, %v3350, %v3357
  %vm3359 = vcmp.eq.s32.totalorder %v3354, 2
  %v3360 = vxor.u32 %v3350, 2147483648
  %v3361 = vsel %vm3359, %v3360, %v3351
  %v3362 = vsel %vm3355, %v3358, %v3361
  %v3363 = vsel %vm3352, nan, %v3362
  %v3364 = vand.u32 2147483647, %v1169
  %vm3365 = vcmp.le.f32.partialorder %v3364, 0.7853982
  %vm3366 = vcmp.lt.s32.totalorder %v1169, 0
  %v3367 = vand.u32 %v1169, 2139095040
  %v3368 = vshrl.u32 %v3367, 23
  %v3369 = vsub.s32 %v3368, 127
  %v3370 = vand.u32 2147483647, %v1169
  %v3371 = vand.u32 %v3370, 8388607
  %v3372 = vor.u32 %v3371, 8388608
  %v3373 = vsub.s32 0, %v3372
  %v3374 = vadd.s32 %v3369, 1
  %vm3375 = vcmp.gt.s32.totalorder %v3374, 0
  %v3376 = vsel %vm3375, %v3374, 0
  %v3377 = vshrl.u32 %v3376, 5
  %v3378 = vand.u32 %v3376, 31
  %v3379 = vsub.s32 32, %v3378
  %v3380 = vshrl.u32 683565275, %v3379
  %v3381 = vshll.u32 683565275, %v3378
  %v3382 = vshrl.u32 2475754826, %v3379
  %v3383 = vor.u32 %v3381, %v3382
  %v3384 = vshll.u32 2475754826, %v3378
  %v3385 = vshrl.u32 2131351028, %v3379
  %v3386 = vor.u32 %v3384, %v3385
  %v3387 = vshll.u32 2131351028, %v3378
  %v3388 = vshrl.u32 2102212464, %v3379
  %v3389 = vor.u32 %v3387, %v3388
  %v3390 = vshll.u32 2102212464, %v3378
  %v3391 = vshrl.u32 920167782, %v3379
  %v3392 = vor.u32 %v3390, %v3391
  %v3393 = vshll.u32 920167782, %v3378
  %v3394 = vshrl.u32 1326507024, %v3379
  %v3395 = vor.u32 %v3393, %v3394
  %vm3396 = vcmp.lt.s32.totalorder %v3377, 1
  %vm3397 = vcmp.lt.s32.totalorder %v3377, 2
  %vm3398 = vcmp.lt.s32.totalorder %v3377, 3
  %vm3399 = vcmp.lt.s32.totalorder %v3377, 4
  %v3400 = vsel %vm3396, %v3380, %v3383
  %v3401 = vsel %vm3399, %v3389, 2102212464
  %v3402 = vsel %vm3398, %v3386, %v3401
  %v3403 = vsel %vm3397, %v3400, %v3402
  %v3404 = vsel %vm3396, %v3383, %v3386
  %v3405 = vsel %vm3399, %v3392, 920167782
  %v3406 = vsel %vm3398, %v3389, %v3405
  %v3407 = vsel %vm3397, %v3404, %v3406
  %v3408 = vsel %vm3396, %v3386, %v3389
  %v3409 = vsel %vm3399, %v3395, 1326507024
  %v3410 = vsel %vm3398, %v3392, %v3409
  %v3411 = vsel %vm3397, %v3408, %v3410
  %v3412 = vshll.u32 %v3372, 8
  %v3413 = vmul.u32.u64.compose %v3412, %v3411
  %v3414 = vextract.low.u32 %v3413
  %v3415 = vextract.high.u32 %v3413
  %v3416 = vmul.u32.u64.compose %v3412, %v3407
  %v3417 = vextract.low.u32 %v3416
  %v3418 = vextract.high.u32 %v3416
  %v3419 = vmul.u32 %v3412, %v3403
  %v3420 = vadd.s32 %v3415, %v3417
  %vm3421 = vc.u32 %v3415, %v3417
  %v3422 = vadd.s32 %v3418, 1
  %v3423 = vsel %vm3421, %v3422, %v3418
  %v3424 = vadd.s32 %v3419, %v3423
  %v3425 = vadd.s32 %v3424, 536870912
  %v3426 = vshrl.u32 %v3425, 30
  %v3427 = vshll.u32 %v3426, 30
  %v3428 = vsub.s32 %v3424, %v3427
  %vm3429 = vcmp.lt.s32.totalorder %v3428, 0
  %v3430 = vsub.s32 0, %v3428
  %v3431 = vsel %vm3429, %v3430, %v3428
  %v3432 = vclz %v3431
  %v3433 = vsub.s32 %v3432, 2
  %vm3434 = vcmp.gt.s32.totalorder 0, %v3433
  %v3435 = vsel %vm3434, 0, %v3433
  %v3436 = vsub.s32 32, %v3435
  %v3437 = vshll.u32 %v3428, %v3435
  %v3438 = vshrl.u32 %v3420, %v3436
  %v3439 = vor.u32 %v3437, %v3438
  %v3440 = vsub.s32 4294967266, %v3435
  %v3441 = vadd.s32 %v3440, 127
  %v3442 = vshll.u32 %v3441, 23
  %v3443 = vor.u32 4788187, %v3442
  %v3444 = vand.u32 2147483647, %v3443
  %v3446 = vcvt.s32.f32 %v3439
  %v3447 = vmul.f32 %v3446, %v3444
  %v3448 = vxor.u32 %v3447, 2147483648
  %v3449 = vsel %vm3366, %v3448, %v3447
  %v3450 = vsub.s32 4, %v3426
  %v3451 = vsel %vm3366, %v3450, %v3426
  %v3452 = vsel %vm3365, %v1169, %v3449
  %v3453 = vsel %vm3365, 0, %v3451
  %v3454 = vcosq.f32.pop %v3452
  %v3455 = vsinq.f32.pop %v3452
  %vm3456 = vweird.f32 %v1169
  %v3457 = vadd.s32 %v3453, 3
  %v3458 = vand.u32 %v3457, 3
  %vm3459 = vcmp.lt.s32.totalorder %v3458, 2
  %vm3460 = vcmp.eq.s32.totalorder %v3458, 0
  %v3461 = vxor.u32 %v3455, 2147483648
  %v3462 = vsel %vm3460, %v3454, %v3461
  %vm3463 = vcmp.eq.s32.totalorder %v3458, 2
  %v3464 = vxor.u32 %v3454, 2147483648
  %v3465 = vsel %vm3463, %v3464, %v3455
  %v3466 = vsel %vm3459, %v3462, %v3465
  %v3467 = vsel %vm3456, nan, %v3466
  %v3468 = vand.u32 2147483647, %v1170
  %vm3469 = vcmp.le.f32.partialorder %v3468, 0.7853982
  %vm3470 = vcmp.lt.s32.totalorder %v1170, 0
  %v3471 = vand.u32 %v1170, 2139095040
  %v3472 = vshrl.u32 %v3471, 23
  %v3473 = vsub.s32 %v3472, 127
  %v3474 = vand.u32 2147483647, %v1170
  %v3475 = vand.u32 %v3474, 8388607
  %v3476 = vor.u32 %v3475, 8388608
  %v3477 = vsub.s32 0, %v3476
  %v3478 = vadd.s32 %v3473, 1
  %vm3479 = vcmp.gt.s32.totalorder %v3478, 0
  %v3480 = vsel %vm3479, %v3478, 0
  %v3481 = vshrl.u32 %v3480, 5
  %v3482 = vand.u32 %v3480, 31
  %v3483 = vsub.s32 32, %v3482
  %v3484 = vshrl.u32 683565275, %v3483
  %v3485 = vshll.u32 683565275, %v3482
  %v3486 = vshrl.u32 2475754826, %v3483
  %v3487 = vor.u32 %v3485, %v3486
  %v3488 = vshll.u32 2475754826, %v3482
  %v3489 = vshrl.u32 2131351028, %v3483
  %v3490 = vor.u32 %v3488, %v3489
  %v3491 = vshll.u32 2131351028, %v3482
  %v3492 = vshrl.u32 2102212464, %v3483
  %v3493 = vor.u32 %v3491, %v3492
  %v3494 = vshll.u32 2102212464, %v3482
  %v3495 = vshrl.u32 920167782, %v3483
  %v3496 = vor.u32 %v3494, %v3495
  %v3497 = vshll.u32 920167782, %v3482
  %v3498 = vshrl.u32 1326507024, %v3483
  %v3499 = vor.u32 %v3497, %v3498
  %vm3500 = vcmp.lt.s32.totalorder %v3481, 1
  %vm3501 = vcmp.lt.s32.totalorder %v3481, 2
  %vm3502 = vcmp.lt.s32.totalorder %v3481, 3
  %vm3503 = vcmp.lt.s32.totalorder %v3481, 4
  %v3504 = vsel %vm3500, %v3484, %v3487
  %v3505 = vsel %vm3503, %v3493, 2102212464
  %v3506 = vsel %vm3502, %v3490, %v3505
  %v3507 = vsel %vm3501, %v3504, %v3506
  %v3508 = vsel %vm3500, %v3487, %v3490
  %v3509 = vsel %vm3503, %v3496, 920167782
  %v3510 = vsel %vm3502, %v3493, %v3509
  %v3511 = vsel %vm3501, %v3508, %v3510
  %v3512 = vsel %vm3500, %v3490, %v3493
  %v3513 = vsel %vm3503, %v3499, 1326507024
  %v3514 = vsel %vm3502, %v3496, %v3513
  %v3515 = vsel %vm3501, %v3512, %v3514
  %v3516 = vshll.u32 %v3476, 8
  %v3517 = vmul.u32.u64.compose %v3516, %v3515
  %v3518 = vextract.low.u32 %v3517
  %v3519 = vextract.high.u32 %v3517
  %v3520 = vmul.u32.u64.compose %v3516, %v3511
  %v3521 = vextract.low.u32 %v3520
  %v3522 = vextract.high.u32 %v3520
  %v3523 = vmul.u32 %v3516, %v3507
  %v3524 = vadd.s32 %v3519, %v3521
  %vm3525 = vc.u32 %v3519, %v3521
  %v3526 = vadd.s32 %v3522, 1
  %v3527 = vsel %vm3525, %v3526, %v3522
  %v3528 = vadd.s32 %v3523, %v3527
  %v3529 = vadd.s32 %v3528, 536870912
  %v3530 = vshrl.u32 %v3529, 30
  %v3531 = vshll.u32 %v3530, 30
  %v3532 = vsub.s32 %v3528, %v3531
  %vm3533 = vcmp.lt.s32.totalorder %v3532, 0
  %v3534 = vsub.s32 0, %v3532
  %v3535 = vsel %vm3533, %v3534, %v3532
  %v3536 = vclz %v3535
  %v3537 = vsub.s32 %v3536, 2
  %vm3538 = vcmp.gt.s32.totalorder 0, %v3537
  %v3539 = vsel %vm3538, 0, %v3537
  %v3540 = vsub.s32 32, %v3539
  %v3541 = vshll.u32 %v3532, %v3539
  %v3542 = vshrl.u32 %v3524, %v3540
  %v3543 = vor.u32 %v3541, %v3542
  %v3544 = vsub.s32 4294967266, %v3539
  %v3545 = vadd.s32 %v3544, 127
  %v3546 = vshll.u32 %v3545, 23
  %v3547 = vor.u32 4788187, %v3546
  %v3548 = vand.u32 2147483647, %v3547
  %v3550 = vcvt.s32.f32 %v3543
  %v3551 = vmul.f32 %v3550, %v3548
  %v3552 = vxor.u32 %v3551, 2147483648
  %v3553 = vsel %vm3470, %v3552, %v3551
  %v3554 = vsub.s32 4, %v3530
  %v3555 = vsel %vm3470, %v3554, %v3530
  %v3556 = vsel %vm3469, %v1170, %v3553
  %v3557 = vsel %vm3469, 0, %v3555
  %v3558 = vcosq.f32.pop %v3556
  %v3559 = vsinq.f32.pop %v3556
  %vm3560 = vweird.f32 %v1170
  %v3561 = vadd.s32 %v3557, 3
  %v3562 = vand.u32 %v3561, 3
  %vm3563 = vcmp.lt.s32.totalorder %v3562, 2
  %vm3564 = vcmp.eq.s32.totalorder %v3562, 0
  %v3565 = vxor.u32 %v3559, 2147483648
  %v3566 = vsel %vm3564, %v3558, %v3565
  %vm3567 = vcmp.eq.s32.totalorder %v3562, 2
  %v3568 = vxor.u32 %v3558, 2147483648
  %v3569 = vsel %vm3567, %v3568, %v3559
  %v3570 = vsel %vm3563, %v3566, %v3569
  %v3571 = vsel %vm3560, nan, %v3570
  %v3572 = vand.u32 2147483647, %v1171
  %vm3573 = vcmp.le.f32.partialorder %v3572, 0.7853982
  %vm3574 = vcmp.lt.s32.totalorder %v1171, 0
  %v3575 = vand.u32 %v1171, 2139095040
  %v3576 = vshrl.u32 %v3575, 23
  %v3577 = vsub.s32 %v3576, 127
  %v3578 = vand.u32 2147483647, %v1171
  %v3579 = vand.u32 %v3578, 8388607
  %v3580 = vor.u32 %v3579, 8388608
  %v3581 = vsub.s32 0, %v3580
  %v3582 = vadd.s32 %v3577, 1
  %vm3583 = vcmp.gt.s32.totalorder %v3582, 0
  %v3584 = vsel %vm3583, %v3582, 0
  %v3585 = vshrl.u32 %v3584, 5
  %v3586 = vand.u32 %v3584, 31
  %v3587 = vsub.s32 32, %v3586
  %v3588 = vshrl.u32 683565275, %v3587
  %v3589 = vshll.u32 683565275, %v3586
  %v3590 = vshrl.u32 2475754826, %v3587
  %v3591 = vor.u32 %v3589, %v3590
  %v3592 = vshll.u32 2475754826, %v3586
  %v3593 = vshrl.u32 2131351028, %v3587
  %v3594 = vor.u32 %v3592, %v3593
  %v3595 = vshll.u32 2131351028, %v3586
  %v3596 = vshrl.u32 2102212464, %v3587
  %v3597 = vor.u32 %v3595, %v3596
  %v3598 = vshll.u32 2102212464, %v3586
  %v3599 = vshrl.u32 920167782, %v3587
  %v3600 = vor.u32 %v3598, %v3599
  %v3601 = vshll.u32 920167782, %v3586
  %v3602 = vshrl.u32 1326507024, %v3587
  %v3603 = vor.u32 %v3601, %v3602
  %vm3604 = vcmp.lt.s32.totalorder %v3585, 1
  %vm3605 = vcmp.lt.s32.totalorder %v3585, 2
  %vm3606 = vcmp.lt.s32.totalorder %v3585, 3
  %vm3607 = vcmp.lt.s32.totalorder %v3585, 4
  %v3608 = vsel %vm3604, %v3588, %v3591
  %v3609 = vsel %vm3607, %v3597, 2102212464
  %v3610 = vsel %vm3606, %v3594, %v3609
  %v3611 = vsel %vm3605, %v3608, %v3610
  %v3612 = vsel %vm3604, %v3591, %v3594
  %v3613 = vsel %vm3607, %v3600, 920167782
  %v3614 = vsel %vm3606, %v3597, %v3613
  %v3615 = vsel %vm3605, %v3612, %v3614
  %v3616 = vsel %vm3604, %v3594, %v3597
  %v3617 = vsel %vm3607, %v3603, 1326507024
  %v3618 = vsel %vm3606, %v3600, %v3617
  %v3619 = vsel %vm3605, %v3616, %v3618
  %v3620 = vshll.u32 %v3580, 8
  %v3621 = vmul.u32.u64.compose %v3620, %v3619
  %v3622 = vextract.low.u32 %v3621
  %v3623 = vextract.high.u32 %v3621
  %v3624 = vmul.u32.u64.compose %v3620, %v3615
  %v3625 = vextract.low.u32 %v3624
  %v3626 = vextract.high.u32 %v3624
  %v3627 = vmul.u32 %v3620, %v3611
  %v3628 = vadd.s32 %v3623, %v3625
  %vm3629 = vc.u32 %v3623, %v3625
  %v3630 = vadd.s32 %v3626, 1
  %v3631 = vsel %vm3629, %v3630, %v3626
  %v3632 = vadd.s32 %v3627, %v3631
  %v3633 = vadd.s32 %v3632, 536870912
  %v3634 = vshrl.u32 %v3633, 30
  %v3635 = vshll.u32 %v3634, 30
  %v3636 = vsub.s32 %v3632, %v3635
  %vm3637 = vcmp.lt.s32.totalorder %v3636, 0
  %v3638 = vsub.s32 0, %v3636
  %v3639 = vsel %vm3637, %v3638, %v3636
  %v3640 = vclz %v3639
  %v3641 = vsub.s32 %v3640, 2
  %vm3642 = vcmp.gt.s32.totalorder 0, %v3641
  %v3643 = vsel %vm3642, 0, %v3641
  %v3644 = vsub.s32 32, %v3643
  %v3645 = vshll.u32 %v3636, %v3643
  %v3646 = vshrl.u32 %v3628, %v3644
  %v3647 = vor.u32 %v3645, %v3646
  %v3648 = vsub.s32 4294967266, %v3643
  %v3649 = vadd.s32 %v3648, 127
  %v3650 = vshll.u32 %v3649, 23
  %v3651 = vor.u32 4788187, %v3650
  %v3652 = vand.u32 2147483647, %v3651
  %v3654 = vcvt.s32.f32 %v3647
  %v3655 = vmul.f32 %v3654, %v3652
  %v3656 = vxor.u32 %v3655, 2147483648
  %v3657 = vsel %vm3574, %v3656, %v3655
  %v3658 = vsub.s32 4, %v3634
  %v3659 = vsel %vm3574, %v3658, %v3634
  %v3660 = vsel %vm3573, %v1171, %v3657
  %v3661 = vsel %vm3573, 0, %v3659
  %v3662 = vcosq.f32.pop %v3660
  %v3663 = vsinq.f32.pop %v3660
  %vm3664 = vweird.f32 %v1171
  %v3665 = vadd.s32 %v3661, 3
  %v3666 = vand.u32 %v3665, 3
  %vm3667 = vcmp.lt.s32.totalorder %v3666, 2
  %vm3668 = vcmp.eq.s32.totalorder %v3666, 0
  %v3669 = vxor.u32 %v3663, 2147483648
  %v3670 = vsel %vm3668, %v3662, %v3669
  %vm3671 = vcmp.eq.s32.totalorder %v3666, 2
  %v3672 = vxor.u32 %v3662, 2147483648
  %v3673 = vsel %vm3671, %v3672, %v3663
  %v3674 = vsel %vm3667, %v3670, %v3673
  %v3675 = vsel %vm3664, nan, %v3674
  %v3676 = vand.u32 2147483647, %v1172
  %vm3677 = vcmp.le.f32.partialorder %v3676, 0.7853982
  %vm3678 = vcmp.lt.s32.totalorder %v1172, 0
  %v3679 = vand.u32 %v1172, 2139095040
  %v3680 = vshrl.u32 %v3679, 23
  %v3681 = vsub.s32 %v3680, 127
  %v3682 = vand.u32 2147483647, %v1172
  %v3683 = vand.u32 %v3682, 8388607
  %v3684 = vor.u32 %v3683, 8388608
  %v3685 = vsub.s32 0, %v3684
  %v3686 = vadd.s32 %v3681, 1
  %vm3687 = vcmp.gt.s32.totalorder %v3686, 0
  %v3688 = vsel %vm3687, %v3686, 0
  %v3689 = vshrl.u32 %v3688, 5
  %v3690 = vand.u32 %v3688, 31
  %v3691 = vsub.s32 32, %v3690
  %v3692 = vshrl.u32 683565275, %v3691
  %v3693 = vshll.u32 683565275, %v3690
  %v3694 = vshrl.u32 2475754826, %v3691
  %v3695 = vor.u32 %v3693, %v3694
  %v3696 = vshll.u32 2475754826, %v3690
  %v3697 = vshrl.u32 2131351028, %v3691
  %v3698 = vor.u32 %v3696, %v3697
  %v3699 = vshll.u32 2131351028, %v3690
  %v3700 = vshrl.u32 2102212464, %v3691
  %v3701 = vor.u32 %v3699, %v3700
  %v3702 = vshll.u32 2102212464, %v3690
  %v3703 = vshrl.u32 920167782, %v3691
  %v3704 = vor.u32 %v3702, %v3703
  %v3705 = vshll.u32 920167782, %v3690
  %v3706 = vshrl.u32 1326507024, %v3691
  %v3707 = vor.u32 %v3705, %v3706
  %vm3708 = vcmp.lt.s32.totalorder %v3689, 1
  %vm3709 = vcmp.lt.s32.totalorder %v3689, 2
  %vm3710 = vcmp.lt.s32.totalorder %v3689, 3
  %vm3711 = vcmp.lt.s32.totalorder %v3689, 4
  %v3712 = vsel %vm3708, %v3692, %v3695
  %v3713 = vsel %vm3711, %v3701, 2102212464
  %v3714 = vsel %vm3710, %v3698, %v3713
  %v3715 = vsel %vm3709, %v3712, %v3714
  %v3716 = vsel %vm3708, %v3695, %v3698
  %v3717 = vsel %vm3711, %v3704, 920167782
  %v3718 = vsel %vm3710, %v3701, %v3717
  %v3719 = vsel %vm3709, %v3716, %v3718
  %v3720 = vsel %vm3708, %v3698, %v3701
  %v3721 = vsel %vm3711, %v3707, 1326507024
  %v3722 = vsel %vm3710, %v3704, %v3721
  %v3723 = vsel %vm3709, %v3720, %v3722
  %v3724 = vshll.u32 %v3684, 8
  %v3725 = vmul.u32.u64.compose %v3724, %v3723
  %v3726 = vextract.low.u32 %v3725
  %v3727 = vextract.high.u32 %v3725
  %v3728 = vmul.u32.u64.compose %v3724, %v3719
  %v3729 = vextract.low.u32 %v3728
  %v3730 = vextract.high.u32 %v3728
  %v3731 = vmul.u32 %v3724, %v3715
  %v3732 = vadd.s32 %v3727, %v3729
  %vm3733 = vc.u32 %v3727, %v3729
  %v3734 = vadd.s32 %v3730, 1
  %v3735 = vsel %vm3733, %v3734, %v3730
  %v3736 = vadd.s32 %v3731, %v3735
  %v3737 = vadd.s32 %v3736, 536870912
  %v3738 = vshrl.u32 %v3737, 30
  %v3739 = vshll.u32 %v3738, 30
  %v3740 = vsub.s32 %v3736, %v3739
  %vm3741 = vcmp.lt.s32.totalorder %v3740, 0
  %v3742 = vsub.s32 0, %v3740
  %v3743 = vsel %vm3741, %v3742, %v3740
  %v3744 = vclz %v3743
  %v3745 = vsub.s32 %v3744, 2
  %vm3746 = vcmp.gt.s32.totalorder 0, %v3745
  %v3747 = vsel %vm3746, 0, %v3745
  %v3748 = vsub.s32 32, %v3747
  %v3749 = vshll.u32 %v3740, %v3747
  %v3750 = vshrl.u32 %v3732, %v3748
  %v3751 = vor.u32 %v3749, %v3750
  %v3752 = vsub.s32 4294967266, %v3747
  %v3753 = vadd.s32 %v3752, 127
  %v3754 = vshll.u32 %v3753, 23
  %v3755 = vor.u32 4788187, %v3754
  %v3756 = vand.u32 2147483647, %v3755
  %v3758 = vcvt.s32.f32 %v3751
  %v3759 = vmul.f32 %v3758, %v3756
  %v3760 = vxor.u32 %v3759, 2147483648
  %v3761 = vsel %vm3678, %v3760, %v3759
  %v3762 = vsub.s32 4, %v3738
  %v3763 = vsel %vm3678, %v3762, %v3738
  %v3764 = vsel %vm3677, %v1172, %v3761
  %v3765 = vsel %vm3677, 0, %v3763
  %v3766 = vcosq.f32.pop %v3764
  %v3767 = vsinq.f32.pop %v3764
  %vm3768 = vweird.f32 %v1172
  %v3769 = vadd.s32 %v3765, 3
  %v3770 = vand.u32 %v3769, 3
  %vm3771 = vcmp.lt.s32.totalorder %v3770, 2
  %vm3772 = vcmp.eq.s32.totalorder %v3770, 0
  %v3773 = vxor.u32 %v3767, 2147483648
  %v3774 = vsel %vm3772, %v3766, %v3773
  %vm3775 = vcmp.eq.s32.totalorder %v3770, 2
  %v3776 = vxor.u32 %v3766, 2147483648
  %v3777 = vsel %vm3775, %v3776, %v3767
  %v3778 = vsel %vm3771, %v3774, %v3777
  %v3779 = vsel %vm3768, nan, %v3778
  %v3780 = vand.u32 2147483647, %v1173
  %vm3781 = vcmp.le.f32.partialorder %v3780, 0.7853982
  %vm3782 = vcmp.lt.s32.totalorder %v1173, 0
  %v3783 = vand.u32 %v1173, 2139095040
  %v3784 = vshrl.u32 %v3783, 23
  %v3785 = vsub.s32 %v3784, 127
  %v3786 = vand.u32 2147483647, %v1173
  %v3787 = vand.u32 %v3786, 8388607
  %v3788 = vor.u32 %v3787, 8388608
  %v3789 = vsub.s32 0, %v3788
  %v3790 = vadd.s32 %v3785, 1
  %vm3791 = vcmp.gt.s32.totalorder %v3790, 0
  %v3792 = vsel %vm3791, %v3790, 0
  %v3793 = vshrl.u32 %v3792, 5
  %v3794 = vand.u32 %v3792, 31
  %v3795 = vsub.s32 32, %v3794
  %v3796 = vshrl.u32 683565275, %v3795
  %v3797 = vshll.u32 683565275, %v3794
  %v3798 = vshrl.u32 2475754826, %v3795
  %v3799 = vor.u32 %v3797, %v3798
  %v3800 = vshll.u32 2475754826, %v3794
  %v3801 = vshrl.u32 2131351028, %v3795
  %v3802 = vor.u32 %v3800, %v3801
  %v3803 = vshll.u32 2131351028, %v3794
  %v3804 = vshrl.u32 2102212464, %v3795
  %v3805 = vor.u32 %v3803, %v3804
  %v3806 = vshll.u32 2102212464, %v3794
  %v3807 = vshrl.u32 920167782, %v3795
  %v3808 = vor.u32 %v3806, %v3807
  %v3809 = vshll.u32 920167782, %v3794
  %v3810 = vshrl.u32 1326507024, %v3795
  %v3811 = vor.u32 %v3809, %v3810
  %vm3812 = vcmp.lt.s32.totalorder %v3793, 1
  %vm3813 = vcmp.lt.s32.totalorder %v3793, 2
  %vm3814 = vcmp.lt.s32.totalorder %v3793, 3
  %vm3815 = vcmp.lt.s32.totalorder %v3793, 4
  %v3816 = vsel %vm3812, %v3796, %v3799
  %v3817 = vsel %vm3815, %v3805, 2102212464
  %v3818 = vsel %vm3814, %v3802, %v3817
  %v3819 = vsel %vm3813, %v3816, %v3818
  %v3820 = vsel %vm3812, %v3799, %v3802
  %v3821 = vsel %vm3815, %v3808, 920167782
  %v3822 = vsel %vm3814, %v3805, %v3821
  %v3823 = vsel %vm3813, %v3820, %v3822
  %v3824 = vsel %vm3812, %v3802, %v3805
  %v3825 = vsel %vm3815, %v3811, 1326507024
  %v3826 = vsel %vm3814, %v3808, %v3825
  %v3827 = vsel %vm3813, %v3824, %v3826
  %v3828 = vshll.u32 %v3788, 8
  %v3829 = vmul.u32.u64.compose %v3828, %v3827
  %v3830 = vextract.low.u32 %v3829
  %v3831 = vextract.high.u32 %v3829
  %v3832 = vmul.u32.u64.compose %v3828, %v3823
  %v3833 = vextract.low.u32 %v3832
  %v3834 = vextract.high.u32 %v3832
  %v3835 = vmul.u32 %v3828, %v3819
  %v3836 = vadd.s32 %v3831, %v3833
  %vm3837 = vc.u32 %v3831, %v3833
  %v3838 = vadd.s32 %v3834, 1
  %v3839 = vsel %vm3837, %v3838, %v3834
  %v3840 = vadd.s32 %v3835, %v3839
  %v3841 = vadd.s32 %v3840, 536870912
  %v3842 = vshrl.u32 %v3841, 30
  %v3843 = vshll.u32 %v3842, 30
  %v3844 = vsub.s32 %v3840, %v3843
  %vm3845 = vcmp.lt.s32.totalorder %v3844, 0
  %v3846 = vsub.s32 0, %v3844
  %v3847 = vsel %vm3845, %v3846, %v3844
  %v3848 = vclz %v3847
  %v3849 = vsub.s32 %v3848, 2
  %vm3850 = vcmp.gt.s32.totalorder 0, %v3849
  %v3851 = vsel %vm3850, 0, %v3849
  %v3852 = vsub.s32 32, %v3851
  %v3853 = vshll.u32 %v3844, %v3851
  %v3854 = vshrl.u32 %v3836, %v3852
  %v3855 = vor.u32 %v3853, %v3854
  %v3856 = vsub.s32 4294967266, %v3851
  %v3857 = vadd.s32 %v3856, 127
  %v3858 = vshll.u32 %v3857, 23
  %v3859 = vor.u32 4788187, %v3858
  %v3860 = vand.u32 2147483647, %v3859
  %v3862 = vcvt.s32.f32 %v3855
  %v3863 = vmul.f32 %v3862, %v3860
  %v3864 = vxor.u32 %v3863, 2147483648
  %v3865 = vsel %vm3782, %v3864, %v3863
  %v3866 = vsub.s32 4, %v3842
  %v3867 = vsel %vm3782, %v3866, %v3842
  %v3868 = vsel %vm3781, %v1173, %v3865
  %v3869 = vsel %vm3781, 0, %v3867
  %v3870 = vcosq.f32.pop %v3868
  %v3871 = vsinq.f32.pop %v3868
  %vm3872 = vweird.f32 %v1173
  %v3873 = vadd.s32 %v3869, 3
  %v3874 = vand.u32 %v3873, 3
  %vm3875 = vcmp.lt.s32.totalorder %v3874, 2
  %vm3876 = vcmp.eq.s32.totalorder %v3874, 0
  %v3877 = vxor.u32 %v3871, 2147483648
  %v3878 = vsel %vm3876, %v3870, %v3877
  %vm3879 = vcmp.eq.s32.totalorder %v3874, 2
  %v3880 = vxor.u32 %v3870, 2147483648
  %v3881 = vsel %vm3879, %v3880, %v3871
  %v3882 = vsel %vm3875, %v3878, %v3881
  %v3883 = vsel %vm3872, nan, %v3882
  %v3884 = vand.u32 2147483647, %v1174
  %vm3885 = vcmp.le.f32.partialorder %v3884, 0.7853982
  %vm3886 = vcmp.lt.s32.totalorder %v1174, 0
  %v3887 = vand.u32 %v1174, 2139095040
  %v3888 = vshrl.u32 %v3887, 23
  %v3889 = vsub.s32 %v3888, 127
  %v3890 = vand.u32 2147483647, %v1174
  %v3891 = vand.u32 %v3890, 8388607
  %v3892 = vor.u32 %v3891, 8388608
  %v3893 = vsub.s32 0, %v3892
  %v3894 = vadd.s32 %v3889, 1
  %vm3895 = vcmp.gt.s32.totalorder %v3894, 0
  %v3896 = vsel %vm3895, %v3894, 0
  %v3897 = vshrl.u32 %v3896, 5
  %v3898 = vand.u32 %v3896, 31
  %v3899 = vsub.s32 32, %v3898
  %v3900 = vshrl.u32 683565275, %v3899
  %v3901 = vshll.u32 683565275, %v3898
  %v3902 = vshrl.u32 2475754826, %v3899
  %v3903 = vor.u32 %v3901, %v3902
  %v3904 = vshll.u32 2475754826, %v3898
  %v3905 = vshrl.u32 2131351028, %v3899
  %v3906 = vor.u32 %v3904, %v3905
  %v3907 = vshll.u32 2131351028, %v3898
  %v3908 = vshrl.u32 2102212464, %v3899
  %v3909 = vor.u32 %v3907, %v3908
  %v3910 = vshll.u32 2102212464, %v3898
  %v3911 = vshrl.u32 920167782, %v3899
  %v3912 = vor.u32 %v3910, %v3911
  %v3913 = vshll.u32 920167782, %v3898
  %v3914 = vshrl.u32 1326507024, %v3899
  %v3915 = vor.u32 %v3913, %v3914
  %vm3916 = vcmp.lt.s32.totalorder %v3897, 1
  %vm3917 = vcmp.lt.s32.totalorder %v3897, 2
  %vm3918 = vcmp.lt.s32.totalorder %v3897, 3
  %vm3919 = vcmp.lt.s32.totalorder %v3897, 4
  %v3920 = vsel %vm3916, %v3900, %v3903
  %v3921 = vsel %vm3919, %v3909, 2102212464
  %v3922 = vsel %vm3918, %v3906, %v3921
  %v3923 = vsel %vm3917, %v3920, %v3922
  %v3924 = vsel %vm3916, %v3903, %v3906
  %v3925 = vsel %vm3919, %v3912, 920167782
  %v3926 = vsel %vm3918, %v3909, %v3925
  %v3927 = vsel %vm3917, %v3924, %v3926
  %v3928 = vsel %vm3916, %v3906, %v3909
  %v3929 = vsel %vm3919, %v3915, 1326507024
  %v3930 = vsel %vm3918, %v3912, %v3929
  %v3931 = vsel %vm3917, %v3928, %v3930
  %v3932 = vshll.u32 %v3892, 8
  %v3933 = vmul.u32.u64.compose %v3932, %v3931
  %v3934 = vextract.low.u32 %v3933
  %v3935 = vextract.high.u32 %v3933
  %v3936 = vmul.u32.u64.compose %v3932, %v3927
  %v3937 = vextract.low.u32 %v3936
  %v3938 = vextract.high.u32 %v3936
  %v3939 = vmul.u32 %v3932, %v3923
  %v3940 = vadd.s32 %v3935, %v3937
  %vm3941 = vc.u32 %v3935, %v3937
  %v3942 = vadd.s32 %v3938, 1
  %v3943 = vsel %vm3941, %v3942, %v3938
  %v3944 = vadd.s32 %v3939, %v3943
  %v3945 = vadd.s32 %v3944, 536870912
  %v3946 = vshrl.u32 %v3945, 30
  %v3947 = vshll.u32 %v3946, 30
  %v3948 = vsub.s32 %v3944, %v3947
  %vm3949 = vcmp.lt.s32.totalorder %v3948, 0
  %v3950 = vsub.s32 0, %v3948
  %v3951 = vsel %vm3949, %v3950, %v3948
  %v3952 = vclz %v3951
  %v3953 = vsub.s32 %v3952, 2
  %vm3954 = vcmp.gt.s32.totalorder 0, %v3953
  %v3955 = vsel %vm3954, 0, %v3953
  %v3956 = vsub.s32 32, %v3955
  %v3957 = vshll.u32 %v3948, %v3955
  %v3958 = vshrl.u32 %v3940, %v3956
  %v3959 = vor.u32 %v3957, %v3958
  %v3960 = vsub.s32 4294967266, %v3955
  %v3961 = vadd.s32 %v3960, 127
  %v3962 = vshll.u32 %v3961, 23
  %v3963 = vor.u32 4788187, %v3962
  %v3964 = vand.u32 2147483647, %v3963
  %v3966 = vcvt.s32.f32 %v3959
  %v3967 = vmul.f32 %v3966, %v3964
  %v3968 = vxor.u32 %v3967, 2147483648
  %v3969 = vsel %vm3886, %v3968, %v3967
  %v3970 = vsub.s32 4, %v3946
  %v3971 = vsel %vm3886, %v3970, %v3946
  %v3972 = vsel %vm3885, %v1174, %v3969
  %v3973 = vsel %vm3885, 0, %v3971
  %v3974 = vcosq.f32.pop %v3972
  %v3975 = vsinq.f32.pop %v3972
  %vm3976 = vweird.f32 %v1174
  %v3977 = vadd.s32 %v3973, 3
  %v3978 = vand.u32 %v3977, 3
  %vm3979 = vcmp.lt.s32.totalorder %v3978, 2
  %vm3980 = vcmp.eq.s32.totalorder %v3978, 0
  %v3981 = vxor.u32 %v3975, 2147483648
  %v3982 = vsel %vm3980, %v3974, %v3981
  %vm3983 = vcmp.eq.s32.totalorder %v3978, 2
  %v3984 = vxor.u32 %v3974, 2147483648
  %v3985 = vsel %vm3983, %v3984, %v3975
  %v3986 = vsel %vm3979, %v3982, %v3985
  %v3987 = vsel %vm3976, nan, %v3986
  %v3988 = vand.u32 2147483647, %v1175
  %vm3989 = vcmp.le.f32.partialorder %v3988, 0.7853982
  %vm3990 = vcmp.lt.s32.totalorder %v1175, 0
  %v3991 = vand.u32 %v1175, 2139095040
  %v3992 = vshrl.u32 %v3991, 23
  %v3993 = vsub.s32 %v3992, 127
  %v3994 = vand.u32 2147483647, %v1175
  %v3995 = vand.u32 %v3994, 8388607
  %v3996 = vor.u32 %v3995, 8388608
  %v3997 = vsub.s32 0, %v3996
  %v3998 = vadd.s32 %v3993, 1
  %vm3999 = vcmp.gt.s32.totalorder %v3998, 0
  %v4000 = vsel %vm3999, %v3998, 0
  %v4001 = vshrl.u32 %v4000, 5
  %v4002 = vand.u32 %v4000, 31
  %v4003 = vsub.s32 32, %v4002
  %v4004 = vshrl.u32 683565275, %v4003
  %v4005 = vshll.u32 683565275, %v4002
  %v4006 = vshrl.u32 2475754826, %v4003
  %v4007 = vor.u32 %v4005, %v4006
  %v4008 = vshll.u32 2475754826, %v4002
  %v4009 = vshrl.u32 2131351028, %v4003
  %v4010 = vor.u32 %v4008, %v4009
  %v4011 = vshll.u32 2131351028, %v4002
  %v4012 = vshrl.u32 2102212464, %v4003
  %v4013 = vor.u32 %v4011, %v4012
  %v4014 = vshll.u32 2102212464, %v4002
  %v4015 = vshrl.u32 920167782, %v4003
  %v4016 = vor.u32 %v4014, %v4015
  %v4017 = vshll.u32 920167782, %v4002
  %v4018 = vshrl.u32 1326507024, %v4003
  %v4019 = vor.u32 %v4017, %v4018
  %vm4020 = vcmp.lt.s32.totalorder %v4001, 1
  %vm4021 = vcmp.lt.s32.totalorder %v4001, 2
  %vm4022 = vcmp.lt.s32.totalorder %v4001, 3
  %vm4023 = vcmp.lt.s32.totalorder %v4001, 4
  %v4024 = vsel %vm4020, %v4004, %v4007
  %v4025 = vsel %vm4023, %v4013, 2102212464
  %v4026 = vsel %vm4022, %v4010, %v4025
  %v4027 = vsel %vm4021, %v4024, %v4026
  %v4028 = vsel %vm4020, %v4007, %v4010
  %v4029 = vsel %vm4023, %v4016, 920167782
  %v4030 = vsel %vm4022, %v4013, %v4029
  %v4031 = vsel %vm4021, %v4028, %v4030
  %v4032 = vsel %vm4020, %v4010, %v4013
  %v4033 = vsel %vm4023, %v4019, 1326507024
  %v4034 = vsel %vm4022, %v4016, %v4033
  %v4035 = vsel %vm4021, %v4032, %v4034
  %v4036 = vshll.u32 %v3996, 8
  %v4037 = vmul.u32.u64.compose %v4036, %v4035
  %v4038 = vextract.low.u32 %v4037
  %v4039 = vextract.high.u32 %v4037
  %v4040 = vmul.u32.u64.compose %v4036, %v4031
  %v4041 = vextract.low.u32 %v4040
  %v4042 = vextract.high.u32 %v4040
  %v4043 = vmul.u32 %v4036, %v4027
  %v4044 = vadd.s32 %v4039, %v4041
  %vm4045 = vc.u32 %v4039, %v4041
  %v4046 = vadd.s32 %v4042, 1
  %v4047 = vsel %vm4045, %v4046, %v4042
  %v4048 = vadd.s32 %v4043, %v4047
  %v4049 = vadd.s32 %v4048, 536870912
  %v4050 = vshrl.u32 %v4049, 30
  %v4051 = vshll.u32 %v4050, 30
  %v4052 = vsub.s32 %v4048, %v4051
  %vm4053 = vcmp.lt.s32.totalorder %v4052, 0
  %v4054 = vsub.s32 0, %v4052
  %v4055 = vsel %vm4053, %v4054, %v4052
  %v4056 = vclz %v4055
  %v4057 = vsub.s32 %v4056, 2
  %vm4058 = vcmp.gt.s32.totalorder 0, %v4057
  %v4059 = vsel %vm4058, 0, %v4057
  %v4060 = vsub.s32 32, %v4059
  %v4061 = vshll.u32 %v4052, %v4059
  %v4062 = vshrl.u32 %v4044, %v4060
  %v4063 = vor.u32 %v4061, %v4062
  %v4064 = vsub.s32 4294967266, %v4059
  %v4065 = vadd.s32 %v4064, 127
  %v4066 = vshll.u32 %v4065, 23
  %v4067 = vor.u32 4788187, %v4066
  %v4068 = vand.u32 2147483647, %v4067
  %v4070 = vcvt.s32.f32 %v4063
  %v4071 = vmul.f32 %v4070, %v4068
  %v4072 = vxor.u32 %v4071, 2147483648
  %v4073 = vsel %vm3990, %v4072, %v4071
  %v4074 = vsub.s32 4, %v4050
  %v4075 = vsel %vm3990, %v4074, %v4050
  %v4076 = vsel %vm3989, %v1175, %v4073
  %v4077 = vsel %vm3989, 0, %v4075
  %v4078 = vcosq.f32.pop %v4076
  %v4079 = vsinq.f32.pop %v4076
  %vm4080 = vweird.f32 %v1175
  %v4081 = vadd.s32 %v4077, 3
  %v4082 = vand.u32 %v4081, 3
  %vm4083 = vcmp.lt.s32.totalorder %v4082, 2
  %vm4084 = vcmp.eq.s32.totalorder %v4082, 0
  %v4085 = vxor.u32 %v4079, 2147483648
  %v4086 = vsel %vm4084, %v4078, %v4085
  %vm4087 = vcmp.eq.s32.totalorder %v4082, 2
  %v4088 = vxor.u32 %v4078, 2147483648
  %v4089 = vsel %vm4087, %v4088, %v4079
  %v4090 = vsel %vm4083, %v4086, %v4089
  %v4091 = vsel %vm4080, nan, %v4090
  %v4092 = vand.u32 2147483647, %v1176
  %vm4093 = vcmp.le.f32.partialorder %v4092, 0.7853982
  %vm4094 = vcmp.lt.s32.totalorder %v1176, 0
  %v4095 = vand.u32 %v1176, 2139095040
  %v4096 = vshrl.u32 %v4095, 23
  %v4097 = vsub.s32 %v4096, 127
  %v4098 = vand.u32 2147483647, %v1176
  %v4099 = vand.u32 %v4098, 8388607
  %v4100 = vor.u32 %v4099, 8388608
  %v4101 = vsub.s32 0, %v4100
  %v4102 = vadd.s32 %v4097, 1
  %vm4103 = vcmp.gt.s32.totalorder %v4102, 0
  %v4104 = vsel %vm4103, %v4102, 0
  %v4105 = vshrl.u32 %v4104, 5
  %v4106 = vand.u32 %v4104, 31
  %v4107 = vsub.s32 32, %v4106
  %v4108 = vshrl.u32 683565275, %v4107
  %v4109 = vshll.u32 683565275, %v4106
  %v4110 = vshrl.u32 2475754826, %v4107
  %v4111 = vor.u32 %v4109, %v4110
  %v4112 = vshll.u32 2475754826, %v4106
  %v4113 = vshrl.u32 2131351028, %v4107
  %v4114 = vor.u32 %v4112, %v4113
  %v4115 = vshll.u32 2131351028, %v4106
  %v4116 = vshrl.u32 2102212464, %v4107
  %v4117 = vor.u32 %v4115, %v4116
  %v4118 = vshll.u32 2102212464, %v4106
  %v4119 = vshrl.u32 920167782, %v4107
  %v4120 = vor.u32 %v4118, %v4119
  %v4121 = vshll.u32 920167782, %v4106
  %v4122 = vshrl.u32 1326507024, %v4107
  %v4123 = vor.u32 %v4121, %v4122
  %vm4124 = vcmp.lt.s32.totalorder %v4105, 1
  %vm4125 = vcmp.lt.s32.totalorder %v4105, 2
  %vm4126 = vcmp.lt.s32.totalorder %v4105, 3
  %vm4127 = vcmp.lt.s32.totalorder %v4105, 4
  %v4128 = vsel %vm4124, %v4108, %v4111
  %v4129 = vsel %vm4127, %v4117, 2102212464
  %v4130 = vsel %vm4126, %v4114, %v4129
  %v4131 = vsel %vm4125, %v4128, %v4130
  %v4132 = vsel %vm4124, %v4111, %v4114
  %v4133 = vsel %vm4127, %v4120, 920167782
  %v4134 = vsel %vm4126, %v4117, %v4133
  %v4135 = vsel %vm4125, %v4132, %v4134
  %v4136 = vsel %vm4124, %v4114, %v4117
  %v4137 = vsel %vm4127, %v4123, 1326507024
  %v4138 = vsel %vm4126, %v4120, %v4137
  %v4139 = vsel %vm4125, %v4136, %v4138
  %v4140 = vshll.u32 %v4100, 8
  %v4141 = vmul.u32.u64.compose %v4140, %v4139
  %v4142 = vextract.low.u32 %v4141
  %v4143 = vextract.high.u32 %v4141
  %v4144 = vmul.u32.u64.compose %v4140, %v4135
  %v4145 = vextract.low.u32 %v4144
  %v4146 = vextract.high.u32 %v4144
  %v4147 = vmul.u32 %v4140, %v4131
  %v4148 = vadd.s32 %v4143, %v4145
  %vm4149 = vc.u32 %v4143, %v4145
  %v4150 = vadd.s32 %v4146, 1
  %v4151 = vsel %vm4149, %v4150, %v4146
  %v4152 = vadd.s32 %v4147, %v4151
  %v4153 = vadd.s32 %v4152, 536870912
  %v4154 = vshrl.u32 %v4153, 30
  %v4155 = vshll.u32 %v4154, 30
  %v4156 = vsub.s32 %v4152, %v4155
  %vm4157 = vcmp.lt.s32.totalorder %v4156, 0
  %v4158 = vsub.s32 0, %v4156
  %v4159 = vsel %vm4157, %v4158, %v4156
  %v4160 = vclz %v4159
  %v4161 = vsub.s32 %v4160, 2
  %vm4162 = vcmp.gt.s32.totalorder 0, %v4161
  %v4163 = vsel %vm4162, 0, %v4161
  %v4164 = vsub.s32 32, %v4163
  %v4165 = vshll.u32 %v4156, %v4163
  %v4166 = vshrl.u32 %v4148, %v4164
  %v4167 = vor.u32 %v4165, %v4166
  %v4168 = vsub.s32 4294967266, %v4163
  %v4169 = vadd.s32 %v4168, 127
  %v4170 = vshll.u32 %v4169, 23
  %v4171 = vor.u32 4788187, %v4170
  %v4172 = vand.u32 2147483647, %v4171
  %v4174 = vcvt.s32.f32 %v4167
  %v4175 = vmul.f32 %v4174, %v4172
  %v4176 = vxor.u32 %v4175, 2147483648
  %v4177 = vsel %vm4094, %v4176, %v4175
  %v4178 = vsub.s32 4, %v4154
  %v4179 = vsel %vm4094, %v4178, %v4154
  %v4180 = vsel %vm4093, %v1176, %v4177
  %v4181 = vsel %vm4093, 0, %v4179
  %v4182 = vcosq.f32.pop %v4180
  %v4183 = vsinq.f32.pop %v4180
  %vm4184 = vweird.f32 %v1176
  %v4185 = vadd.s32 %v4181, 3
  %v4186 = vand.u32 %v4185, 3
  %vm4187 = vcmp.lt.s32.totalorder %v4186, 2
  %vm4188 = vcmp.eq.s32.totalorder %v4186, 0
  %v4189 = vxor.u32 %v4183, 2147483648
  %v4190 = vsel %vm4188, %v4182, %v4189
  %vm4191 = vcmp.eq.s32.totalorder %v4186, 2
  %v4192 = vxor.u32 %v4182, 2147483648
  %v4193 = vsel %vm4191, %v4192, %v4183
  %v4194 = vsel %vm4187, %v4190, %v4193
  %v4195 = vsel %vm4184, nan, %v4194
  %v4196 = vand.u32 2147483647, %v1177
  %vm4197 = vcmp.le.f32.partialorder %v4196, 0.7853982
  %vm4198 = vcmp.lt.s32.totalorder %v1177, 0
  %v4199 = vand.u32 %v1177, 2139095040
  %v4200 = vshrl.u32 %v4199, 23
  %v4201 = vsub.s32 %v4200, 127
  %v4202 = vand.u32 2147483647, %v1177
  %v4203 = vand.u32 %v4202, 8388607
  %v4204 = vor.u32 %v4203, 8388608
  %v4205 = vsub.s32 0, %v4204
  %v4206 = vadd.s32 %v4201, 1
  %vm4207 = vcmp.gt.s32.totalorder %v4206, 0
  %v4208 = vsel %vm4207, %v4206, 0
  %v4209 = vshrl.u32 %v4208, 5
  %v4210 = vand.u32 %v4208, 31
  %v4211 = vsub.s32 32, %v4210
  %v4212 = vshrl.u32 683565275, %v4211
  %v4213 = vshll.u32 683565275, %v4210
  %v4214 = vshrl.u32 2475754826, %v4211
  %v4215 = vor.u32 %v4213, %v4214
  %v4216 = vshll.u32 2475754826, %v4210
  %v4217 = vshrl.u32 2131351028, %v4211
  %v4218 = vor.u32 %v4216, %v4217
  %v4219 = vshll.u32 2131351028, %v4210
  %v4220 = vshrl.u32 2102212464, %v4211
  %v4221 = vor.u32 %v4219, %v4220
  %v4222 = vshll.u32 2102212464, %v4210
  %v4223 = vshrl.u32 920167782, %v4211
  %v4224 = vor.u32 %v4222, %v4223
  %v4225 = vshll.u32 920167782, %v4210
  %v4226 = vshrl.u32 1326507024, %v4211
  %v4227 = vor.u32 %v4225, %v4226
  %vm4228 = vcmp.lt.s32.totalorder %v4209, 1
  %vm4229 = vcmp.lt.s32.totalorder %v4209, 2
  %vm4230 = vcmp.lt.s32.totalorder %v4209, 3
  %vm4231 = vcmp.lt.s32.totalorder %v4209, 4
  %v4232 = vsel %vm4228, %v4212, %v4215
  %v4233 = vsel %vm4231, %v4221, 2102212464
  %v4234 = vsel %vm4230, %v4218, %v4233
  %v4235 = vsel %vm4229, %v4232, %v4234
  %v4236 = vsel %vm4228, %v4215, %v4218
  %v4237 = vsel %vm4231, %v4224, 920167782
  %v4238 = vsel %vm4230, %v4221, %v4237
  %v4239 = vsel %vm4229, %v4236, %v4238
  %v4240 = vsel %vm4228, %v4218, %v4221
  %v4241 = vsel %vm4231, %v4227, 1326507024
  %v4242 = vsel %vm4230, %v4224, %v4241
  %v4243 = vsel %vm4229, %v4240, %v4242
  %v4244 = vshll.u32 %v4204, 8
  %v4245 = vmul.u32.u64.compose %v4244, %v4243
  %v4246 = vextract.low.u32 %v4245
  %v4247 = vextract.high.u32 %v4245
  %v4248 = vmul.u32.u64.compose %v4244, %v4239
  %v4249 = vextract.low.u32 %v4248
  %v4250 = vextract.high.u32 %v4248
  %v4251 = vmul.u32 %v4244, %v4235
  %v4252 = vadd.s32 %v4247, %v4249
  %vm4253 = vc.u32 %v4247, %v4249
  %v4254 = vadd.s32 %v4250, 1
  %v4255 = vsel %vm4253, %v4254, %v4250
  %v4256 = vadd.s32 %v4251, %v4255
  %v4257 = vadd.s32 %v4256, 536870912
  %v4258 = vshrl.u32 %v4257, 30
  %v4259 = vshll.u32 %v4258, 30
  %v4260 = vsub.s32 %v4256, %v4259
  %vm4261 = vcmp.lt.s32.totalorder %v4260, 0
  %v4262 = vsub.s32 0, %v4260
  %v4263 = vsel %vm4261, %v4262, %v4260
  %v4264 = vclz %v4263
  %v4265 = vsub.s32 %v4264, 2
  %vm4266 = vcmp.gt.s32.totalorder 0, %v4265
  %v4267 = vsel %vm4266, 0, %v4265
  %v4268 = vsub.s32 32, %v4267
  %v4269 = vshll.u32 %v4260, %v4267
  %v4270 = vshrl.u32 %v4252, %v4268
  %v4271 = vor.u32 %v4269, %v4270
  %v4272 = vsub.s32 4294967266, %v4267
  %v4273 = vadd.s32 %v4272, 127
  %v4274 = vshll.u32 %v4273, 23
  %v4275 = vor.u32 4788187, %v4274
  %v4276 = vand.u32 2147483647, %v4275
  %v4278 = vcvt.s32.f32 %v4271
  %v4279 = vmul.f32 %v4278, %v4276
  %v4280 = vxor.u32 %v4279, 2147483648
  %v4281 = vsel %vm4198, %v4280, %v4279
  %v4282 = vsub.s32 4, %v4258
  %v4283 = vsel %vm4198, %v4282, %v4258
  %v4284 = vsel %vm4197, %v1177, %v4281
  %v4285 = vsel %vm4197, 0, %v4283
  %v4286 = vcosq.f32.pop %v4284
  %v4287 = vsinq.f32.pop %v4284
  %vm4288 = vweird.f32 %v1177
  %v4289 = vadd.s32 %v4285, 3
  %v4290 = vand.u32 %v4289, 3
  %vm4291 = vcmp.lt.s32.totalorder %v4290, 2
  %vm4292 = vcmp.eq.s32.totalorder %v4290, 0
  %v4293 = vxor.u32 %v4287, 2147483648
  %v4294 = vsel %vm4292, %v4286, %v4293
  %vm4295 = vcmp.eq.s32.totalorder %v4290, 2
  %v4296 = vxor.u32 %v4286, 2147483648
  %v4297 = vsel %vm4295, %v4296, %v4287
  %v4298 = vsel %vm4291, %v4294, %v4297
  %v4299 = vsel %vm4288, nan, %v4298
  %v4300 = vand.u32 2147483647, %v1178
  %vm4301 = vcmp.le.f32.partialorder %v4300, 0.7853982
  %vm4302 = vcmp.lt.s32.totalorder %v1178, 0
  %v4303 = vand.u32 %v1178, 2139095040
  %v4304 = vshrl.u32 %v4303, 23
  %v4305 = vsub.s32 %v4304, 127
  %v4306 = vand.u32 2147483647, %v1178
  %v4307 = vand.u32 %v4306, 8388607
  %v4308 = vor.u32 %v4307, 8388608
  %v4309 = vsub.s32 0, %v4308
  %v4310 = vadd.s32 %v4305, 1
  %vm4311 = vcmp.gt.s32.totalorder %v4310, 0
  %v4312 = vsel %vm4311, %v4310, 0
  %v4313 = vshrl.u32 %v4312, 5
  %v4314 = vand.u32 %v4312, 31
  %v4315 = vsub.s32 32, %v4314
  %v4316 = vshrl.u32 683565275, %v4315
  %v4317 = vshll.u32 683565275, %v4314
  %v4318 = vshrl.u32 2475754826, %v4315
  %v4319 = vor.u32 %v4317, %v4318
  %v4320 = vshll.u32 2475754826, %v4314
  %v4321 = vshrl.u32 2131351028, %v4315
  %v4322 = vor.u32 %v4320, %v4321
  %v4323 = vshll.u32 2131351028, %v4314
  %v4324 = vshrl.u32 2102212464, %v4315
  %v4325 = vor.u32 %v4323, %v4324
  %v4326 = vshll.u32 2102212464, %v4314
  %v4327 = vshrl.u32 920167782, %v4315
  %v4328 = vor.u32 %v4326, %v4327
  %v4329 = vshll.u32 920167782, %v4314
  %v4330 = vshrl.u32 1326507024, %v4315
  %v4331 = vor.u32 %v4329, %v4330
  %vm4332 = vcmp.lt.s32.totalorder %v4313, 1
  %vm4333 = vcmp.lt.s32.totalorder %v4313, 2
  %vm4334 = vcmp.lt.s32.totalorder %v4313, 3
  %vm4335 = vcmp.lt.s32.totalorder %v4313, 4
  %v4336 = vsel %vm4332, %v4316, %v4319
  %v4337 = vsel %vm4335, %v4325, 2102212464
  %v4338 = vsel %vm4334, %v4322, %v4337
  %v4339 = vsel %vm4333, %v4336, %v4338
  %v4340 = vsel %vm4332, %v4319, %v4322
  %v4341 = vsel %vm4335, %v4328, 920167782
  %v4342 = vsel %vm4334, %v4325, %v4341
  %v4343 = vsel %vm4333, %v4340, %v4342
  %v4344 = vsel %vm4332, %v4322, %v4325
  %v4345 = vsel %vm4335, %v4331, 1326507024
  %v4346 = vsel %vm4334, %v4328, %v4345
  %v4347 = vsel %vm4333, %v4344, %v4346
  %v4348 = vshll.u32 %v4308, 8
  %v4349 = vmul.u32.u64.compose %v4348, %v4347
  %v4350 = vextract.low.u32 %v4349
  %v4351 = vextract.high.u32 %v4349
  %v4352 = vmul.u32.u64.compose %v4348, %v4343
  %v4353 = vextract.low.u32 %v4352
  %v4354 = vextract.high.u32 %v4352
  %v4355 = vmul.u32 %v4348, %v4339
  %v4356 = vadd.s32 %v4351, %v4353
  %vm4357 = vc.u32 %v4351, %v4353
  %v4358 = vadd.s32 %v4354, 1
  %v4359 = vsel %vm4357, %v4358, %v4354
  %v4360 = vadd.s32 %v4355, %v4359
  %v4361 = vadd.s32 %v4360, 536870912
  %v4362 = vshrl.u32 %v4361, 30
  %v4363 = vshll.u32 %v4362, 30
  %v4364 = vsub.s32 %v4360, %v4363
  %vm4365 = vcmp.lt.s32.totalorder %v4364, 0
  %v4366 = vsub.s32 0, %v4364
  %v4367 = vsel %vm4365, %v4366, %v4364
  %v4368 = vclz %v4367
  %v4369 = vsub.s32 %v4368, 2
  %vm4370 = vcmp.gt.s32.totalorder 0, %v4369
  %v4371 = vsel %vm4370, 0, %v4369
  %v4372 = vsub.s32 32, %v4371
  %v4373 = vshll.u32 %v4364, %v4371
  %v4374 = vshrl.u32 %v4356, %v4372
  %v4375 = vor.u32 %v4373, %v4374
  %v4376 = vsub.s32 4294967266, %v4371
  %v4377 = vadd.s32 %v4376, 127
  %v4378 = vshll.u32 %v4377, 23
  %v4379 = vor.u32 4788187, %v4378
  %v4380 = vand.u32 2147483647, %v4379
  %v4382 = vcvt.s32.f32 %v4375
  %v4383 = vmul.f32 %v4382, %v4380
  %v4384 = vxor.u32 %v4383, 2147483648
  %v4385 = vsel %vm4302, %v4384, %v4383
  %v4386 = vsub.s32 4, %v4362
  %v4387 = vsel %vm4302, %v4386, %v4362
  %v4388 = vsel %vm4301, %v1178, %v4385
  %v4389 = vsel %vm4301, 0, %v4387
  %v4390 = vcosq.f32.pop %v4388
  %v4391 = vsinq.f32.pop %v4388
  %vm4392 = vweird.f32 %v1178
  %v4393 = vadd.s32 %v4389, 3
  %v4394 = vand.u32 %v4393, 3
  %vm4395 = vcmp.lt.s32.totalorder %v4394, 2
  %vm4396 = vcmp.eq.s32.totalorder %v4394, 0
  %v4397 = vxor.u32 %v4391, 2147483648
  %v4398 = vsel %vm4396, %v4390, %v4397
  %vm4399 = vcmp.eq.s32.totalorder %v4394, 2
  %v4400 = vxor.u32 %v4390, 2147483648
  %v4401 = vsel %vm4399, %v4400, %v4391
  %v4402 = vsel %vm4395, %v4398, %v4401
  %v4403 = vsel %vm4392, nan, %v4402
  %v4404 = vand.u32 2147483647, %v1179
  %vm4405 = vcmp.le.f32.partialorder %v4404, 0.7853982
  %vm4406 = vcmp.lt.s32.totalorder %v1179, 0
  %v4407 = vand.u32 %v1179, 2139095040
  %v4408 = vshrl.u32 %v4407, 23
  %v4409 = vsub.s32 %v4408, 127
  %v4410 = vand.u32 2147483647, %v1179
  %v4411 = vand.u32 %v4410, 8388607
  %v4412 = vor.u32 %v4411, 8388608
  %v4413 = vsub.s32 0, %v4412
  %v4414 = vadd.s32 %v4409, 1
  %vm4415 = vcmp.gt.s32.totalorder %v4414, 0
  %v4416 = vsel %vm4415, %v4414, 0
  %v4417 = vshrl.u32 %v4416, 5
  %v4418 = vand.u32 %v4416, 31
  %v4419 = vsub.s32 32, %v4418
  %v4420 = vshrl.u32 683565275, %v4419
  %v4421 = vshll.u32 683565275, %v4418
  %v4422 = vshrl.u32 2475754826, %v4419
  %v4423 = vor.u32 %v4421, %v4422
  %v4424 = vshll.u32 2475754826, %v4418
  %v4425 = vshrl.u32 2131351028, %v4419
  %v4426 = vor.u32 %v4424, %v4425
  %v4427 = vshll.u32 2131351028, %v4418
  %v4428 = vshrl.u32 2102212464, %v4419
  %v4429 = vor.u32 %v4427, %v4428
  %v4430 = vshll.u32 2102212464, %v4418
  %v4431 = vshrl.u32 920167782, %v4419
  %v4432 = vor.u32 %v4430, %v4431
  %v4433 = vshll.u32 920167782, %v4418
  %v4434 = vshrl.u32 1326507024, %v4419
  %v4435 = vor.u32 %v4433, %v4434
  %vm4436 = vcmp.lt.s32.totalorder %v4417, 1
  %vm4437 = vcmp.lt.s32.totalorder %v4417, 2
  %vm4438 = vcmp.lt.s32.totalorder %v4417, 3
  %vm4439 = vcmp.lt.s32.totalorder %v4417, 4
  %v4440 = vsel %vm4436, %v4420, %v4423
  %v4441 = vsel %vm4439, %v4429, 2102212464
  %v4442 = vsel %vm4438, %v4426, %v4441
  %v4443 = vsel %vm4437, %v4440, %v4442
  %v4444 = vsel %vm4436, %v4423, %v4426
  %v4445 = vsel %vm4439, %v4432, 920167782
  %v4446 = vsel %vm4438, %v4429, %v4445
  %v4447 = vsel %vm4437, %v4444, %v4446
  %v4448 = vsel %vm4436, %v4426, %v4429
  %v4449 = vsel %vm4439, %v4435, 1326507024
  %v4450 = vsel %vm4438, %v4432, %v4449
  %v4451 = vsel %vm4437, %v4448, %v4450
  %v4452 = vshll.u32 %v4412, 8
  %v4453 = vmul.u32.u64.compose %v4452, %v4451
  %v4454 = vextract.low.u32 %v4453
  %v4455 = vextract.high.u32 %v4453
  %v4456 = vmul.u32.u64.compose %v4452, %v4447
  %v4457 = vextract.low.u32 %v4456
  %v4458 = vextract.high.u32 %v4456
  %v4459 = vmul.u32 %v4452, %v4443
  %v4460 = vadd.s32 %v4455, %v4457
  %vm4461 = vc.u32 %v4455, %v4457
  %v4462 = vadd.s32 %v4458, 1
  %v4463 = vsel %vm4461, %v4462, %v4458
  %v4464 = vadd.s32 %v4459, %v4463
  %v4465 = vadd.s32 %v4464, 536870912
  %v4466 = vshrl.u32 %v4465, 30
  %v4467 = vshll.u32 %v4466, 30
  %v4468 = vsub.s32 %v4464, %v4467
  %vm4469 = vcmp.lt.s32.totalorder %v4468, 0
  %v4470 = vsub.s32 0, %v4468
  %v4471 = vsel %vm4469, %v4470, %v4468
  %v4472 = vclz %v4471
  %v4473 = vsub.s32 %v4472, 2
  %vm4474 = vcmp.gt.s32.totalorder 0, %v4473
  %v4475 = vsel %vm4474, 0, %v4473
  %v4476 = vsub.s32 32, %v4475
  %v4477 = vshll.u32 %v4468, %v4475
  %v4478 = vshrl.u32 %v4460, %v4476
  %v4479 = vor.u32 %v4477, %v4478
  %v4480 = vsub.s32 4294967266, %v4475
  %v4481 = vadd.s32 %v4480, 127
  %v4482 = vshll.u32 %v4481, 23
  %v4483 = vor.u32 4788187, %v4482
  %v4484 = vand.u32 2147483647, %v4483
  %v4486 = vcvt.s32.f32 %v4479
  %v4487 = vmul.f32 %v4486, %v4484
  %v4488 = vxor.u32 %v4487, 2147483648
  %v4489 = vsel %vm4406, %v4488, %v4487
  %v4490 = vsub.s32 4, %v4466
  %v4491 = vsel %vm4406, %v4490, %v4466
  %v4492 = vsel %vm4405, %v1179, %v4489
  %v4493 = vsel %vm4405, 0, %v4491
  %v4494 = vcosq.f32.pop %v4492
  %v4495 = vsinq.f32.pop %v4492
  %vm4496 = vweird.f32 %v1179
  %v4497 = vadd.s32 %v4493, 3
  %v4498 = vand.u32 %v4497, 3
  %vm4499 = vcmp.lt.s32.totalorder %v4498, 2
  %vm4500 = vcmp.eq.s32.totalorder %v4498, 0
  %v4501 = vxor.u32 %v4495, 2147483648
  %v4502 = vsel %vm4500, %v4494, %v4501
  %vm4503 = vcmp.eq.s32.totalorder %v4498, 2
  %v4504 = vxor.u32 %v4494, 2147483648
  %v4505 = vsel %vm4503, %v4504, %v4495
  %v4506 = vsel %vm4499, %v4502, %v4505
  %v4507 = vsel %vm4496, nan, %v4506
  %v4508 = vlaneseq
  %v4509 = vand.u32 %v4508, 127
  %vm4510 = vcmp.lt.s32.totalorder %v4509, 3
  %v4511 = vsel %vm4510, %v1148, %v1283
  %v4512 = vsel %vm4510, %v1149, %v1387
  %v4513 = vsel %vm4510, %v1150, %v1491
  %v4514 = vsel %vm4510, %v1151, %v1595
  %v4515 = vsel %vm4510, %v1152, %v1699
  %v4516 = vsel %vm4510, %v1153, %v1803
  %v4517 = vsel %vm4510, %v1154, %v1907
  %v4518 = vsel %vm4510, %v1155, %v2011
  %v4519 = vsel %vm4510, %v1156, %v2115
  %v4520 = vsel %vm4510, %v1157, %v2219
  %v4521 = vsel %vm4510, %v1158, %v2323
  %v4522 = vsel %vm4510, %v1159, %v2427
  %v4523 = vsel %vm4510, %v1160, %v2531
  %v4524 = vsel %vm4510, %v1161, %v2635
  %v4525 = vsel %vm4510, %v1162, %v2739
  %v4526 = vsel %vm4510, %v1163, %v2843
  %v4527 = vsel %vm4510, %v1164, %v2947
  %v4528 = vsel %vm4510, %v1165, %v3051
  %v4529 = vsel %vm4510, %v1166, %v3155
  %v4530 = vsel %vm4510, %v1167, %v3259
  %v4531 = vsel %vm4510, %v1168, %v3363
  %v4532 = vsel %vm4510, %v1169, %v3467
  %v4533 = vsel %vm4510, %v1170, %v3571
  %v4534 = vsel %vm4510, %v1171, %v3675
  %v4535 = vsel %vm4510, %v1172, %v3779
  %v4536 = vsel %vm4510, %v1173, %v3883
  %v4537 = vsel %vm4510, %v1174, %v3987
  %v4538 = vsel %vm4510, %v1175, %v4091
  %v4539 = vsel %vm4510, %v1176, %v4195
  %v4540 = vsel %vm4510, %v1177, %v4299
  %v4541 = vsel %vm4510, %v1178, %v4403
  %v4542 = vsel %vm4510, %v1179, %v4507
  %vm4543 = vcmask 220160
  %4544 = vst.msk [vmem:[%s2] sm:$0xff] %vm4543, %v4511
  %4545 = vst.msk [vmem:[%s2 + $0x8] sm:$0xff] %vm4543, %v4512
  %4546 = vst.msk [vmem:[%s2 + $0x10] sm:$0xff] %vm4543, %v4513
  %4547 = vst.msk [vmem:[%s2 + $0x18] sm:$0xff] %vm4543, %v4514
  %4548 = vst.msk [vmem:[%s2 + $0x20] sm:$0xff] %vm4543, %v4515
  %4549 = vst.msk [vmem:[%s2 + $0x28] sm:$0xff] %vm4543, %v4516
  %4550 = vst.msk [vmem:[%s2 + $0x30] sm:$0xff] %vm4543, %v4517
  %4551 = vst.msk [vmem:[%s2 + $0x38] sm:$0xff] %vm4543, %v4518
  %4552 = vst.msk [vmem:[%s2 + $0x40] sm:$0xff] %vm4543, %v4519
  %4553 = vst.msk [vmem:[%s2 + $0x48] sm:$0xff] %vm4543, %v4520
  %4554 = vst.msk [vmem:[%s2 + $0x50] sm:$0xff] %vm4543, %v4521
  %4555 = vst.msk [vmem:[%s2 + $0x58] sm:$0xff] %vm4543, %v4522
  %4556 = vst.msk [vmem:[%s2 + $0x60] sm:$0xff] %vm4543, %v4523
  %4557 = vst.msk [vmem:[%s2 + $0x68] sm:$0xff] %vm4543, %v4524
  %4558 = vst.msk [vmem:[%s2 + $0x70] sm:$0xff] %vm4543, %v4525
  %4559 = vst.msk [vmem:[%s2 + $0x78] sm:$0xff] %vm4543, %v4526
  %4560 = vst.msk [vmem:[%s2 + $0x80] sm:$0xff] %vm4543, %v4527
  %4561 = vst.msk [vmem:[%s2 + $0x88] sm:$0xff] %vm4543, %v4528
  %4562 = vst.msk [vmem:[%s2 + $0x90] sm:$0xff] %vm4543, %v4529
  %4563 = vst.msk [vmem:[%s2 + $0x98] sm:$0xff] %vm4543, %v4530
  %4564 = vst.msk [vmem:[%s2 + $0xa0] sm:$0xff] %vm4543, %v4531
  %4565 = vst.msk [vmem:[%s2 + $0xa8] sm:$0xff] %vm4543, %v4532
  %4566 = vst.msk [vmem:[%s2 + $0xb0] sm:$0xff] %vm4543, %v4533
  %4567 = vst.msk [vmem:[%s2 + $0xb8] sm:$0xff] %vm4543, %v4534
  %4568 = vst.msk [vmem:[%s2 + $0xc0] sm:$0xff] %vm4543, %v4535
  %4569 = vst.msk [vmem:[%s2 + $0xc8] sm:$0xff] %vm4543, %v4536
  %4570 = vst.msk [vmem:[%s2 + $0xd0] sm:$0xff] %vm4543, %v4537
  %4571 = vst.msk [vmem:[%s2 + $0xd8] sm:$0xff] %vm4543, %v4538
  %4572 = vst.msk [vmem:[%s2 + $0xe0] sm:$0xff] %vm4543, %v4539
  %4573 = vst.msk [vmem:[%s2 + $0xe8] sm:$0xff] %vm4543, %v4540
  %4574 = vst.msk [vmem:[%s2 + $0xf0] sm:$0xff] %vm4543, %v4541
  %4575 = vst.msk [vmem:[%s2 + $0xf8] sm:$0xff] %vm4543, %v4542
  // Predicated region
  $region10: #{tpu_custom_call.1} parent=0 // pred_check
    _
  $region11: #{tpu_custom_call.1} parent=0 // pred_check_branch
    %4577 = sbr.rel (0) target = $region13
  $region12: #{tpu_custom_call.1} parent=0 // pred_region
    _
  $region13: #{tpu_custom_call.1} parent=0 // pred_fallthru
    _
  // Predicated region
  $region14: #{tpu_custom_call.1} parent=0 // pred_check
    _
  $region15: #{tpu_custom_call.1} parent=0 // pred_check_branch
    %4579 = sbr.rel (0) target = $region17
  $region16: #{tpu_custom_call.1} parent=0 // pred_region
    _
  $region17: #{tpu_custom_call.1} parent=0 // pred_fallthru
    _

</llo_original>
